<compile_context>
chip_gen: v5e
topology: v5e:2x2
jax: 0.10.0
libtpu: 0.0.40
codegen_flags: <defaults>
</compile_context>

<pallas_src>
import jax
import jax.numpy as jnp
import numpy as np
from jax.experimental import pallas as pl
from jax.experimental.pallas import tpu as pltpu

# ----------------------------- configuration --------------------------------
MARKER_DIM = 20
N_CLUSTER = 5
LATENT_DIM = 20
HIDDEN_DIM = 128
X_EMB = 64
T_EMB = 64
SHARED_OUT = 64
ENC_DIM = 64
D_IN = X_EMB + T_EMB            # 128  (GRU input width / phi slab width)
H3 = 3 * HIDDEN_DIM             # 384  (stacked r|z|n gate width, lane aligned)
L3 = 3 * LATENT_DIM             # 60   (stacked cluster-GRU gate width)
GIC_LANES = 128                 # lane-dense packed cluster-gate slab width
STATS_LANES = 128               # lane-dense per-row stats slab width
HEAD_OUT = 2 * MARKER_DIM + 1   # fused [x_mu | x_logvar | h_influence] head
LOGVAR_MIN = float(np.log(1e-4))


def _full(a):
    """Full-array BlockSpec for a weight on a rank-1 grid."""
    nd = a.ndim
    zeros = (0,) * nd
    return pl.BlockSpec(a.shape, lambda i: zeros)


def _row_block(n):
    """Largest row block <= min(n//2, 1024) that divides n and is a multiple
    of 16 (bf16 sublane tiling); falls back to the full row count."""
    cap = min(n // 2, 1024)
    rb = (cap // 16) * 16
    while rb >= 16:
        if n % rb == 0:
            return rb
        rb -= 16
    return n


def _time_chunk(T, cap=16):
    """Largest chunk <= cap that divides T (inner unrolled-loop length)."""
    tc = min(T, cap)
    while T % tc:
        tc -= 1
    return max(tc, 1)


# ------------------------------ Pallas kernels ------------------------------
def _preprocess_kernel(x_ref, t_ref, w_t0_ref, b_t0_ref, w_xphi_ref, w_tphi_ref,
                       b_phi_ref, w_ih_ref, b_ih_ref, phi_ref, gi_ref):
    f32, bf16 = jnp.float32, jnp.bfloat16
    x = x_ref[...]
    tt = t_ref[...]
    # embed_time hidden layer (tiny K=2 contraction, kept in f32)
    h_t = jnp.dot(tt, w_t0_ref[...], preferred_element_type=f32) + b_t0_ref[...]
    h_t = jnp.maximum(h_t, 0.0)
    # phi = [phi_x | phi_t] built as a sum of zero-padded matmuls -> one
    # unmasked 128-lane store.
    phi = (jnp.dot(x.astype(bf16), w_xphi_ref[...], preferred_element_type=f32)
           + jnp.dot(h_t.astype(bf16), w_tphi_ref[...], preferred_element_type=f32)
           + b_phi_ref[...])
    phi_b = phi.astype(bf16)
    phi_ref[...] = phi_b
    # Hoisted input gates for BOTH sequence GRUs: one K=128 contraction.
    gi = jnp.dot(phi_b, w_ih_ref[...], preferred_element_type=f32) + b_ih_ref[...]
    gi_ref[0] = gi[:, :H3]      # forward GRU gates      (128-aligned slice)
    gi_ref[1] = gi[:, H3:]      # recognition GRU gates  (128-aligned slice)


def _make_seq_gru_kernel(tc):
    def kernel(gi_ref, whh_ref, bhh_ref, out_ref, h_ref):
        d = pl.program_id(0)        # 0 = forward (emits h_{t-1}), 1 = recognition
        c = pl.program_id(1)        # time chunk

        @pl.when(c == 0)
        def _():
            h_ref[d] = jnp.zeros(h_ref.shape[1:], h_ref.dtype)

        whh = whh_ref[0]                        # (H, 3H) bf16, hoisted
        bhh = bhh_ref[0]                        # (1, 3H) f32
        emit_pre = d == 0                       # fwd emits the shifted sequence
        H = HIDDEN_DIM

        h = h_ref[d]                            # (BS, H) f32 carry
        # Trace-time-unrolled inner loop over the TC timesteps of this chunk
        # (equivalent to lax.fori_loop(..., unroll=True), static indices).
        for s in range(tc):
            gi = gi_ref[0, s]                   # (BS, 3H) precomputed gates
            gh = jnp.dot(h.astype(jnp.bfloat16), whh,
                         preferred_element_type=jnp.float32) + bhh
            r = jax.nn.sigmoid(gi[:, :H] + gh[:, :H])
            z = jax.nn.sigmoid(gi[:, H:2 * H] + gh[:, H:2 * H])
            g = jnp.tanh(gi[:, 2 * H:] + r * gh[:, 2 * H:])
            h_new = (1.0 - z) * g + z * h
            out_ref[0, s] = jnp.where(emit_pre, h, h_new).astype(out_ref.dtype)
            h = h_new
        h_ref[d] = h
    return kernel


def _head_kernel(hseq_ref, phi_ref, x_ref, djs_ref, eps_ref,
                 w_inf_rh_ref, w_inf_phi_ref, b_inf_ref,
                 w_enc_ref, b_enc_ref,
                 w_ihc_ref, b_ihc_ref,
                 w_eh_hs_ref, w_eh_z_ref, b_eh_ref,
                 w_out_ref, b_out_ref,
                 ti_ref, bi_ref,
                 gic_ref, stats_ref):
    f32, bf16 = jnp.float32, jnp.bfloat16
    L = LATENT_DIM
    hs = hseq_ref[0]                            # (rb, H) shifted fwd hidden (bf16)
    rh = hseq_ref[1]                            # (rb, H) recognition hidden (bf16)
    phi = phi_ref[...]                          # (rb, 128) bf16
    x = x_ref[...]
    d_js = djs_ref[...]                         # (rb, 1)
    eps = eps_ref[...]

    # --- encoder: inference_net(ReLU) on concat(recog_hs, phi) as a sum ---
    hid = (jnp.dot(rh, w_inf_rh_ref[...], preferred_element_type=f32)
           + jnp.dot(phi, w_inf_phi_ref[...], preferred_element_type=f32)
           + b_inf_ref[...])
    hid = jnp.maximum(hid, 0.0)
    enc = (jnp.dot(hid.astype(bf16), w_enc_ref[...], preferred_element_type=f32)
           + b_enc_ref[...])                    # [mu | logvar] fused head
    mu = enc[:, :L]
    lv = jnp.maximum(enc[:, L:2 * L], LOGVAR_MIN)

    # --- reparameterize + KL(q(z) || N(0,1)) ---
    z = mu + eps * jnp.exp(0.5 * lv)
    kl_z = 0.5 * jnp.sum(jnp.exp(lv) + mu * mu - 1.0 - lv,
                         axis=-1, keepdims=True)

    # --- hoisted bidirectional cluster-GRU input gates: ONE packed GEMM and
    #     ONE unmasked lane-dense (rb, 128) store (lanes 0:60 fwd, 60:120 bwd)
    gic_ref[...] = (jnp.dot(z, w_ihc_ref[...], preferred_element_type=f32)
                    + b_ihc_ref[...])

    # --- decoder: embed_hidden on concat(hs, z) as a sum of matmuls ---
    hz = (jnp.dot(hs, w_eh_hs_ref[...], preferred_element_type=f32)
          + jnp.dot(z.astype(bf16), w_eh_z_ref[...], preferred_element_type=f32)
          + b_eh_ref[...])

    # --- fused output heads: [x_mu | x_logvar | h_influence] ---
    heads = (jnp.dot(hz.astype(bf16), w_out_ref[...], preferred_element_type=f32)
             + b_out_ref[...])
    x_mu = heads[:, :MARKER_DIM]
    x_lv = jnp.maximum(heads[:, MARKER_DIM:2 * MARKER_DIM], LOGVAR_MIN)
    past = heads[:, 2 * MARKER_DIM:HEAD_OUT]                          # (rb, 1)

    # --- marker Gaussian log-likelihood ---
    marker_ll = jnp.sum(
        -0.5 * (x - x_mu) ** 2 * jnp.exp(-x_lv) - 0.5 * x_lv
        - 0.5 * jnp.log(2.0 * jnp.pi),
        axis=-1, keepdims=True)

    # --- point-process log-likelihood (scalars from SMEM) ---
    ti = ti_ref[0, 0]
    bi = bi_ref[0, 0]
    term1 = past + ti * d_js + bi
    term2 = jnp.exp(past + bi)
    term3 = jnp.exp(term1)
    time_ll = term1 + (1.0 / (ti + 1e-6)) * (term2 - term3)

    # --- lane-dense packed per-row stats slab ---
    lane = jax.lax.broadcasted_iota(jnp.int32, stats_ref.shape, 1)
    stats_ref[...] = (jnp.where(lane == 0, time_ll, 0.0)
                      + jnp.where(lane == 1, marker_ll, 0.0)
                      + jnp.where(lane == 2, kl_z, 0.0))


def _make_cluster_kernel(tc):
    def kernel(gf_ref, gb_ref, whh_ref, bhh_ref, wclu_ref, bclu_ref,
               kl_ref, hf_ref, hb_ref):
        c = pl.program_id(0)
        f32 = jnp.float32
        L = LATENT_DIM

        @pl.when(c == 0)
        def _():
            hf_ref[...] = jnp.zeros_like(hf_ref)
            hb_ref[...] = jnp.zeros_like(hb_ref)

        whh_f, bhh_f = whh_ref[0], bhh_ref[0]       # (L, 60), (1, 60)
        whh_b, bhh_b = whh_ref[1], bhh_ref[1]

        def gru_step(gi, h, whh, bhh):
            # one packed (L, 3L) GEMM per step instead of 3 tiny ones
            gh = jnp.dot(h, whh, preferred_element_type=f32) + bhh
            r = jax.nn.sigmoid(gi[:, :L] + gh[:, :L])
            z = jax.nn.sigmoid(gi[:, L:2 * L] + gh[:, L:2 * L])
            g = jnp.tanh(gi[:, 2 * L:L3] + r * gh[:, 2 * L:L3])
            return (1.0 - z) * g + z * h

        hf = hf_ref[...]
        hb = hb_ref[...]
        # trace-time-unrolled inner loop over the TC timesteps of this chunk
        for s in range(tc):
            gi_f = gf_ref[s][:, :L3]                 # fwd gates, time forward
            gi_b = gb_ref[tc - 1 - s][:, L3:2 * L3]  # bwd gates, time reversed
            hf = gru_step(gi_f, hf, whh_f, bhh_f)
            hb = gru_step(gi_b, hb, whh_b, bhh_b)
        hf_ref[...] = hf
        hb_ref[...] = hb

        @pl.when(c == pl.num_programs(0) - 1)
        def _():
            logits = (jnp.dot(hf, wclu_ref[0], preferred_element_type=f32)
                      + jnp.dot(hb, wclu_ref[1], preferred_element_type=f32)
                      + bclu_ref[...])
            prob = jax.nn.softmax(logits, axis=-1)
            kl_ref[...] = jnp.sum(prob * jnp.log(prob * N_CLUSTER + 1e-20),
                                  axis=-1, keepdims=True)
    return kernel


# ----------------------------- pallas_call wrappers --------------------------
def _preprocess(params, x_flat, t_flat, rb):
    n = x_flat.shape[0]
    return pl.pallas_call(
        _preprocess_kernel,
        out_shape=(
            jax.ShapeDtypeStruct((n, D_IN), jnp.bfloat16),    # phi slab
            jax.ShapeDtypeStruct((2, n, H3), jnp.float32),    # hoisted GRU gates
        ),
        grid=(n // rb,),
        in_specs=[
            pl.BlockSpec((rb, MARKER_DIM), lambda i: (i, 0)),
            pl.BlockSpec((rb, 2), lambda i: (i, 0)),
            _full(params["w_t0"]), _full(params["b_t0"]),
            _full(params["w_xphi"]), _full(params["w_tphi"]), _full(params["b_phi"]),
            _full(params["w_ih_cat"]), _full(params["b_ih"]),
        ],
        out_specs=(
            pl.BlockSpec((rb, D_IN), lambda i: (i, 0)),
            pl.BlockSpec((2, rb, H3), lambda i: (0, i, 0)),
        ),
        compiler_params=pltpu.CompilerParams(dimension_semantics=("parallel",)),
    )(x_flat, t_flat, params["w_t0"], params["b_t0"], params["w_xphi"],
      params["w_tphi"], params["b_phi"], params["w_ih_cat"], params["b_ih"])


def _seq_gru(gi_seq, whh, bhh, tc):
    _, T, BS, _ = gi_seq.shape
    C = T // tc
    return pl.pallas_call(
        _make_seq_gru_kernel(tc),
        out_shape=jax.ShapeDtypeStruct((2, T, BS, HIDDEN_DIM), jnp.bfloat16),
        grid=(2, C),
        in_specs=[
            pl.BlockSpec((1, tc, BS, H3), lambda d, c: (d, c, 0, 0)),
            pl.BlockSpec((1, HIDDEN_DIM, H3), lambda d, c: (d, 0, 0)),
            pl.BlockSpec((1, 1, H3), lambda d, c: (d, 0, 0)),
        ],
        out_specs=pl.BlockSpec((1, tc, BS, HIDDEN_DIM), lambda d, c: (d, c, 0, 0)),
        scratch_shapes=[pltpu.VMEM((2, BS, HIDDEN_DIM), jnp.float32)],
        compiler_params=pltpu.CompilerParams(
            dimension_semantics=("parallel", "arbitrary")),
    )(gi_seq, whh, bhh)


def _head(params, hseq_flat, phi, x_flat, d_js, eps, rb):
    n = x_flat.shape[0]
    smem = pl.BlockSpec(memory_space=pltpu.MemorySpace.SMEM)
    return pl.pallas_call(
        _head_kernel,
        out_shape=(
            jax.ShapeDtypeStruct((n, GIC_LANES), jnp.float32),    # cluster gates
            jax.ShapeDtypeStruct((n, STATS_LANES), jnp.float32),  # row stats
        ),
        grid=(n // rb,),
        in_specs=[
            pl.BlockSpec((2, rb, HIDDEN_DIM), lambda i: (0, i, 0)),
            pl.BlockSpec((rb, D_IN), lambda i: (i, 0)),
            pl.BlockSpec((rb, MARKER_DIM), lambda i: (i, 0)),
            pl.BlockSpec((rb, 1), lambda i: (i, 0)),
            pl.BlockSpec((rb, LATENT_DIM), lambda i: (i, 0)),
            _full(params["w_inf_rh"]), _full(params["w_inf_phi"]),
            _full(params["b_inf"]),
            _full(params["w_enc_all"]), _full(params["b_enc_all"]),
            _full(params["w_ihc_all"]), _full(params["b_ihc_all"]),
            _full(params["w_eh_hs"]), _full(params["w_eh_z"]), _full(params["b_eh"]),
            _full(params["w_out_all"]), _full(params["b_out_all"]),
            smem, smem,
        ],
        out_specs=(
            pl.BlockSpec((rb, GIC_LANES), lambda i: (i, 0)),
            pl.BlockSpec((rb, STATS_LANES), lambda i: (i, 0)),
        ),
        compiler_params=pltpu.CompilerParams(dimension_semantics=("parallel",)),
    )(hseq_flat, phi, x_flat, d_js, eps,
      params["w_inf_rh"], params["w_inf_phi"], params["b_inf"],
      params["w_enc_all"], params["b_enc_all"],
      params["w_ihc_all"], params["b_ihc_all"],
      params["w_eh_hs"], params["w_eh_z"], params["b_eh"],
      params["w_out_all"], params["b_out_all"],
      params["time_influence"], params["base_intensity"])


def _cluster_kl(params, gic_seq, tc):
    T, BS, _ = gic_seq.shape
    C = T // tc
    return pl.pallas_call(
        _make_cluster_kernel(tc),
        out_shape=jax.ShapeDtypeStruct((BS, 1), jnp.float32),
        grid=(C,),
        in_specs=[
            # forward direction: chunks in natural order
            pl.BlockSpec((tc, BS, GIC_LANES), lambda c: (c, 0, 0)),
            # backward direction: chunks in reversed order (time reversed
            # within the chunk inside the kernel) -- no z[::-1] HBM copy
            pl.BlockSpec((tc, BS, GIC_LANES), lambda c: (C - 1 - c, 0, 0)),
            _full(params["whh_c"]), _full(params["bhh_c"]),
            _full(params["w_clu"]), _full(params["b_clu"]),
        ],
        out_specs=pl.BlockSpec((BS, 1), lambda c: (0, 0)),
        scratch_shapes=[pltpu.VMEM((BS, LATENT_DIM), jnp.float32),
                        pltpu.VMEM((BS, LATENT_DIM), jnp.float32)],
        compiler_params=pltpu.CompilerParams(dimension_semantics=("arbitrary",)),
    )(gic_seq, gic_seq, params["whh_c"], params["bhh_c"],
      params["w_clu"], params["b_clu"])


# ---------------------------- parameter creation -----------------------------
def _uniform(key, shape, bound):
    return jax.random.uniform(key, shape, jnp.float32, -bound, bound)


def init_params(key):
    keys = iter(jax.random.split(key, 40))
    f32, bf16 = jnp.float32, jnp.bfloat16

    def u(shape, bound):
        return _uniform(next(keys), shape, bound)

    p = {}
    # --- input embedding layers (embed_x, embed_time) ---
    bx = 1.0 / np.sqrt(MARKER_DIM)
    w_x, b_x = u((MARKER_DIM, X_EMB), bx), u((1, X_EMB), bx)
    bt0 = 1.0 / np.sqrt(2.0)
    p["w_t0"], p["b_t0"] = u((2, T_EMB), bt0), u((1, T_EMB), bt0)
    bt1 = 1.0 / np.sqrt(T_EMB)
    w_t1, b_t1 = u((T_EMB, T_EMB), bt1), u((1, T_EMB), bt1)
    # zero-padded "concat-as-matmul" weights so phi = [phi_x | phi_t] is one
    # lane-dense 128-wide slab
    p["w_xphi"] = jnp.concatenate(
        [w_x, jnp.zeros((MARKER_DIM, T_EMB), f32)], axis=1).astype(bf16)
    p["w_tphi"] = jnp.concatenate(
        [jnp.zeros((T_EMB, X_EMB), f32), w_t1], axis=1).astype(bf16)
    p["b_phi"] = jnp.concatenate([b_x, b_t1], axis=1)

    # --- forward + recognition sequence GRUs (input gates hoisted to K1) ---
    gb = 1.0 / np.sqrt(HIDDEN_DIM)
    p["w_ih_cat"] = u((D_IN, 2 * H3), gb).astype(bf16)   # [fwd r|z|n | recog r|z|n]
    p["b_ih"] = u((1, 2 * H3), gb)
    p["whh"] = u((2, HIDDEN_DIM, H3), gb).astype(bf16)
    p["bhh"] = u((2, 1, H3), gb)

    # --- encoder: inference_net split by input group + stacked mu|logvar head
    eb = 1.0 / np.sqrt(HIDDEN_DIM + D_IN)
    p["w_inf_rh"] = u((HIDDEN_DIM, ENC_DIM), eb).astype(bf16)
    p["w_inf_phi"] = u((D_IN, ENC_DIM), eb).astype(bf16)
    p["b_inf"] = u((1, ENC_DIM), eb)
    mb = 1.0 / np.sqrt(ENC_DIM)
    p["w_enc_all"] = u((ENC_DIM, 2 * LATENT_DIM), mb).astype(bf16)
    p["b_enc_all"] = u((1, 2 * LATENT_DIM), mb)

    # --- bidirectional cluster GRU: gate weights packed on the lane axis ---
    cb = 1.0 / np.sqrt(LATENT_DIM)
    w_ihc = u((LATENT_DIM, 2 * L3), cb)                  # [fwd r|z|n | bwd r|z|n]
    b_ihc = u((1, 2 * L3), cb)
    p["w_ihc_all"] = jnp.concatenate(
        [w_ihc, jnp.zeros((LATENT_DIM, GIC_LANES - 2 * L3), f32)], axis=1)
    p["b_ihc_all"] = jnp.concatenate(
        [b_ihc, jnp.zeros((1, GIC_LANES - 2 * L3), f32)], axis=1)
    p["whh_c"] = u((2, LATENT_DIM, L3), cb)              # per-direction [r|z|n]
    p["bhh_c"] = u((2, 1, L3), cb)

    # --- inference_cluster Linear(2*latent, n_cluster), split per direction ---
    ib = 1.0 / np.sqrt(2 * LATENT_DIM)
    p["w_clu"] = u((2, LATENT_DIM, N_CLUSTER), ib)
    p["b_clu"] = u((1, N_CLUSTER), ib)

    # --- decoder embed_hidden (concat-as-sum) + fused output heads ---
    hb = 1.0 / np.sqrt(HIDDEN_DIM + LATENT_DIM)
    p["w_eh_hs"] = u((HIDDEN_DIM, SHARED_OUT), hb).astype(bf16)
    p["w_eh_z"] = u((LATENT_DIM, SHARED_OUT), hb).astype(bf16)
    p["b_eh"] = u((1, SHARED_OUT), hb)
    xb = 1.0 / np.sqrt(SHARED_OUT)
    w_xmu, b_xmu = u((SHARED_OUT, MARKER_DIM), xb), u((1, MARKER_DIM), xb)
    w_xlv, b_xlv = u((SHARED_OUT, MARKER_DIM), xb), u((1, MARKER_DIM), xb)
    w_hinf = u((SHARED_OUT, 1), xb)                      # h_influence (no bias)
    p["w_out_all"] = jnp.concatenate([w_xmu, w_xlv, w_hinf], axis=1).astype(bf16)
    p["b_out_all"] = jnp.concatenate([b_xmu, b_xlv, jnp.zeros((1, 1), f32)], axis=1)

    # --- point-process parameters (SMEM scalars in K3) ---
    p["time_influence"] = 0.01 * jnp.ones((1, 1), f32)
    p["base_intensity"] = jnp.zeros((1, 1), f32)

    # cluster_decoder / output_z_mu / output_z_logvar are intentionally omitted:
    # the decoder_cluster_layer branch never reaches the returned loss/meta.
    return p


# ------------------------------- forward pass --------------------------------
def h_storn_softmax_forward(params, x, t, key, temp=1.0, mask=None):
    # `temp` only affects the gumbel-softmax sample, which is dead code w.r.t.
    # the returned (loss, meta) in the reference forward.
    T, BS, _ = x.shape
    n = T * BS
    rb = _row_block(n)
    tc = _time_chunk(T)

    # TODO(synk): eps could be generated in-kernel with pltpu.prng_seed +
    # prng_random_bits to skip this tiny HBM round-trip.
    eps = jax.random.normal(key, (n, LATENT_DIM), jnp.float32)

    x_flat = x.reshape(n, MARKER_DIM)
    t_flat = t.reshape(n, 2)
    d_js = t[:, :, 1].reshape(n, 1)

    # K1: input embeddings (lane-dense phi slab) + hoisted GRU input gates
    phi, gi = _preprocess(params, x_flat, t_flat, rb)

    # K2: forward + recognition GRU recurrences (direction-parallel, time-chunked)
    hseq = _seq_gru(gi.reshape(2, T, BS, H3), params["whh"], params["bhh"], tc)
    hseq_flat = hseq.reshape(2, n, HIDDEN_DIM)

    # K3: fused encoder / reparam / KL / cluster gates / decoder + loss heads
    gic, stats = _head(params, hseq_flat, phi, x_flat, d_js, eps, rb)

    # K4: bidirectional cluster GRU + inference_cluster + cluster KL
    kl_cluster = _cluster_kl(params, gic.reshape(T, BS, GIC_LANES), tc)

    time_ll = stats[:, 0].reshape(T, BS)
    marker_ll = stats[:, 1].reshape(T, BS)
    kl_z = stats[:, 2].reshape(T, BS)

    # Reference broadcasts kl_cluster (BS,) against kl_z (T,BS) before summing.
    kl_loss = kl_cluster.reshape(1, BS) + kl_z
    loss = -1.0 * (time_ll + marker_ll)
    if mask is not None:
        loss = loss * mask
    total = loss.sum() + kl_loss.sum()
    meta = [-marker_ll.sum(), -time_ll.sum(), kl_loss.sum()]
    return total, meta


# ----------------------------------- main ------------------------------------
if __name__ == "__main__":
    T, BS = 8, 2
    key = jax.random.PRNGKey(0)
    k_param, k_x, k_t, k_noise = jax.random.split(key, 4)

    params = init_params(k_param)

    x = jax.random.normal(k_x, (T, BS, MARKER_DIM), jnp.float32)
    gaps = jnp.abs(jax.random.normal(k_t, (T, BS), jnp.float32))
    times = jnp.cumsum(gaps, axis=0)
    t = jnp.stack([times, gaps], axis=-1)                    # (T, BS, 2)

    fwd = jax.jit(lambda p, xx, tt, kk: h_storn_softmax_forward(
        p, xx, tt, kk, temp=1.0, mask=None))
    total_loss, meta = fwd(params, x, t, k_noise)
    jax.block_until_ready(total_loss)
    print("KERNEL_OK")
</pallas_src>

<mosaic_0001>
module attributes {stable_mosaic.version = 11 : i64} {
  func.func @_preprocess_kernel(%arg0: i32, %arg1: memref<16x20xf32, #tpu.memory_space<vmem>>, %arg2: memref<16x2xf32, #tpu.memory_space<vmem>>, %arg3: memref<2x64xf32, #tpu.memory_space<vmem>>, %arg4: memref<1x64xf32, #tpu.memory_space<vmem>>, %arg5: memref<20x128xbf16, #tpu.memory_space<vmem>>, %arg6: memref<64x128xbf16, #tpu.memory_space<vmem>>, %arg7: memref<1x128xf32, #tpu.memory_space<vmem>>, %arg8: memref<128x768xbf16, #tpu.memory_space<vmem>>, %arg9: memref<1x768xf32, #tpu.memory_space<vmem>>, %arg10: memref<16x128xbf16, #tpu.memory_space<vmem>>, %arg11: memref<2x16x384xf32, #tpu.memory_space<vmem>>) attributes {dimension_semantics = [#tpu.dimension_semantics<parallel>], iteration_bounds = array<i64: 1>, scalar_prefetch = 0 : i64, scratch_operands = 0 : i64, tpu.core_type = #tpu.core_type<tc>, window_params = [{transform_indices = @transform_0, window_bounds = array<i64: 16, 20>}, {transform_indices = @transform_1, window_bounds = array<i64: 16, 2>}, {pipeline_mode = #tpu.pipeline_mode<synchronous>, transform_indices = @transform_2, window_bounds = array<i64: 2, 64>}, {pipeline_mode = #tpu.pipeline_mode<synchronous>, transform_indices = @transform_3, window_bounds = array<i64: 1, 64>}, {pipeline_mode = #tpu.pipeline_mode<synchronous>, transform_indices = @transform_4, window_bounds = array<i64: 20, 128>}, {pipeline_mode = #tpu.pipeline_mode<synchronous>, transform_indices = @transform_5, window_bounds = array<i64: 64, 128>}, {pipeline_mode = #tpu.pipeline_mode<synchronous>, transform_indices = @transform_6, window_bounds = array<i64: 1, 128>}, {pipeline_mode = #tpu.pipeline_mode<synchronous>, transform_indices = @transform_7, window_bounds = array<i64: 128, 768>}, {pipeline_mode = #tpu.pipeline_mode<synchronous>, transform_indices = @transform_8, window_bounds = array<i64: 1, 768>}, {transform_indices = @transform_9, window_bounds = array<i64: 16, 128>}, {transform_indices = @transform_10, window_bounds = array<i64: 2, 16, 384>}]} {
    %c0 = arith.constant 0 : index
    %c0_0 = arith.constant 0 : index
    %0 = vector.load %arg1[%c0, %c0_0] : memref<16x20xf32, #tpu.memory_space<vmem>>, vector<16x20xf32>
    %c0_1 = arith.constant 0 : index
    %c0_2 = arith.constant 0 : index
    %1 = vector.load %arg2[%c0_1, %c0_2] : memref<16x2xf32, #tpu.memory_space<vmem>>, vector<16x2xf32>
    %c0_3 = arith.constant 0 : index
    %c0_4 = arith.constant 0 : index
    %2 = vector.load %arg3[%c0_3, %c0_4] : memref<2x64xf32, #tpu.memory_space<vmem>>, vector<2x64xf32>
    %cst = arith.constant dense<0.000000e+00> : vector<16x64xf32>
    %3 = tpu.matmul %1, %2, %cst {dimension_numbers = #tpu.dot_dimension_numbers<[1], [0], [0], [1], [0, 0, 1, 1], [], []>} : vector<16x2xf32>, vector<2x64xf32>, vector<16x64xf32> -> vector<16x64xf32>
    %c0_5 = arith.constant 0 : index
    %c0_6 = arith.constant 0 : index
    %4 = vector.load %arg4[%c0_5, %c0_6] : memref<1x64xf32, #tpu.memory_space<vmem>>, vector<1x64xf32>
    %5 = vector.broadcast %4 : vector<1x64xf32> to vector<16x64xf32>
    %6 = arith.addf %3, %5 : vector<16x64xf32>
    %cst_7 = arith.constant 0.000000e+00 : f32
    %7 = vector.broadcast %cst_7 : f32 to vector<16x64xf32>
    %8 = arith.maximumf %6, %7 : vector<16x64xf32>
    %9 = arith.truncf %0 : vector<16x20xf32> to vector<16x20xbf16>
    %c0_8 = arith.constant 0 : index
    %c0_9 = arith.constant 0 : index
    %10 = vector.load %arg5[%c0_8, %c0_9] : memref<20x128xbf16, #tpu.memory_space<vmem>>, vector<20x128xbf16>
    %cst_10 = arith.constant dense<0.000000e+00> : vector<16x128xf32>
    %11 = tpu.matmul %9, %10, %cst_10 {dimension_numbers = #tpu.dot_dimension_numbers<[1], [0], [0], [1], [0, 0, 1, 1], [], []>} : vector<16x20xbf16>, vector<20x128xbf16>, vector<16x128xf32> -> vector<16x128xf32>
    %12 = arith.truncf %8 : vector<16x64xf32> to vector<16x64xbf16>
    %c0_11 = arith.constant 0 : index
    %c0_12 = arith.constant 0 : index
    %13 = vector.load %arg6[%c0_11, %c0_12] : memref<64x128xbf16, #tpu.memory_space<vmem>>, vector<64x128xbf16>
    %cst_13 = arith.constant dense<0.000000e+00> : vector<16x128xf32>
    %14 = tpu.matmul %12, %13, %cst_13 {dimension_numbers = #tpu.dot_dimension_numbers<[1], [0], [0], [1], [0, 0, 1, 1], [], []>} : vector<16x64xbf16>, vector<64x128xbf16>, vector<16x128xf32> -> vector<16x128xf32>
    %15 = arith.addf %11, %14 : vector<16x128xf32>
    %c0_14 = arith.constant 0 : index
    %c0_15 = arith.constant 0 : index
    %16 = vector.load %arg7[%c0_14, %c0_15] : memref<1x128xf32, #tpu.memory_space<vmem>>, vector<1x128xf32>
    %17 = vector.broadcast %16 : vector<1x128xf32> to vector<16x128xf32>
    %18 = arith.addf %15, %17 : vector<16x128xf32>
    %19 = arith.truncf %18 : vector<16x128xf32> to vector<16x128xbf16>
    %c0_16 = arith.constant 0 : index
    %c0_17 = arith.constant 0 : index
    %20 = vector.load %arg10[%c0_16, %c0_17] : memref<16x128xbf16, #tpu.memory_space<vmem>>, vector<16x128xbf16>
    tpu.vector_store %arg10[%c0_16, %c0_17], %19 {strides = array<i32>} : memref<16x128xbf16, #tpu.memory_space<vmem>>, vector<16x128xbf16>,
    %c0_18 = arith.constant 0 : index
    %c0_19 = arith.constant 0 : index
    %21 = vector.load %arg8[%c0_18, %c0_19] : memref<128x768xbf16, #tpu.memory_space<vmem>>, vector<128x768xbf16>
    %cst_20 = arith.constant dense<0.000000e+00> : vector<16x768xf32>
    %22 = tpu.matmul %19, %21, %cst_20 {dimension_numbers = #tpu.dot_dimension_numbers<[1], [0], [0], [1], [0, 0, 1, 1], [], []>} : vector<16x128xbf16>, vector<128x768xbf16>, vector<16x768xf32> -> vector<16x768xf32>
    %c0_21 = arith.constant 0 : index
    %c0_22 = arith.constant 0 : index
    %23 = vector.load %arg9[%c0_21, %c0_22] : memref<1x768xf32, #tpu.memory_space<vmem>>, vector<1x768xf32>
    %24 = vector.broadcast %23 : vector<1x768xf32> to vector<16x768xf32>
    %25 = arith.addf %22, %24 : vector<16x768xf32>
    %26 = vector.extract_strided_slice %25 {offsets = [0, 0], sizes = [16, 384], strides = [1, 1]} : vector<16x768xf32> to vector<16x384xf32>
    %c0_23 = arith.constant 0 : index
    %c0_24 = arith.constant 0 : index
    %c0_25 = arith.constant 0 : index
    %27 = vector.load %arg11[%c0_23, %c0_24, %c0_25] : memref<2x16x384xf32, #tpu.memory_space<vmem>>, vector<1x16x384xf32>
    %28 = vector.shape_cast %27 : vector<1x16x384xf32> to vector<16x384xf32>
    %29 = vector.shape_cast %26 : vector<16x384xf32> to vector<1x16x384xf32>
    tpu.vector_store %arg11[%c0_23, %c0_24, %c0_25], %29 {strides = array<i32>} : memref<2x16x384xf32, #tpu.memory_space<vmem>>, vector<1x16x384xf32>,
    %30 = vector.extract_strided_slice %25 {offsets = [0, 384], sizes = [16, 384], strides = [1, 1]} : vector<16x768xf32> to vector<16x384xf32>
    %c1 = arith.constant 1 : index
    %c0_26 = arith.constant 0 : index
    %c0_27 = arith.constant 0 : index
    %31 = vector.load %arg11[%c1, %c0_26, %c0_27] : memref<2x16x384xf32, #tpu.memory_space<vmem>>, vector<1x16x384xf32>
    %32 = vector.shape_cast %31 : vector<1x16x384xf32> to vector<16x384xf32>
    %33 = vector.shape_cast %30 : vector<16x384xf32> to vector<1x16x384xf32>
    tpu.vector_store %arg11[%c1, %c0_26, %c0_27], %33 {strides = array<i32>} : memref<2x16x384xf32, #tpu.memory_space<vmem>>, vector<1x16x384xf32>,
    return
  }
  func.func @transform_0(%arg0: i32) -> (i32, i32) {
    %c0_i32 = arith.constant 0 : i32
    %c0_i32_0 = arith.constant 0 : i32
    return %arg0, %c0_i32 : i32, i32
  }
  func.func @transform_1(%arg0: i32) -> (i32, i32) {
    %c0_i32 = arith.constant 0 : i32
    %c0_i32_0 = arith.constant 0 : i32
    return %arg0, %c0_i32 : i32, i32
  }
  func.func @transform_2(%arg0: i32) -> (i32, i32) {
    %c0_i32 = arith.constant 0 : i32
    %c0_i32_0 = arith.constant 0 : i32
    %c0_i32_1 = arith.constant 0 : i32
    return %c0_i32, %c0_i32_0 : i32, i32
  }
  func.func @transform_3(%arg0: i32) -> (i32, i32) {
    %c0_i32 = arith.constant 0 : i32
    %c0_i32_0 = arith.constant 0 : i32
    %c0_i32_1 = arith.constant 0 : i32
    return %c0_i32, %c0_i32_0 : i32, i32
  }
  func.func @transform_4(%arg0: i32) -> (i32, i32) {
    %c0_i32 = arith.constant 0 : i32
    %c0_i32_0 = arith.constant 0 : i32
    %c0_i32_1 = arith.constant 0 : i32
    return %c0_i32, %c0_i32_0 : i32, i32
  }
  func.func @transform_5(%arg0: i32) -> (i32, i32) {
    %c0_i32 = arith.constant 0 : i32
    %c0_i32_0 = arith.constant 0 : i32
    %c0_i32_1 = arith.constant 0 : i32
    return %c0_i32, %c0_i32_0 : i32, i32
  }
  func.func @transform_6(%arg0: i32) -> (i32, i32) {
    %c0_i32 = arith.constant 0 : i32
    %c0_i32_0 = arith.constant 0 : i32
    %c0_i32_1 = arith.constant 0 : i32
    return %c0_i32, %c0_i32_0 : i32, i32
  }
  func.func @transform_7(%arg0: i32) -> (i32, i32) {
    %c0_i32 = arith.constant 0 : i32
    %c0_i32_0 = arith.constant 0 : i32
    %c0_i32_1 = arith.constant 0 : i32
    return %c0_i32, %c0_i32_0 : i32, i32
  }
  func.func @transform_8(%arg0: i32) -> (i32, i32) {
    %c0_i32 = arith.constant 0 : i32
    %c0_i32_0 = arith.constant 0 : i32
    %c0_i32_1 = arith.constant 0 : i32
    return %c0_i32, %c0_i32_0 : i32, i32
  }
  func.func @transform_9(%arg0: i32) -> (i32, i32) {
    %c0_i32 = arith.constant 0 : i32
    %c0_i32_0 = arith.constant 0 : i32
    return %arg0, %c0_i32 : i32, i32
  }
  func.func @transform_10(%arg0: i32) -> (i32, i32, i32) {
    %c0_i32 = arith.constant 0 : i32
    %c0_i32_0 = arith.constant 0 : i32
    %c0_i32_1 = arith.constant 0 : i32
    return %c0_i32, %arg0, %c0_i32_0 : i32, i32, i32
  }
}

module attributes {stable_mosaic.version = 11 : i64} {
  func.func @kernel(%arg0: i32, %arg1: i32, %arg2: memref<1x8x2x384xf32, #tpu.memory_space<vmem>>, %arg3: memref<1x128x384xbf16, #tpu.memory_space<vmem>>, %arg4: memref<1x1x384xf32, #tpu.memory_space<vmem>>, %arg5: memref<1x8x2x128xbf16, #tpu.memory_space<vmem>>, %arg6: memref<2x2x128xf32, #tpu.memory_space<vmem>>) attributes {dimension_semantics = [#tpu.dimension_semantics<parallel>, #tpu.dimension_semantics<arbitrary>], iteration_bounds = array<i64: 2, 1>, scalar_prefetch = 0 : i64, scratch_operands = 1 : i64, tpu.core_type = #tpu.core_type<tc>, window_params = [{transform_indices = @transform_0, window_bounds = array<i64: 1, 8, 2, 384>}, {transform_indices = @transform_1, window_bounds = array<i64: 1, 128, 384>}, {transform_indices = @transform_2, window_bounds = array<i64: 1, 1, 384>}, {transform_indices = @transform_3, window_bounds = array<i64: 1, 8, 2, 128>}]} {
    %c0_i32 = arith.constant 0 : i32
    %0 = arith.cmpi eq, %arg1, %c0_i32 : i32
    %1 = arith.extui %0 : i1 to i32
    %c0_i32_0 = arith.constant 0 : i32
    %2 = arith.cmpi ne, %1, %c0_i32_0 : i32
    scf.if %2 {
      %cst_99 = arith.constant 0.000000e+00 : f32
      %311 = vector.broadcast %cst_99 : f32 to vector<2x128xf32>
      %312 = arith.index_cast %arg0 : i32 to index
      %c0_100 = arith.constant 0 : index
      %c0_101 = arith.constant 0 : index
      %313 = vector.load %arg6[%312, %c0_100, %c0_101] : memref<2x2x128xf32, #tpu.memory_space<vmem>>, vector<1x2x128xf32>
      %314 = vector.shape_cast %313 : vector<1x2x128xf32> to vector<2x128xf32>
      %315 = vector.shape_cast %311 : vector<2x128xf32> to vector<1x2x128xf32>
      tpu.vector_store %arg6[%312, %c0_100, %c0_101], %315 {strides = array<i32>} : memref<2x2x128xf32, #tpu.memory_space<vmem>>, vector<1x2x128xf32>,
    } else {
    }
    %c0 = arith.constant 0 : index
    %c0_1 = arith.constant 0 : index
    %c0_2 = arith.constant 0 : index
    %3 = vector.load %arg3[%c0, %c0_1, %c0_2] : memref<1x128x384xbf16, #tpu.memory_space<vmem>>, vector<1x128x384xbf16>
    %4 = vector.shape_cast %3 : vector<1x128x384xbf16> to vector<128x384xbf16>
    %c0_3 = arith.constant 0 : index
    %c0_4 = arith.constant 0 : index
    %c0_5 = arith.constant 0 : index
    %5 = vector.load %arg4[%c0_3, %c0_4, %c0_5] : memref<1x1x384xf32, #tpu.memory_space<vmem>>, vector<1x1x384xf32>
    %6 = vector.shape_cast %5 : vector<1x1x384xf32> to vector<1x384xf32>
    %c0_i32_6 = arith.constant 0 : i32
    %7 = arith.cmpi eq, %arg0, %c0_i32_6 : i32
    %8 = arith.index_cast %arg0 : i32 to index
    %c0_7 = arith.constant 0 : index
    %c0_8 = arith.constant 0 : index
    %9 = vector.load %arg6[%8, %c0_7, %c0_8] : memref<2x2x128xf32, #tpu.memory_space<vmem>>, vector<1x2x128xf32>
    %10 = vector.shape_cast %9 : vector<1x2x128xf32> to vector<2x128xf32>
    %c0_9 = arith.constant 0 : index
    %c0_10 = arith.constant 0 : index
    %c0_11 = arith.constant 0 : index
    %c0_12 = arith.constant 0 : index
    %11 = vector.load %arg2[%c0_9, %c0_10, %c0_11, %c0_12] : memref<1x8x2x384xf32, #tpu.memory_space<vmem>>, vector<1x1x2x384xf32>
    %12 = vector.shape_cast %11 : vector<1x1x2x384xf32> to vector<2x384xf32>
    %13 = arith.truncf %10 : vector<2x128xf32> to vector<2x128xbf16>
    %cst = arith.constant dense<0.000000e+00> : vector<2x384xf32>
    %14 = tpu.matmul %13, %4, %cst {dimension_numbers = #tpu.dot_dimension_numbers<[1], [0], [0], [1], [0, 0, 1, 1], [], []>} : vector<2x128xbf16>, vector<128x384xbf16>, vector<2x384xf32> -> vector<2x384xf32>
    %15 = vector.broadcast %6 : vector<1x384xf32> to vector<2x384xf32>
    %16 = arith.addf %14, %15 : vector<2x384xf32>
    %17 = vector.extract_strided_slice %12 {offsets = [0, 0], sizes = [2, 128], strides = [1, 1]} : vector<2x384xf32> to vector<2x128xf32>
    %18 = vector.extract_strided_slice %16 {offsets = [0, 0], sizes = [2, 128], strides = [1, 1]} : vector<2x384xf32> to vector<2x128xf32>
    %19 = arith.addf %17, %18 : vector<2x128xf32>
    %20 = arith.negf %19 : vector<2x128xf32>
    %21 = math.exp %20 : vector<2x128xf32>
    %cst_13 = arith.constant 1.000000e+00 : f32
    %22 = vector.broadcast %cst_13 : f32 to vector<2x128xf32>
    %23 = arith.addf %22, %21 : vector<2x128xf32>
    %24 = arith.divf %22, %23 : vector<2x128xf32>
    %25 = vector.extract_strided_slice %12 {offsets = [0, 128], sizes = [2, 128], strides = [1, 1]} : vector<2x384xf32> to vector<2x128xf32>
    %26 = vector.extract_strided_slice %16 {offsets = [0, 128], sizes = [2, 128], strides = [1, 1]} : vector<2x384xf32> to vector<2x128xf32>
    %27 = arith.addf %25, %26 : vector<2x128xf32>
    %28 = arith.negf %27 : vector<2x128xf32>
    %29 = math.exp %28 : vector<2x128xf32>
    %cst_14 = arith.constant 1.000000e+00 : f32
    %30 = vector.broadcast %cst_14 : f32 to vector<2x128xf32>
    %31 = arith.addf %30, %29 : vector<2x128xf32>
    %32 = arith.divf %30, %31 : vector<2x128xf32>
    %33 = vector.extract_strided_slice %12 {offsets = [0, 256], sizes = [2, 128], strides = [1, 1]} : vector<2x384xf32> to vector<2x128xf32>
    %34 = vector.extract_strided_slice %16 {offsets = [0, 256], sizes = [2, 128], strides = [1, 1]} : vector<2x384xf32> to vector<2x128xf32>
    %35 = arith.mulf %24, %34 : vector<2x128xf32>
    %36 = arith.addf %33, %35 : vector<2x128xf32>
    %37 = math.tanh %36 : vector<2x128xf32>
    %cst_15 = arith.constant 1.000000e+00 : f32
    %38 = vector.broadcast %cst_15 : f32 to vector<2x128xf32>
    %39 = arith.subf %38, %32 : vector<2x128xf32>
    %40 = arith.mulf %39, %37 : vector<2x128xf32>
    %41 = arith.mulf %32, %10 : vector<2x128xf32>
    %42 = arith.addf %40, %41 : vector<2x128xf32>
    %43 = arith.select %7, %10, %42 : vector<2x128xf32>
    %44 = arith.truncf %43 : vector<2x128xf32> to vector<2x128xbf16>
    %c0_16 = arith.constant 0 : index
    %c0_17 = arith.constant 0 : index
    %c0_18 = arith.constant 0 : index
    %c0_19 = arith.constant 0 : index
    %45 = vector.load %arg5[%c0_16, %c0_17, %c0_18, %c0_19] : memref<1x8x2x128xbf16, #tpu.memory_space<vmem>>, vector<1x1x2x128xbf16>
    %46 = vector.shape_cast %45 : vector<1x1x2x128xbf16> to vector<2x128xbf16>
    %47 = vector.shape_cast %44 : vector<2x128xbf16> to vector<1x1x2x128xbf16>
    tpu.vector_store %arg5[%c0_16, %c0_17, %c0_18, %c0_19], %47 {strides = array<i32>} : memref<1x8x2x128xbf16, #tpu.memory_space<vmem>>, vector<1x1x2x128xbf16>,
    %c0_20 = arith.constant 0 : index
    %c1 = arith.constant 1 : index
    %c0_21 = arith.constant 0 : index
    %c0_22 = arith.constant 0 : index
    %48 = vector.load %arg2[%c0_20, %c1, %c0_21, %c0_22] : memref<1x8x2x384xf32, #tpu.memory_space<vmem>>, vector<1x1x2x384xf32>
    %49 = vector.shape_cast %48 : vector<1x1x2x384xf32> to vector<2x384xf32>
    %50 = arith.truncf %42 : vector<2x128xf32> to vector<2x128xbf16>
    %cst_23 = arith.constant dense<0.000000e+00> : vector<2x384xf32>
    %51 = tpu.matmul %50, %4, %cst_23 {dimension_numbers = #tpu.dot_dimension_numbers<[1], [0], [0], [1], [0, 0, 1, 1], [], []>} : vector<2x128xbf16>, vector<128x384xbf16>, vector<2x384xf32> -> vector<2x384xf32>
    %52 = vector.broadcast %6 : vector<1x384xf32> to vector<2x384xf32>
    %53 = arith.addf %51, %52 : vector<2x384xf32>
    %54 = vector.extract_strided_slice %49 {offsets = [0, 0], sizes = [2, 128], strides = [1, 1]} : vector<2x384xf32> to vector<2x128xf32>
    %55 = vector.extract_strided_slice %53 {offsets = [0, 0], sizes = [2, 128], strides = [1, 1]} : vector<2x384xf32> to vector<2x128xf32>
    %56 = arith.addf %54, %55 : vector<2x128xf32>
    %57 = arith.negf %56 : vector<2x128xf32>
    %58 = math.exp %57 : vector<2x128xf32>
    %cst_24 = arith.constant 1.000000e+00 : f32
    %59 = vector.broadcast %cst_24 : f32 to vector<2x128xf32>
    %60 = arith.addf %59, %58 : vector<2x128xf32>
    %61 = arith.divf %59, %60 : vector<2x128xf32>
    %62 = vector.extract_strided_slice %49 {offsets = [0, 128], sizes = [2, 128], strides = [1, 1]} : vector<2x384xf32> to vector<2x128xf32>
    %63 = vector.extract_strided_slice %53 {offsets = [0, 128], sizes = [2, 128], strides = [1, 1]} : vector<2x384xf32> to vector<2x128xf32>
    %64 = arith.addf %62, %63 : vector<2x128xf32>
    %65 = arith.negf %64 : vector<2x128xf32>
    %66 = math.exp %65 : vector<2x128xf32>
    %cst_25 = arith.constant 1.000000e+00 : f32
    %67 = vector.broadcast %cst_25 : f32 to vector<2x128xf32>
    %68 = arith.addf %67, %66 : vector<2x128xf32>
    %69 = arith.divf %67, %68 : vector<2x128xf32>
    %70 = vector.extract_strided_slice %49 {offsets = [0, 256], sizes = [2, 128], strides = [1, 1]} : vector<2x384xf32> to vector<2x128xf32>
    %71 = vector.extract_strided_slice %53 {offsets = [0, 256], sizes = [2, 128], strides = [1, 1]} : vector<2x384xf32> to vector<2x128xf32>
    %72 = arith.mulf %61, %71 : vector<2x128xf32>
    %73 = arith.addf %70, %72 : vector<2x128xf32>
    %74 = math.tanh %73 : vector<2x128xf32>
    %cst_26 = arith.constant 1.000000e+00 : f32
    %75 = vector.broadcast %cst_26 : f32 to vector<2x128xf32>
    %76 = arith.subf %75, %69 : vector<2x128xf32>
    %77 = arith.mulf %76, %74 : vector<2x128xf32>
    %78 = arith.mulf %69, %42 : vector<2x128xf32>
    %79 = arith.addf %77, %78 : vector<2x128xf32>
    %80 = arith.select %7, %42, %79 : vector<2x128xf32>
    %81 = arith.truncf %80 : vector<2x128xf32> to vector<2x128xbf16>
    %c0_27 = arith.constant 0 : index
    %c1_28 = arith.constant 1 : index
    %c0_29 = arith.constant 0 : index
    %c0_30 = arith.constant 0 : index
    %82 = vector.load %arg5[%c0_27, %c1_28, %c0_29, %c0_30] : memref<1x8x2x128xbf16, #tpu.memory_space<vmem>>, vector<1x1x2x128xbf16>
    %83 = vector.shape_cast %82 : vector<1x1x2x128xbf16> to vector<2x128xbf16>
    %84 = vector.shape_cast %81 : vector<2x128xbf16> to vector<1x1x2x128xbf16>
    tpu.vector_store %arg5[%c0_27, %c1_28, %c0_29, %c0_30], %84 {strides = array<i32>} : memref<1x8x2x128xbf16, #tpu.memory_space<vmem>>, vector<1x1x2x128xbf16>,
    %c0_31 = arith.constant 0 : index
    %c2 = arith.constant 2 : index
    %c0_32 = arith.constant 0 : index
    %c0_33 = arith.constant 0 : index
    %85 = vector.load %arg2[%c0_31, %c2, %c0_32, %c0_33] : memref<1x8x2x384xf32, #tpu.memory_space<vmem>>, vector<1x1x2x384xf32>
    %86 = vector.shape_cast %85 : vector<1x1x2x384xf32> to vector<2x384xf32>
    %87 = arith.truncf %79 : vector<2x128xf32> to vector<2x128xbf16>
    %cst_34 = arith.constant dense<0.000000e+00> : vector<2x384xf32>
    %88 = tpu.matmul %87, %4, %cst_34 {dimension_numbers = #tpu.dot_dimension_numbers<[1], [0], [0], [1], [0, 0, 1, 1], [], []>} : vector<2x128xbf16>, vector<128x384xbf16>, vector<2x384xf32> -> vector<2x384xf32>
    %89 = vector.broadcast %6 : vector<1x384xf32> to vector<2x384xf32>
    %90 = arith.addf %88, %89 : vector<2x384xf32>
    %91 = vector.extract_strided_slice %86 {offsets = [0, 0], sizes = [2, 128], strides = [1, 1]} : vector<2x384xf32> to vector<2x128xf32>
    %92 = vector.extract_strided_slice %90 {offsets = [0, 0], sizes = [2, 128], strides = [1, 1]} : vector<2x384xf32> to vector<2x128xf32>
    %93 = arith.addf %91, %92 : vector<2x128xf32>
    %94 = arith.negf %93 : vector<2x128xf32>
    %95 = math.exp %94 : vector<2x128xf32>
    %cst_35 = arith.constant 1.000000e+00 : f32
    %96 = vector.broadcast %cst_35 : f32 to vector<2x128xf32>
    %97 = arith.addf %96, %95 : vector<2x128xf32>
    %98 = arith.divf %96, %97 : vector<2x128xf32>
    %99 = vector.extract_strided_slice %86 {offsets = [0, 128], sizes = [2, 128], strides = [1, 1]} : vector<2x384xf32> to vector<2x128xf32>
    %100 = vector.extract_strided_slice %90 {offsets = [0, 128], sizes = [2, 128], strides = [1, 1]} : vector<2x384xf32> to vector<2x128xf32>
    %101 = arith.addf %99, %100 : vector<2x128xf32>
    %102 = arith.negf %101 : vector<2x128xf32>
    %103 = math.exp %102 : vector<2x128xf32>
    %cst_36 = arith.constant 1.000000e+00 : f32
    %104 = vector.broadcast %cst_36 : f32 to vector<2x128xf32>
    %105 = arith.addf %104, %103 : vector<2x128xf32>
    %106 = arith.divf %104, %105 : vector<2x128xf32>
    %107 = vector.extract_strided_slice %86 {offsets = [0, 256], sizes = [2, 128], strides = [1, 1]} : vector<2x384xf32> to vector<2x128xf32>
    %108 = vector.extract_strided_slice %90 {offsets = [0, 256], sizes = [2, 128], strides = [1, 1]} : vector<2x384xf32> to vector<2x128xf32>
    %109 = arith.mulf %98, %108 : vector<2x128xf32>
    %110 = arith.addf %107, %109 : vector<2x128xf32>
    %111 = math.tanh %110 : vector<2x128xf32>
    %cst_37 = arith.constant 1.000000e+00 : f32
    %112 = vector.broadcast %cst_37 : f32 to vector<2x128xf32>
    %113 = arith.subf %112, %106 : vector<2x128xf32>
    %114 = arith.mulf %113, %111 : vector<2x128xf32>
    %115 = arith.mulf %106, %79 : vector<2x128xf32>
    %116 = arith.addf %114, %115 : vector<2x128xf32>
    %117 = arith.select %7, %79, %116 : vector<2x128xf32>
    %118 = arith.truncf %117 : vector<2x128xf32> to vector<2x128xbf16>
    %c0_38 = arith.constant 0 : index
    %c2_39 = arith.constant 2 : index
    %c0_40 = arith.constant 0 : index
    %c0_41 = arith.constant 0 : index
    %119 = vector.load %arg5[%c0_38, %c2_39, %c0_40, %c0_41] : memref<1x8x2x128xbf16, #tpu.memory_space<vmem>>, vector<1x1x2x128xbf16>
    %120 = vector.shape_cast %119 : vector<1x1x2x128xbf16> to vector<2x128xbf16>
    %121 = vector.shape_cast %118 : vector<2x128xbf16> to vector<1x1x2x128xbf16>
    tpu.vector_store %arg5[%c0_38, %c2_39, %c0_40, %c0_41], %121 {strides = array<i32>} : memref<1x8x2x128xbf16, #tpu.memory_space<vmem>>, vector<1x1x2x128xbf16>,
    %c0_42 = arith.constant 0 : index
    %c3 = arith.constant 3 : index
    %c0_43 = arith.constant 0 : index
    %c0_44 = arith.constant 0 : index
    %122 = vector.load %arg2[%c0_42, %c3, %c0_43, %c0_44] : memref<1x8x2x384xf32, #tpu.memory_space<vmem>>, vector<1x1x2x384xf32>
    %123 = vector.shape_cast %122 : vector<1x1x2x384xf32> to vector<2x384xf32>
    %124 = arith.truncf %116 : vector<2x128xf32> to vector<2x128xbf16>
    %cst_45 = arith.constant dense<0.000000e+00> : vector<2x384xf32>
    %125 = tpu.matmul %124, %4, %cst_45 {dimension_numbers = #tpu.dot_dimension_numbers<[1], [0], [0], [1], [0, 0, 1, 1], [], []>} : vector<2x128xbf16>, vector<128x384xbf16>, vector<2x384xf32> -> vector<2x384xf32>
    %126 = vector.broadcast %6 : vector<1x384xf32> to vector<2x384xf32>
    %127 = arith.addf %125, %126 : vector<2x384xf32>
    %128 = vector.extract_strided_slice %123 {offsets = [0, 0], sizes = [2, 128], strides = [1, 1]} : vector<2x384xf32> to vector<2x128xf32>
    %129 = vector.extract_strided_slice %127 {offsets = [0, 0], sizes = [2, 128], strides = [1, 1]} : vector<2x384xf32> to vector<2x128xf32>
    %130 = arith.addf %128, %129 : vector<2x128xf32>
    %131 = arith.negf %130 : vector<2x128xf32>
    %132 = math.exp %131 : vector<2x128xf32>
    %cst_46 = arith.constant 1.000000e+00 : f32
    %133 = vector.broadcast %cst_46 : f32 to vector<2x128xf32>
    %134 = arith.addf %133, %132 : vector<2x128xf32>
    %135 = arith.divf %133, %134 : vector<2x128xf32>
    %136 = vector.extract_strided_slice %123 {offsets = [0, 128], sizes = [2, 128], strides = [1, 1]} : vector<2x384xf32> to vector<2x128xf32>
    %137 = vector.extract_strided_slice %127 {offsets = [0, 128], sizes = [2, 128], strides = [1, 1]} : vector<2x384xf32> to vector<2x128xf32>
    %138 = arith.addf %136, %137 : vector<2x128xf32>
    %139 = arith.negf %138 : vector<2x128xf32>
    %140 = math.exp %139 : vector<2x128xf32>
    %cst_47 = arith.constant 1.000000e+00 : f32
    %141 = vector.broadcast %cst_47 : f32 to vector<2x128xf32>
    %142 = arith.addf %141, %140 : vector<2x128xf32>
    %143 = arith.divf %141, %142 : vector<2x128xf32>
    %144 = vector.extract_strided_slice %123 {offsets = [0, 256], sizes = [2, 128], strides = [1, 1]} : vector<2x384xf32> to vector<2x128xf32>
    %145 = vector.extract_strided_slice %127 {offsets = [0, 256], sizes = [2, 128], strides = [1, 1]} : vector<2x384xf32> to vector<2x128xf32>
    %146 = arith.mulf %135, %145 : vector<2x128xf32>
    %147 = arith.addf %144, %146 : vector<2x128xf32>
    %148 = math.tanh %147 : vector<2x128xf32>
    %cst_48 = arith.constant 1.000000e+00 : f32
    %149 = vector.broadcast %cst_48 : f32 to vector<2x128xf32>
    %150 = arith.subf %149, %143 : vector<2x128xf32>
    %151 = arith.mulf %150, %148 : vector<2x128xf32>
    %152 = arith.mulf %143, %116 : vector<2x128xf32>
    %153 = arith.addf %151, %152 : vector<2x128xf32>
    %154 = arith.select %7, %116, %153 : vector<2x128xf32>
    %155 = arith.truncf %154 : vector<2x128xf32> to vector<2x128xbf16>
    %c0_49 = arith.constant 0 : index
    %c3_50 = arith.constant 3 : index
    %c0_51 = arith.constant 0 : index
    %c0_52 = arith.constant 0 : index
    %156 = vector.load %arg5[%c0_49, %c3_50, %c0_51, %c0_52] : memref<1x8x2x128xbf16, #tpu.memory_space<vmem>>, vector<1x1x2x128xbf16>
    %157 = vector.shape_cast %156 : vector<1x1x2x128xbf16> to vector<2x128xbf16>
    %158 = vector.shape_cast %155 : vector<2x128xbf16> to vector<1x1x2x128xbf16>
    tpu.vector_store %arg5[%c0_49, %c3_50, %c0_51, %c0_52], %158 {strides = array<i32>} : memref<1x8x2x128xbf16, #tpu.memory_space<vmem>>, vector<1x1x2x128xbf16>,
    %c0_53 = arith.constant 0 : index
    %c4 = arith.constant 4 : index
    %c0_54 = arith.constant 0 : index
    %c0_55 = arith.constant 0 : index
    %159 = vector.load %arg2[%c0_53, %c4, %c0_54, %c0_55] : memref<1x8x2x384xf32, #tpu.memory_space<vmem>>, vector<1x1x2x384xf32>
    %160 = vector.shape_cast %159 : vector<1x1x2x384xf32> to vector<2x384xf32>
    %161 = arith.truncf %153 : vector<2x128xf32> to vector<2x128xbf16>
    %cst_56 = arith.constant dense<0.000000e+00> : vector<2x384xf32>
    %162 = tpu.matmul %161, %4, %cst_56 {dimension_numbers = #tpu.dot_dimension_numbers<[1], [0], [0], [1], [0, 0, 1, 1], [], []>} : vector<2x128xbf16>, vector<128x384xbf16>, vector<2x384xf32> -> vector<2x384xf32>
    %163 = vector.broadcast %6 : vector<1x384xf32> to vector<2x384xf32>
    %164 = arith.addf %162, %163 : vector<2x384xf32>
    %165 = vector.extract_strided_slice %160 {offsets = [0, 0], sizes = [2, 128], strides = [1, 1]} : vector<2x384xf32> to vector<2x128xf32>
    %166 = vector.extract_strided_slice %164 {offsets = [0, 0], sizes = [2, 128], strides = [1, 1]} : vector<2x384xf32> to vector<2x128xf32>
    %167 = arith.addf %165, %166 : vector<2x128xf32>
    %168 = arith.negf %167 : vector<2x128xf32>
    %169 = math.exp %168 : vector<2x128xf32>
    %cst_57 = arith.constant 1.000000e+00 : f32
    %170 = vector.broadcast %cst_57 : f32 to vector<2x128xf32>
    %171 = arith.addf %170, %169 : vector<2x128xf32>
    %172 = arith.divf %170, %171 : vector<2x128xf32>
    %173 = vector.extract_strided_slice %160 {offsets = [0, 128], sizes = [2, 128], strides = [1, 1]} : vector<2x384xf32> to vector<2x128xf32>
    %174 = vector.extract_strided_slice %164 {offsets = [0, 128], sizes = [2, 128], strides = [1, 1]} : vector<2x384xf32> to vector<2x128xf32>
    %175 = arith.addf %173, %174 : vector<2x128xf32>
    %176 = arith.negf %175 : vector<2x128xf32>
    %177 = math.exp %176 : vector<2x128xf32>
    %cst_58 = arith.constant 1.000000e+00 : f32
    %178 = vector.broadcast %cst_58 : f32 to vector<2x128xf32>
    %179 = arith.addf %178, %177 : vector<2x128xf32>
    %180 = arith.divf %178, %179 : vector<2x128xf32>
    %181 = vector.extract_strided_slice %160 {offsets = [0, 256], sizes = [2, 128], strides = [1, 1]} : vector<2x384xf32> to vector<2x128xf32>
    %182 = vector.extract_strided_slice %164 {offsets = [0, 256], sizes = [2, 128], strides = [1, 1]} : vector<2x384xf32> to vector<2x128xf32>
    %183 = arith.mulf %172, %182 : vector<2x128xf32>
    %184 = arith.addf %181, %183 : vector<2x128xf32>
    %185 = math.tanh %184 : vector<2x128xf32>
    %cst_59 = arith.constant 1.000000e+00 : f32
    %186 = vector.broadcast %cst_59 : f32 to vector<2x128xf32>
    %187 = arith.subf %186, %180 : vector<2x128xf32>
    %188 = arith.mulf %187, %185 : vector<2x128xf32>
    %189 = arith.mulf %180, %153 : vector<2x128xf32>
    %190 = arith.addf %188, %189 : vector<2x128xf32>
    %191 = arith.select %7, %153, %190 : vector<2x128xf32>
    %192 = arith.truncf %191 : vector<2x128xf32> to vector<2x128xbf16>
    %c0_60 = arith.constant 0 : index
    %c4_61 = arith.constant 4 : index
    %c0_62 = arith.constant 0 : index
    %c0_63 = arith.constant 0 : index
    %193 = vector.load %arg5[%c0_60, %c4_61, %c0_62, %c0_63] : memref<1x8x2x128xbf16, #tpu.memory_space<vmem>>, vector<1x1x2x128xbf16>
    %194 = vector.shape_cast %193 : vector<1x1x2x128xbf16> to vector<2x128xbf16>
    %195 = vector.shape_cast %192 : vector<2x128xbf16> to vector<1x1x2x128xbf16>
    tpu.vector_store %arg5[%c0_60, %c4_61, %c0_62, %c0_63], %195 {strides = array<i32>} : memref<1x8x2x128xbf16, #tpu.memory_space<vmem>>, vector<1x1x2x128xbf16>,
    %c0_64 = arith.constant 0 : index
    %c5 = arith.constant 5 : index
    %c0_65 = arith.constant 0 : index
    %c0_66 = arith.constant 0 : index
    %196 = vector.load %arg2[%c0_64, %c5, %c0_65, %c0_66] : memref<1x8x2x384xf32, #tpu.memory_space<vmem>>, vector<1x1x2x384xf32>
    %197 = vector.shape_cast %196 : vector<1x1x2x384xf32> to vector<2x384xf32>
    %198 = arith.truncf %190 : vector<2x128xf32> to vector<2x128xbf16>
    %cst_67 = arith.constant dense<0.000000e+00> : vector<2x384xf32>
    %199 = tpu.matmul %198, %4, %cst_67 {dimension_numbers = #tpu.dot_dimension_numbers<[1], [0], [0], [1], [0, 0, 1, 1], [], []>} : vector<2x128xbf16>, vector<128x384xbf16>, vector<2x384xf32> -> vector<2x384xf32>
    %200 = vector.broadcast %6 : vector<1x384xf32> to vector<2x384xf32>
    %201 = arith.addf %199, %200 : vector<2x384xf32>
    %202 = vector.extract_strided_slice %197 {offsets = [0, 0], sizes = [2, 128], strides = [1, 1]} : vector<2x384xf32> to vector<2x128xf32>
    %203 = vector.extract_strided_slice %201 {offsets = [0, 0], sizes = [2, 128], strides = [1, 1]} : vector<2x384xf32> to vector<2x128xf32>
    %204 = arith.addf %202, %203 : vector<2x128xf32>
    %205 = arith.negf %204 : vector<2x128xf32>
    %206 = math.exp %205 : vector<2x128xf32>
    %cst_68 = arith.constant 1.000000e+00 : f32
    %207 = vector.broadcast %cst_68 : f32 to vector<2x128xf32>
    %208 = arith.addf %207, %206 : vector<2x128xf32>
    %209 = arith.divf %207, %208 : vector<2x128xf32>
    %210 = vector.extract_strided_slice %197 {offsets = [0, 128], sizes = [2, 128], strides = [1, 1]} : vector<2x384xf32> to vector<2x128xf32>
    %211 = vector.extract_strided_slice %201 {offsets = [0, 128], sizes = [2, 128], strides = [1, 1]} : vector<2x384xf32> to vector<2x128xf32>
    %212 = arith.addf %210, %211 : vector<2x128xf32>
    %213 = arith.negf %212 : vector<2x128xf32>
    %214 = math.exp %213 : vector<2x128xf32>
    %cst_69 = arith.constant 1.000000e+00 : f32
    %215 = vector.broadcast %cst_69 : f32 to vector<2x128xf32>
    %216 = arith.addf %215, %214 : vector<2x128xf32>
    %217 = arith.divf %215, %216 : vector<2x128xf32>
    %218 = vector.extract_strided_slice %197 {offsets = [0, 256], sizes = [2, 128], strides = [1, 1]} : vector<2x384xf32> to vector<2x128xf32>
    %219 = vector.extract_strided_slice %201 {offsets = [0, 256], sizes = [2, 128], strides = [1, 1]} : vector<2x384xf32> to vector<2x128xf32>
    %220 = arith.mulf %209, %219 : vector<2x128xf32>
    %221 = arith.addf %218, %220 : vector<2x128xf32>
    %222 = math.tanh %221 : vector<2x128xf32>
    %cst_70 = arith.constant 1.000000e+00 : f32
    %223 = vector.broadcast %cst_70 : f32 to vector<2x128xf32>
    %224 = arith.subf %223, %217 : vector<2x128xf32>
    %225 = arith.mulf %224, %222 : vector<2x128xf32>
    %226 = arith.mulf %217, %190 : vector<2x128xf32>
    %227 = arith.addf %225, %226 : vector<2x128xf32>
    %228 = arith.select %7, %190, %227 : vector<2x128xf32>
    %229 = arith.truncf %228 : vector<2x128xf32> to vector<2x128xbf16>
    %c0_71 = arith.constant 0 : index
    %c5_72 = arith.constant 5 : index
    %c0_73 = arith.constant 0 : index
    %c0_74 = arith.constant 0 : index
    %230 = vector.load %arg5[%c0_71, %c5_72, %c0_73, %c0_74] : memref<1x8x2x128xbf16, #tpu.memory_space<vmem>>, vector<1x1x2x128xbf16>
    %231 = vector.shape_cast %230 : vector<1x1x2x128xbf16> to vector<2x128xbf16>
    %232 = vector.shape_cast %229 : vector<2x128xbf16> to vector<1x1x2x128xbf16>
    tpu.vector_store %arg5[%c0_71, %c5_72, %c0_73, %c0_74], %232 {strides = array<i32>} : memref<1x8x2x128xbf16, #tpu.memory_space<vmem>>, vector<1x1x2x128xbf16>,
    %c0_75 = arith.constant 0 : index
    %c6 = arith.constant 6 : index
    %c0_76 = arith.constant 0 : index
    %c0_77 = arith.constant 0 : index
    %233 = vector.load %arg2[%c0_75, %c6, %c0_76, %c0_77] : memref<1x8x2x384xf32, #tpu.memory_space<vmem>>, vector<1x1x2x384xf32>
    %234 = vector.shape_cast %233 : vector<1x1x2x384xf32> to vector<2x384xf32>
    %235 = arith.truncf %227 : vector<2x128xf32> to vector<2x128xbf16>
    %cst_78 = arith.constant dense<0.000000e+00> : vector<2x384xf32>
    %236 = tpu.matmul %235, %4, %cst_78 {dimension_numbers = #tpu.dot_dimension_numbers<[1], [0], [0], [1], [0, 0, 1, 1], [], []>} : vector<2x128xbf16>, vector<128x384xbf16>, vector<2x384xf32> -> vector<2x384xf32>
    %237 = vector.broadcast %6 : vector<1x384xf32> to vector<2x384xf32>
    %238 = arith.addf %236, %237 : vector<2x384xf32>
    %239 = vector.extract_strided_slice %234 {offsets = [0, 0], sizes = [2, 128], strides = [1, 1]} : vector<2x384xf32> to vector<2x128xf32>
    %240 = vector.extract_strided_slice %238 {offsets = [0, 0], sizes = [2, 128], strides = [1, 1]} : vector<2x384xf32> to vector<2x128xf32>
    %241 = arith.addf %239, %240 : vector<2x128xf32>
    %242 = arith.negf %241 : vector<2x128xf32>
    %243 = math.exp %242 : vector<2x128xf32>
    %cst_79 = arith.constant 1.000000e+00 : f32
    %244 = vector.broadcast %cst_79 : f32 to vector<2x128xf32>
    %245 = arith.addf %244, %243 : vector<2x128xf32>
    %246 = arith.divf %244, %245 : vector<2x128xf32>
    %247 = vector.extract_strided_slice %234 {offsets = [0, 128], sizes = [2, 128], strides = [1, 1]} : vector<2x384xf32> to vector<2x128xf32>
    %248 = vector.extract_strided_slice %238 {offsets = [0, 128], sizes = [2, 128], strides = [1, 1]} : vector<2x384xf32> to vector<2x128xf32>
    %249 = arith.addf %247, %248 : vector<2x128xf32>
    %250 = arith.negf %249 : vector<2x128xf32>
    %251 = math.exp %250 : vector<2x128xf32>
    %cst_80 = arith.constant 1.000000e+00 : f32
    %252 = vector.broadcast %cst_80 : f32 to vector<2x128xf32>
    %253 = arith.addf %252, %251 : vector<2x128xf32>
    %254 = arith.divf %252, %253 : vector<2x128xf32>
    %255 = vector.extract_strided_slice %234 {offsets = [0, 256], sizes = [2, 128], strides = [1, 1]} : vector<2x384xf32> to vector<2x128xf32>
    %256 = vector.extract_strided_slice %238 {offsets = [0, 256], sizes = [2, 128], strides = [1, 1]} : vector<2x384xf32> to vector<2x128xf32>
    %257 = arith.mulf %246, %256 : vector<2x128xf32>
    %258 = arith.addf %255, %257 : vector<2x128xf32>
    %259 = math.tanh %258 : vector<2x128xf32>
    %cst_81 = arith.constant 1.000000e+00 : f32
    %260 = vector.broadcast %cst_81 : f32 to vector<2x128xf32>
    %261 = arith.subf %260, %254 : vector<2x128xf32>
    %262 = arith.mulf %261, %259 : vector<2x128xf32>
    %263 = arith.mulf %254, %227 : vector<2x128xf32>
    %264 = arith.addf %262, %263 : vector<2x128xf32>
    %265 = arith.select %7, %227, %264 : vector<2x128xf32>
    %266 = arith.truncf %265 : vector<2x128xf32> to vector<2x128xbf16>
    %c0_82 = arith.constant 0 : index
    %c6_83 = arith.constant 6 : index
    %c0_84 = arith.constant 0 : index
    %c0_85 = arith.constant 0 : index
    %267 = vector.load %arg5[%c0_82, %c6_83, %c0_84, %c0_85] : memref<1x8x2x128xbf16, #tpu.memory_space<vmem>>, vector<1x1x2x128xbf16>
    %268 = vector.shape_cast %267 : vector<1x1x2x128xbf16> to vector<2x128xbf16>
    %269 = vector.shape_cast %266 : vector<2x128xbf16> to vector<1x1x2x128xbf16>
    tpu.vector_store %arg5[%c0_82, %c6_83, %c0_84, %c0_85], %269 {strides = array<i32>} : memref<1x8x2x128xbf16, #tpu.memory_space<vmem>>, vector<1x1x2x128xbf16>,
    %c0_86 = arith.constant 0 : index
    %c7 = arith.constant 7 : index
    %c0_87 = arith.constant 0 : index
    %c0_88 = arith.constant 0 : index
    %270 = vector.load %arg2[%c0_86, %c7, %c0_87, %c0_88] : memref<1x8x2x384xf32, #tpu.memory_space<vmem>>, vector<1x1x2x384xf32>
    %271 = vector.shape_cast %270 : vector<1x1x2x384xf32> to vector<2x384xf32>
    %272 = arith.truncf %264 : vector<2x128xf32> to vector<2x128xbf16>
    %cst_89 = arith.constant dense<0.000000e+00> : vector<2x384xf32>
    %273 = tpu.matmul %272, %4, %cst_89 {dimension_numbers = #tpu.dot_dimension_numbers<[1], [0], [0], [1], [0, 0, 1, 1], [], []>} : vector<2x128xbf16>, vector<128x384xbf16>, vector<2x384xf32> -> vector<2x384xf32>
    %274 = vector.broadcast %6 : vector<1x384xf32> to vector<2x384xf32>
    %275 = arith.addf %273, %274 : vector<2x384xf32>
    %276 = vector.extract_strided_slice %271 {offsets = [0, 0], sizes = [2, 128], strides = [1, 1]} : vector<2x384xf32> to vector<2x128xf32>
    %277 = vector.extract_strided_slice %275 {offsets = [0, 0], sizes = [2, 128], strides = [1, 1]} : vector<2x384xf32> to vector<2x128xf32>
    %278 = arith.addf %276, %277 : vector<2x128xf32>
    %279 = arith.negf %278 : vector<2x128xf32>
    %280 = math.exp %279 : vector<2x128xf32>
    %cst_90 = arith.constant 1.000000e+00 : f32
    %281 = vector.broadcast %cst_90 : f32 to vector<2x128xf32>
    %282 = arith.addf %281, %280 : vector<2x128xf32>
    %283 = arith.divf %281, %282 : vector<2x128xf32>
    %284 = vector.extract_strided_slice %271 {offsets = [0, 128], sizes = [2, 128], strides = [1, 1]} : vector<2x384xf32> to vector<2x128xf32>
    %285 = vector.extract_strided_slice %275 {offsets = [0, 128], sizes = [2, 128], strides = [1, 1]} : vector<2x384xf32> to vector<2x128xf32>
    %286 = arith.addf %284, %285 : vector<2x128xf32>
    %287 = arith.negf %286 : vector<2x128xf32>
    %288 = math.exp %287 : vector<2x128xf32>
    %cst_91 = arith.constant 1.000000e+00 : f32
    %289 = vector.broadcast %cst_91 : f32 to vector<2x128xf32>
    %290 = arith.addf %289, %288 : vector<2x128xf32>
    %291 = arith.divf %289, %290 : vector<2x128xf32>
    %292 = vector.extract_strided_slice %271 {offsets = [0, 256], sizes = [2, 128], strides = [1, 1]} : vector<2x384xf32> to vector<2x128xf32>
    %293 = vector.extract_strided_slice %275 {offsets = [0, 256], sizes = [2, 128], strides = [1, 1]} : vector<2x384xf32> to vector<2x128xf32>
    %294 = arith.mulf %283, %293 : vector<2x128xf32>
    %295 = arith.addf %292, %294 : vector<2x128xf32>
    %296 = math.tanh %295 : vector<2x128xf32>
    %cst_92 = arith.constant 1.000000e+00 : f32
    %297 = vector.broadcast %cst_92 : f32 to vector<2x128xf32>
    %298 = arith.subf %297, %291 : vector<2x128xf32>
    %299 = arith.mulf %298, %296 : vector<2x128xf32>
    %300 = arith.mulf %291, %264 : vector<2x128xf32>
    %301 = arith.addf %299, %300 : vector<2x128xf32>
    %302 = arith.select %7, %264, %301 : vector<2x128xf32>
    %303 = arith.truncf %302 : vector<2x128xf32> to vector<2x128xbf16>
    %c0_93 = arith.constant 0 : index
    %c7_94 = arith.constant 7 : index
    %c0_95 = arith.constant 0 : index
    %c0_96 = arith.constant 0 : index
    %304 = vector.load %arg5[%c0_93, %c7_94, %c0_95, %c0_96] : memref<1x8x2x128xbf16, #tpu.memory_space<vmem>>, vector<1x1x2x128xbf16>
    %305 = vector.shape_cast %304 : vector<1x1x2x128xbf16> to vector<2x128xbf16>
    %306 = vector.shape_cast %303 : vector<2x128xbf16> to vector<1x1x2x128xbf16>
    tpu.vector_store %arg5[%c0_93, %c7_94, %c0_95, %c0_96], %306 {strides = array<i32>} : memref<1x8x2x128xbf16, #tpu.memory_space<vmem>>, vector<1x1x2x128xbf16>,
    %307 = arith.index_cast %arg0 : i32 to index
    %c0_97 = arith.constant 0 : index
    %c0_98 = arith.constant 0 : index
    %308 = vector.load %arg6[%307, %c0_97, %c0_98] : memref<2x2x128xf32, #tpu.memory_space<vmem>>, vector<1x2x128xf32>
    %309 = vector.shape_cast %308 : vector<1x2x128xf32> to vector<2x128xf32>
    %310 = vector.shape_cast %301 : vector<2x128xf32> to vector<1x2x128xf32>
    tpu.vector_store %arg6[%307, %c0_97, %c0_98], %310 {strides = array<i32>} : memref<2x2x128xf32, #tpu.memory_space<vmem>>, vector<1x2x128xf32>,
    return
  }
  func.func @transform_0(%arg0: i32, %arg1: i32) -> (i32, i32, i32, i32) {
    %c0_i32 = arith.constant 0 : i32
    %c0_i32_0 = arith.constant 0 : i32
    %c0_i32_1 = arith.constant 0 : i32
    return %arg0, %arg1, %c0_i32, %c0_i32_0 : i32, i32, i32, i32
  }
  func.func @transform_1(%arg0: i32, %arg1: i32) -> (i32, i32, i32) {
    %c0_i32 = arith.constant 0 : i32
    %c0_i32_0 = arith.constant 0 : i32
    %c0_i32_1 = arith.constant 0 : i32
    return %arg0, %c0_i32, %c0_i32_0 : i32, i32, i32
  }
  func.func @transform_2(%arg0: i32, %arg1: i32) -> (i32, i32, i32) {
    %c0_i32 = arith.constant 0 : i32
    %c0_i32_0 = arith.constant 0 : i32
    %c0_i32_1 = arith.constant 0 : i32
    return %arg0, %c0_i32, %c0_i32_0 : i32, i32, i32
  }
  func.func @transform_3(%arg0: i32, %arg1: i32) -> (i32, i32, i32, i32) {
    %c0_i32 = arith.constant 0 : i32
    %c0_i32_0 = arith.constant 0 : i32
    %c0_i32_1 = arith.constant 0 : i32
    return %arg0, %arg1, %c0_i32, %c0_i32_0 : i32, i32, i32, i32
  }
}

module attributes {stable_mosaic.version = 11 : i64} {
  func.func @_head_kernel(%arg0: i32, %arg1: memref<2x16x128xbf16, #tpu.memory_space<vmem>>, %arg2: memref<16x128xbf16, #tpu.memory_space<vmem>>, %arg3: memref<16x20xf32, #tpu.memory_space<vmem>>, %arg4: memref<16x1xf32, #tpu.memory_space<vmem>>, %arg5: memref<16x20xf32, #tpu.memory_space<vmem>>, %arg6: memref<128x64xbf16, #tpu.memory_space<vmem>>, %arg7: memref<128x64xbf16, #tpu.memory_space<vmem>>, %arg8: memref<1x64xf32, #tpu.memory_space<vmem>>, %arg9: memref<64x40xbf16, #tpu.memory_space<vmem>>, %arg10: memref<1x40xf32, #tpu.memory_space<vmem>>, %arg11: memref<20x128xf32, #tpu.memory_space<vmem>>, %arg12: memref<1x128xf32, #tpu.memory_space<vmem>>, %arg13: memref<128x64xbf16, #tpu.memory_space<vmem>>, %arg14: memref<20x64xbf16, #tpu.memory_space<vmem>>, %arg15: memref<1x64xf32, #tpu.memory_space<vmem>>, %arg16: memref<64x41xbf16, #tpu.memory_space<vmem>>, %arg17: memref<1x41xf32, #tpu.memory_space<vmem>>, %arg18: memref<1x1xf32, #tpu.memory_space<smem>>, %arg19: memref<1x1xf32, #tpu.memory_space<smem>>, %arg20: memref<16x128xf32, #tpu.memory_space<vmem>>, %arg21: memref<16x128xf32, #tpu.memory_space<vmem>>) attributes {dimension_semantics = [#tpu.dimension_semantics<parallel>], iteration_bounds = array<i64: 1>, scalar_prefetch = 0 : i64, scratch_operands = 0 : i64, tpu.core_type = #tpu.core_type<tc>, window_params = [{transform_indices = @transform_0, window_bounds = array<i64: 2, 16, 128>}, {transform_indices = @transform_1, window_bounds = array<i64: 16, 128>}, {transform_indices = @transform_2, window_bounds = array<i64: 16, 20>}, {transform_indices = @transform_3, window_bounds = array<i64: 16, 1>}, {transform_indices = @transform_4, window_bounds = array<i64: 16, 20>}, {pipeline_mode = #tpu.pipeline_mode<synchronous>, transform_indices = @transform_5, window_bounds = array<i64: 128, 64>}, {pipeline_mode = #tpu.pipeline_mode<synchronous>, transform_indices = @transform_6, window_bounds = array<i64: 128, 64>}, {pipeline_mode = #tpu.pipeline_mode<synchronous>, transform_indices = @transform_7, window_bounds = array<i64: 1, 64>}, {pipeline_mode = #tpu.pipeline_mode<synchronous>, transform_indices = @transform_8, window_bounds = array<i64: 64, 40>}, {pipeline_mode = #tpu.pipeline_mode<synchronous>, transform_indices = @transform_9, window_bounds = array<i64: 1, 40>}, {pipeline_mode = #tpu.pipeline_mode<synchronous>, transform_indices = @transform_10, window_bounds = array<i64: 20, 128>}, {pipeline_mode = #tpu.pipeline_mode<synchronous>, transform_indices = @transform_11, window_bounds = array<i64: 1, 128>}, {pipeline_mode = #tpu.pipeline_mode<synchronous>, transform_indices = @transform_12, window_bounds = array<i64: 128, 64>}, {pipeline_mode = #tpu.pipeline_mode<synchronous>, transform_indices = @transform_13, window_bounds = array<i64: 20, 64>}, {pipeline_mode = #tpu.pipeline_mode<synchronous>, transform_indices = @transform_14, window_bounds = array<i64: 1, 64>}, {pipeline_mode = #tpu.pipeline_mode<synchronous>, transform_indices = @transform_15, window_bounds = array<i64: 64, 41>}, {pipeline_mode = #tpu.pipeline_mode<synchronous>, transform_indices = @transform_16, window_bounds = array<i64: 1, 41>}, {transform_indices = @transform_17, window_bounds = array<i64: 1, 1>}, {transform_indices = @transform_18, window_bounds = array<i64: 1, 1>}, {transform_indices = @transform_19, window_bounds = array<i64: 16, 128>}, {transform_indices = @transform_20, window_bounds = array<i64: 16, 128>}]} {
    %c0 = arith.constant 0 : index
    %c0_0 = arith.constant 0 : index
    %c0_1 = arith.constant 0 : index
    %0 = vector.load %arg1[%c0, %c0_0, %c0_1] : memref<2x16x128xbf16, #tpu.memory_space<vmem>>, vector<1x16x128xbf16>
    %1 = vector.shape_cast %0 : vector<1x16x128xbf16> to vector<16x128xbf16>
    %c1 = arith.constant 1 : index
    %c0_2 = arith.constant 0 : index
    %c0_3 = arith.constant 0 : index
    %2 = vector.load %arg1[%c1, %c0_2, %c0_3] : memref<2x16x128xbf16, #tpu.memory_space<vmem>>, vector<1x16x128xbf16>
    %3 = vector.shape_cast %2 : vector<1x16x128xbf16> to vector<16x128xbf16>
    %c0_4 = arith.constant 0 : index
    %c0_5 = arith.constant 0 : index
    %4 = vector.load %arg2[%c0_4, %c0_5] : memref<16x128xbf16, #tpu.memory_space<vmem>>, vector<16x128xbf16>
    %c0_6 = arith.constant 0 : index
    %c0_7 = arith.constant 0 : index
    %5 = vector.load %arg3[%c0_6, %c0_7] : memref<16x20xf32, #tpu.memory_space<vmem>>, vector<16x20xf32>
    %c0_8 = arith.constant 0 : index
    %c0_9 = arith.constant 0 : index
    %6 = vector.load %arg4[%c0_8, %c0_9] : memref<16x1xf32, #tpu.memory_space<vmem>>, vector<16x1xf32>
    %c0_10 = arith.constant 0 : index
    %c0_11 = arith.constant 0 : index
    %7 = vector.load %arg5[%c0_10, %c0_11] : memref<16x20xf32, #tpu.memory_space<vmem>>, vector<16x20xf32>
    %c0_12 = arith.constant 0 : index
    %c0_13 = arith.constant 0 : index
    %8 = vector.load %arg6[%c0_12, %c0_13] : memref<128x64xbf16, #tpu.memory_space<vmem>>, vector<128x64xbf16>
    %cst = arith.constant dense<0.000000e+00> : vector<16x64xf32>
    %9 = tpu.matmul %3, %8, %cst {dimension_numbers = #tpu.dot_dimension_numbers<[1], [0], [0], [1], [0, 0, 1, 1], [], []>} : vector<16x128xbf16>, vector<128x64xbf16>, vector<16x64xf32> -> vector<16x64xf32>
    %c0_14 = arith.constant 0 : index
    %c0_15 = arith.constant 0 : index
    %10 = vector.load %arg7[%c0_14, %c0_15] : memref<128x64xbf16, #tpu.memory_space<vmem>>, vector<128x64xbf16>
    %cst_16 = arith.constant dense<0.000000e+00> : vector<16x64xf32>
    %11 = tpu.matmul %4, %10, %cst_16 {dimension_numbers = #tpu.dot_dimension_numbers<[1], [0], [0], [1], [0, 0, 1, 1], [], []>} : vector<16x128xbf16>, vector<128x64xbf16>, vector<16x64xf32> -> vector<16x64xf32>
    %12 = arith.addf %9, %11 : vector<16x64xf32>
    %c0_17 = arith.constant 0 : index
    %c0_18 = arith.constant 0 : index
    %13 = vector.load %arg8[%c0_17, %c0_18] : memref<1x64xf32, #tpu.memory_space<vmem>>, vector<1x64xf32>
    %14 = vector.broadcast %13 : vector<1x64xf32> to vector<16x64xf32>
    %15 = arith.addf %12, %14 : vector<16x64xf32>
    %cst_19 = arith.constant 0.000000e+00 : f32
    %16 = vector.broadcast %cst_19 : f32 to vector<16x64xf32>
    %17 = arith.maximumf %15, %16 : vector<16x64xf32>
    %18 = arith.truncf %17 : vector<16x64xf32> to vector<16x64xbf16>
    %c0_20 = arith.constant 0 : index
    %c0_21 = arith.constant 0 : index
    %19 = vector.load %arg9[%c0_20, %c0_21] : memref<64x40xbf16, #tpu.memory_space<vmem>>, vector<64x40xbf16>
    %cst_22 = arith.constant dense<0.000000e+00> : vector<16x40xf32>
    %20 = tpu.matmul %18, %19, %cst_22 {dimension_numbers = #tpu.dot_dimension_numbers<[1], [0], [0], [1], [0, 0, 1, 1], [], []>} : vector<16x64xbf16>, vector<64x40xbf16>, vector<16x40xf32> -> vector<16x40xf32>
    %c0_23 = arith.constant 0 : index
    %c0_24 = arith.constant 0 : index
    %21 = vector.load %arg10[%c0_23, %c0_24] : memref<1x40xf32, #tpu.memory_space<vmem>>, vector<1x40xf32>
    %22 = vector.broadcast %21 : vector<1x40xf32> to vector<16x40xf32>
    %23 = arith.addf %20, %22 : vector<16x40xf32>
    %24 = vector.extract_strided_slice %23 {offsets = [0, 0], sizes = [16, 20], strides = [1, 1]} : vector<16x40xf32> to vector<16x20xf32>
    %25 = vector.extract_strided_slice %23 {offsets = [0, 20], sizes = [16, 20], strides = [1, 1]} : vector<16x40xf32> to vector<16x20xf32>
    %cst_25 = arith.constant -9.21034049 : f32
    %26 = vector.broadcast %cst_25 : f32 to vector<16x20xf32>
    %27 = arith.maximumf %25, %26 : vector<16x20xf32>
    %cst_26 = arith.constant 5.000000e-01 : f32
    %28 = vector.broadcast %cst_26 : f32 to vector<16x20xf32>
    %29 = arith.mulf %28, %27 : vector<16x20xf32>
    %30 = math.exp %29 : vector<16x20xf32>
    %31 = arith.mulf %7, %30 : vector<16x20xf32>
    %32 = arith.addf %24, %31 : vector<16x20xf32>
    %33 = math.exp %27 : vector<16x20xf32>
    %34 = arith.mulf %24, %24 : vector<16x20xf32>
    %35 = arith.addf %33, %34 : vector<16x20xf32>
    %cst_27 = arith.constant 1.000000e+00 : f32
    %36 = vector.broadcast %cst_27 : f32 to vector<16x20xf32>
    %37 = arith.subf %35, %36 : vector<16x20xf32>
    %38 = arith.subf %37, %27 : vector<16x20xf32>
    %cst_28 = arith.constant dense<0.000000e+00> : vector<16xf32>
    %39 = vector.multi_reduction <add>, %38, %cst_28 [1] : vector<16x20xf32> to vector<16xf32>
    %40 = vector.shape_cast %39 : vector<16xf32> to vector<16x1xf32>
    %cst_29 = arith.constant 5.000000e-01 : f32
    %41 = vector.broadcast %cst_29 : f32 to vector<16x1xf32>
    %42 = arith.mulf %41, %40 : vector<16x1xf32>
    %c0_30 = arith.constant 0 : index
    %c0_31 = arith.constant 0 : index
    %43 = vector.load %arg11[%c0_30, %c0_31] : memref<20x128xf32, #tpu.memory_space<vmem>>, vector<20x128xf32>
    %cst_32 = arith.constant dense<0.000000e+00> : vector<16x128xf32>
    %44 = tpu.matmul %32, %43, %cst_32 {dimension_numbers = #tpu.dot_dimension_numbers<[1], [0], [0], [1], [0, 0, 1, 1], [], []>} : vector<16x20xf32>, vector<20x128xf32>, vector<16x128xf32> -> vector<16x128xf32>
    %c0_33 = arith.constant 0 : index
    %c0_34 = arith.constant 0 : index
    %45 = vector.load %arg12[%c0_33, %c0_34] : memref<1x128xf32, #tpu.memory_space<vmem>>, vector<1x128xf32>
    %46 = vector.broadcast %45 : vector<1x128xf32> to vector<16x128xf32>
    %47 = arith.addf %44, %46 : vector<16x128xf32>
    %c0_35 = arith.constant 0 : index
    %c0_36 = arith.constant 0 : index
    %48 = vector.load %arg20[%c0_35, %c0_36] : memref<16x128xf32, #tpu.memory_space<vmem>>, vector<16x128xf32>
    tpu.vector_store %arg20[%c0_35, %c0_36], %47 {strides = array<i32>} : memref<16x128xf32, #tpu.memory_space<vmem>>, vector<16x128xf32>,
    %c0_37 = arith.constant 0 : index
    %c0_38 = arith.constant 0 : index
    %49 = vector.load %arg13[%c0_37, %c0_38] : memref<128x64xbf16, #tpu.memory_space<vmem>>, vector<128x64xbf16>
    %cst_39 = arith.constant dense<0.000000e+00> : vector<16x64xf32>
    %50 = tpu.matmul %1, %49, %cst_39 {dimension_numbers = #tpu.dot_dimension_numbers<[1], [0], [0], [1], [0, 0, 1, 1], [], []>} : vector<16x128xbf16>, vector<128x64xbf16>, vector<16x64xf32> -> vector<16x64xf32>
    %51 = arith.truncf %32 : vector<16x20xf32> to vector<16x20xbf16>
    %c0_40 = arith.constant 0 : index
    %c0_41 = arith.constant 0 : index
    %52 = vector.load %arg14[%c0_40, %c0_41] : memref<20x64xbf16, #tpu.memory_space<vmem>>, vector<20x64xbf16>
    %cst_42 = arith.constant dense<0.000000e+00> : vector<16x64xf32>
    %53 = tpu.matmul %51, %52, %cst_42 {dimension_numbers = #tpu.dot_dimension_numbers<[1], [0], [0], [1], [0, 0, 1, 1], [], []>} : vector<16x20xbf16>, vector<20x64xbf16>, vector<16x64xf32> -> vector<16x64xf32>
    %54 = arith.addf %50, %53 : vector<16x64xf32>
    %c0_43 = arith.constant 0 : index
    %c0_44 = arith.constant 0 : index
    %55 = vector.load %arg15[%c0_43, %c0_44] : memref<1x64xf32, #tpu.memory_space<vmem>>, vector<1x64xf32>
    %56 = vector.broadcast %55 : vector<1x64xf32> to vector<16x64xf32>
    %57 = arith.addf %54, %56 : vector<16x64xf32>
    %58 = arith.truncf %57 : vector<16x64xf32> to vector<16x64xbf16>
    %c0_45 = arith.constant 0 : index
    %c0_46 = arith.constant 0 : index
    %59 = vector.load %arg16[%c0_45, %c0_46] : memref<64x41xbf16, #tpu.memory_space<vmem>>, vector<64x41xbf16>
    %cst_47 = arith.constant dense<0.000000e+00> : vector<16x41xf32>
    %60 = tpu.matmul %58, %59, %cst_47 {dimension_numbers = #tpu.dot_dimension_numbers<[1], [0], [0], [1], [0, 0, 1, 1], [], []>} : vector<16x64xbf16>, vector<64x41xbf16>, vector<16x41xf32> -> vector<16x41xf32>
    %c0_48 = arith.constant 0 : index
    %c0_49 = arith.constant 0 : index
    %61 = vector.load %arg17[%c0_48, %c0_49] : memref<1x41xf32, #tpu.memory_space<vmem>>, vector<1x41xf32>
    %62 = vector.broadcast %61 : vector<1x41xf32> to vector<16x41xf32>
    %63 = arith.addf %60, %62 : vector<16x41xf32>
    %64 = vector.extract_strided_slice %63 {offsets = [0, 0], sizes = [16, 20], strides = [1, 1]} : vector<16x41xf32> to vector<16x20xf32>
    %65 = vector.extract_strided_slice %63 {offsets = [0, 20], sizes = [16, 20], strides = [1, 1]} : vector<16x41xf32> to vector<16x20xf32>
    %cst_50 = arith.constant -9.21034049 : f32
    %66 = vector.broadcast %cst_50 : f32 to vector<16x20xf32>
    %67 = arith.maximumf %65, %66 : vector<16x20xf32>
    %68 = vector.extract_strided_slice %63 {offsets = [0, 40], sizes = [16, 1], strides = [1, 1]} : vector<16x41xf32> to vector<16x1xf32>
    %69 = arith.subf %5, %64 : vector<16x20xf32>
    %70 = arith.mulf %69, %69 : vector<16x20xf32>
    %cst_51 = arith.constant -5.000000e-01 : f32
    %71 = vector.broadcast %cst_51 : f32 to vector<16x20xf32>
    %72 = arith.mulf %71, %70 : vector<16x20xf32>
    %cst_52 = arith.constant 0.000000e+00 : f32
    %73 = vector.broadcast %cst_52 : f32 to vector<16x20xf32>
    %74 = arith.subf %73, %67 : vector<16x20xf32>
    %75 = math.exp %74 : vector<16x20xf32>
    %76 = arith.mulf %72, %75 : vector<16x20xf32>
    %cst_53 = arith.constant 5.000000e-01 : f32
    %77 = vector.broadcast %cst_53 : f32 to vector<16x20xf32>
    %78 = arith.mulf %77, %67 : vector<16x20xf32>
    %79 = arith.subf %76, %78 : vector<16x20xf32>
    %cst_54 = arith.constant 6.28318548 : f32
    %80 = math.log %cst_54 : f32
    %cst_55 = arith.constant 5.000000e-01 : f32
    %81 = arith.mulf %cst_55, %80 : f32
    %82 = vector.broadcast %81 : f32 to vector<16x20xf32>
    %83 = arith.subf %79, %82 : vector<16x20xf32>
    %cst_56 = arith.constant dense<0.000000e+00> : vector<16xf32>
    %84 = vector.multi_reduction <add>, %83, %cst_56 [1] : vector<16x20xf32> to vector<16xf32>
    %85 = vector.shape_cast %84 : vector<16xf32> to vector<16x1xf32>
    %c0_57 = arith.constant 0 : index
    %c0_58 = arith.constant 0 : index
    %86 = memref.load %arg18[%c0_57, %c0_58] : memref<1x1xf32, #tpu.memory_space<smem>>
    %c0_59 = arith.constant 0 : index
    %c0_60 = arith.constant 0 : index
    %87 = memref.load %arg19[%c0_59, %c0_60] : memref<1x1xf32, #tpu.memory_space<smem>>
    %88 = vector.broadcast %86 : f32 to vector<16x1xf32>
    %89 = arith.mulf %88, %6 : vector<16x1xf32>
    %90 = arith.addf %68, %89 : vector<16x1xf32>
    %91 = vector.broadcast %87 : f32 to vector<16x1xf32>
    %92 = arith.addf %90, %91 : vector<16x1xf32>
    %93 = vector.broadcast %87 : f32 to vector<16x1xf32>
    %94 = arith.addf %68, %93 : vector<16x1xf32>
    %95 = math.exp %94 : vector<16x1xf32>
    %96 = math.exp %92 : vector<16x1xf32>
    %cst_61 = arith.constant 9.99999997E-7 : f32
    %97 = arith.addf %86, %cst_61 : f32
    %cst_62 = arith.constant 1.000000e+00 : f32
    %98 = arith.divf %cst_62, %97 : f32
    %99 = arith.subf %95, %96 : vector<16x1xf32>
    %100 = vector.broadcast %98 : f32 to vector<16x1xf32>
    %101 = arith.mulf %100, %99 : vector<16x1xf32>
    %102 = arith.addf %92, %101 : vector<16x1xf32>
    %103 = tpu.iota {dimensions = array<i32: 1>} : vector<16x128xi32>
    %c0_i32 = arith.constant 0 : i32
    %104 = vector.broadcast %c0_i32 : i32 to vector<16x128xi32>
    %105 = arith.cmpi eq, %103, %104 : vector<16x128xi32>
    %cst_63 = arith.constant 0.000000e+00 : f32
    %106 = vector.shape_cast %102 : vector<16x1xf32> to vector<16x1xf32>
    %107 = vector.broadcast %106 : vector<16x1xf32> to vector<16x128xf32>
    %108 = vector.broadcast %cst_63 : f32 to vector<16x128xf32>
    %109 = arith.select %105, %107, %108 : vector<16x128xi1>, vector<16x128xf32>
    %c1_i32 = arith.constant 1 : i32
    %110 = vector.broadcast %c1_i32 : i32 to vector<16x128xi32>
    %111 = arith.cmpi eq, %103, %110 : vector<16x128xi32>
    %cst_64 = arith.constant 0.000000e+00 : f32
    %112 = vector.shape_cast %85 : vector<16x1xf32> to vector<16x1xf32>
    %113 = vector.broadcast %112 : vector<16x1xf32> to vector<16x128xf32>
    %114 = vector.broadcast %cst_64 : f32 to vector<16x128xf32>
    %115 = arith.select %111, %113, %114 : vector<16x128xi1>, vector<16x128xf32>
    %116 = arith.addf %109, %115 : vector<16x128xf32>
    %c2_i32 = arith.constant 2 : i32
    %117 = vector.broadcast %c2_i32 : i32 to vector<16x128xi32>
    %118 = arith.cmpi eq, %103, %117 : vector<16x128xi32>
    %cst_65 = arith.constant 0.000000e+00 : f32
    %119 = vector.shape_cast %42 : vector<16x1xf32> to vector<16x1xf32>
    %120 = vector.broadcast %119 : vector<16x1xf32> to vector<16x128xf32>
    %121 = vector.broadcast %cst_65 : f32 to vector<16x128xf32>
    %122 = arith.select %118, %120, %121 : vector<16x128xi1>, vector<16x128xf32>
    %123 = arith.addf %116, %122 : vector<16x128xf32>
    %c0_66 = arith.constant 0 : index
    %c0_67 = arith.constant 0 : index
    %124 = vector.load %arg21[%c0_66, %c0_67] : memref<16x128xf32, #tpu.memory_space<vmem>>, vector<16x128xf32>
    tpu.vector_store %arg21[%c0_66, %c0_67], %123 {strides = array<i32>} : memref<16x128xf32, #tpu.memory_space<vmem>>, vector<16x128xf32>,
    return
  }
  func.func @transform_0(%arg0: i32) -> (i32, i32, i32) {
    %c0_i32 = arith.constant 0 : i32
    %c0_i32_0 = arith.constant 0 : i32
    %c0_i32_1 = arith.constant 0 : i32
    return %c0_i32, %arg0, %c0_i32_0 : i32, i32, i32
  }
  func.func @transform_1(%arg0: i32) -> (i32, i32) {
    %c0_i32 = arith.constant 0 : i32
    %c0_i32_0 = arith.constant 0 : i32
    return %arg0, %c0_i32 : i32, i32
  }
  func.func @transform_2(%arg0: i32) -> (i32, i32) {
    %c0_i32 = arith.constant 0 : i32
    %c0_i32_0 = arith.constant 0 : i32
    return %arg0, %c0_i32 : i32, i32
  }
  func.func @transform_3(%arg0: i32) -> (i32, i32) {
    %c0_i32 = arith.constant 0 : i32
    %c0_i32_0 = arith.constant 0 : i32
    return %arg0, %c0_i32 : i32, i32
  }
  func.func @transform_4(%arg0: i32) -> (i32, i32) {
    %c0_i32 = arith.constant 0 : i32
    %c0_i32_0 = arith.constant 0 : i32
    return %arg0, %c0_i32 : i32, i32
  }
  func.func @transform_5(%arg0: i32) -> (i32, i32) {
    %c0_i32 = arith.constant 0 : i32
    %c0_i32_0 = arith.constant 0 : i32
    %c0_i32_1 = arith.constant 0 : i32
    return %c0_i32, %c0_i32_0 : i32, i32
  }
  func.func @transform_6(%arg0: i32) -> (i32, i32) {
    %c0_i32 = arith.constant 0 : i32
    %c0_i32_0 = arith.constant 0 : i32
    %c0_i32_1 = arith.constant 0 : i32
    return %c0_i32, %c0_i32_0 : i32, i32
  }
  func.func @transform_7(%arg0: i32) -> (i32, i32) {
    %c0_i32 = arith.constant 0 : i32
    %c0_i32_0 = arith.constant 0 : i32
    %c0_i32_1 = arith.constant 0 : i32
    return %c0_i32, %c0_i32_0 : i32, i32
  }
  func.func @transform_8(%arg0: i32) -> (i32, i32) {
    %c0_i32 = arith.constant 0 : i32
    %c0_i32_0 = arith.constant 0 : i32
    %c0_i32_1 = arith.constant 0 : i32
    return %c0_i32, %c0_i32_0 : i32, i32
  }
  func.func @transform_9(%arg0: i32) -> (i32, i32) {
    %c0_i32 = arith.constant 0 : i32
    %c0_i32_0 = arith.constant 0 : i32
    %c0_i32_1 = arith.constant 0 : i32
    return %c0_i32, %c0_i32_0 : i32, i32
  }
  func.func @transform_10(%arg0: i32) -> (i32, i32) {
    %c0_i32 = arith.constant 0 : i32
    %c0_i32_0 = arith.constant 0 : i32
    %c0_i32_1 = arith.constant 0 : i32
    return %c0_i32, %c0_i32_0 : i32, i32
  }
  func.func @transform_11(%arg0: i32) -> (i32, i32) {
    %c0_i32 = arith.constant 0 : i32
    %c0_i32_0 = arith.constant 0 : i32
    %c0_i32_1 = arith.constant 0 : i32
    return %c0_i32, %c0_i32_0 : i32, i32
  }
  func.func @transform_12(%arg0: i32) -> (i32, i32) {
    %c0_i32 = arith.constant 0 : i32
    %c0_i32_0 = arith.constant 0 : i32
    %c0_i32_1 = arith.constant 0 : i32
    return %c0_i32, %c0_i32_0 : i32, i32
  }
  func.func @transform_13(%arg0: i32) -> (i32, i32) {
    %c0_i32 = arith.constant 0 : i32
    %c0_i32_0 = arith.constant 0 : i32
    %c0_i32_1 = arith.constant 0 : i32
    return %c0_i32, %c0_i32_0 : i32, i32
  }
  func.func @transform_14(%arg0: i32) -> (i32, i32) {
    %c0_i32 = arith.constant 0 : i32
    %c0_i32_0 = arith.constant 0 : i32
    %c0_i32_1 = arith.constant 0 : i32
    return %c0_i32, %c0_i32_0 : i32, i32
  }
  func.func @transform_15(%arg0: i32) -> (i32, i32) {
    %c0_i32 = arith.constant 0 : i32
    %c0_i32_0 = arith.constant 0 : i32
    %c0_i32_1 = arith.constant 0 : i32
    return %c0_i32, %c0_i32_0 : i32, i32
  }
  func.func @transform_16(%arg0: i32) -> (i32, i32) {
    %c0_i32 = arith.constant 0 : i32
    %c0_i32_0 = arith.constant 0 : i32
    %c0_i32_1 = arith.constant 0 : i32
    return %c0_i32, %c0_i32_0 : i32, i32
  }
  func.func @transform_17(%arg0: i32) -> (i32, i32) {
    %c0_i32 = arith.constant 0 : i32
    %c0_i32_0 = arith.constant 0 : i32
    %c0_i32_1 = arith.constant 0 : i32
    return %c0_i32, %c0_i32_0 : i32, i32
  }
  func.func @transform_18(%arg0: i32) -> (i32, i32) {
    %c0_i32 = arith.constant 0 : i32
    %c0_i32_0 = arith.constant 0 : i32
    %c0_i32_1 = arith.constant 0 : i32
    return %c0_i32, %c0_i32_0 : i32, i32
  }
  func.func @transform_19(%arg0: i32) -> (i32, i32) {
    %c0_i32 = arith.constant 0 : i32
    %c0_i32_0 = arith.constant 0 : i32
    return %arg0, %c0_i32 : i32, i32
  }
  func.func @transform_20(%arg0: i32) -> (i32, i32) {
    %c0_i32 = arith.constant 0 : i32
    %c0_i32_0 = arith.constant 0 : i32
    return %arg0, %c0_i32 : i32, i32
  }
}

module attributes {stable_mosaic.version = 11 : i64} {
  func.func @kernel(%arg0: i32, %arg1: memref<8x2x128xf32, #tpu.memory_space<vmem>>, %arg2: memref<8x2x128xf32, #tpu.memory_space<vmem>>, %arg3: memref<2x20x60xf32, #tpu.memory_space<vmem>>, %arg4: memref<2x1x60xf32, #tpu.memory_space<vmem>>, %arg5: memref<2x20x5xf32, #tpu.memory_space<vmem>>, %arg6: memref<1x5xf32, #tpu.memory_space<vmem>>, %arg7: memref<2x1xf32, #tpu.memory_space<vmem>>, %arg8: memref<2x20xf32, #tpu.memory_space<vmem>>, %arg9: memref<2x20xf32, #tpu.memory_space<vmem>>) attributes {dimension_semantics = [#tpu.dimension_semantics<arbitrary>], iteration_bounds = array<i64: 1>, scalar_prefetch = 0 : i64, scratch_operands = 2 : i64, tpu.core_type = #tpu.core_type<tc>, window_params = [{transform_indices = @transform_0, window_bounds = array<i64: 8, 2, 128>}, {transform_indices = @transform_1, window_bounds = array<i64: 8, 2, 128>}, {pipeline_mode = #tpu.pipeline_mode<synchronous>, transform_indices = @transform_2, window_bounds = array<i64: 2, 20, 60>}, {pipeline_mode = #tpu.pipeline_mode<synchronous>, transform_indices = @transform_3, window_bounds = array<i64: 2, 1, 60>}, {pipeline_mode = #tpu.pipeline_mode<synchronous>, transform_indices = @transform_4, window_bounds = array<i64: 2, 20, 5>}, {pipeline_mode = #tpu.pipeline_mode<synchronous>, transform_indices = @transform_5, window_bounds = array<i64: 1, 5>}, {pipeline_mode = #tpu.pipeline_mode<synchronous>, transform_indices = @transform_6, window_bounds = array<i64: 2, 1>}]} {
    %c0_i32 = arith.constant 0 : i32
    %0 = arith.cmpi eq, %arg0, %c0_i32 : i32
    %1 = arith.extui %0 : i1 to i32
    %c0_i32_0 = arith.constant 0 : i32
    %2 = arith.cmpi ne, %1, %c0_i32_0 : i32
    scf.if %2 {
      %cst_126 = arith.constant 0.000000e+00 : f32
      %530 = vector.broadcast %cst_126 : f32 to vector<2x20xf32>
      %c0_127 = arith.constant 0 : index
      %c0_128 = arith.constant 0 : index
      %531 = vector.load %arg8[%c0_127, %c0_128] : memref<2x20xf32, #tpu.memory_space<vmem>>, vector<2x20xf32>
      tpu.vector_store %arg8[%c0_127, %c0_128], %530 {strides = array<i32>} : memref<2x20xf32, #tpu.memory_space<vmem>>, vector<2x20xf32>,
      %cst_129 = arith.constant 0.000000e+00 : f32
      %532 = vector.broadcast %cst_129 : f32 to vector<2x20xf32>
      %c0_130 = arith.constant 0 : index
      %c0_131 = arith.constant 0 : index
      %533 = vector.load %arg9[%c0_130, %c0_131] : memref<2x20xf32, #tpu.memory_space<vmem>>, vector<2x20xf32>
      tpu.vector_store %arg9[%c0_130, %c0_131], %532 {strides = array<i32>} : memref<2x20xf32, #tpu.memory_space<vmem>>, vector<2x20xf32>,
    } else {
    }
    %c0 = arith.constant 0 : index
    %c0_1 = arith.constant 0 : index
    %c0_2 = arith.constant 0 : index
    %3 = vector.load %arg3[%c0, %c0_1, %c0_2] : memref<2x20x60xf32, #tpu.memory_space<vmem>>, vector<1x20x60xf32>
    %4 = vector.shape_cast %3 : vector<1x20x60xf32> to vector<20x60xf32>
    %c0_3 = arith.constant 0 : index
    %c0_4 = arith.constant 0 : index
    %c0_5 = arith.constant 0 : index
    %5 = vector.load %arg4[%c0_3, %c0_4, %c0_5] : memref<2x1x60xf32, #tpu.memory_space<vmem>>, vector<1x1x60xf32>
    %6 = vector.shape_cast %5 : vector<1x1x60xf32> to vector<1x60xf32>
    %c1 = arith.constant 1 : index
    %c0_6 = arith.constant 0 : index
    %c0_7 = arith.constant 0 : index
    %7 = vector.load %arg3[%c1, %c0_6, %c0_7] : memref<2x20x60xf32, #tpu.memory_space<vmem>>, vector<1x20x60xf32>
    %8 = vector.shape_cast %7 : vector<1x20x60xf32> to vector<20x60xf32>
    %c1_8 = arith.constant 1 : index
    %c0_9 = arith.constant 0 : index
    %c0_10 = arith.constant 0 : index
    %9 = vector.load %arg4[%c1_8, %c0_9, %c0_10] : memref<2x1x60xf32, #tpu.memory_space<vmem>>, vector<1x1x60xf32>
    %10 = vector.shape_cast %9 : vector<1x1x60xf32> to vector<1x60xf32>
    %c0_11 = arith.constant 0 : index
    %c0_12 = arith.constant 0 : index
    %11 = vector.load %arg8[%c0_11, %c0_12] : memref<2x20xf32, #tpu.memory_space<vmem>>, vector<2x20xf32>
    %c0_13 = arith.constant 0 : index
    %c0_14 = arith.constant 0 : index
    %12 = vector.load %arg9[%c0_13, %c0_14] : memref<2x20xf32, #tpu.memory_space<vmem>>, vector<2x20xf32>
    %c0_15 = arith.constant 0 : index
    %c0_16 = arith.constant 0 : index
    %c0_17 = arith.constant 0 : index
    %13 = vector.load %arg1[%c0_15, %c0_16, %c0_17] : memref<8x2x128xf32, #tpu.memory_space<vmem>>, vector<1x2x128xf32>
    %14 = vector.shape_cast %13 : vector<1x2x128xf32> to vector<2x128xf32>
    %15 = vector.extract_strided_slice %14 {offsets = [0, 0], sizes = [2, 60], strides = [1, 1]} : vector<2x128xf32> to vector<2x60xf32>
    %c7 = arith.constant 7 : index
    %c0_18 = arith.constant 0 : index
    %c0_19 = arith.constant 0 : index
    %16 = vector.load %arg2[%c7, %c0_18, %c0_19] : memref<8x2x128xf32, #tpu.memory_space<vmem>>, vector<1x2x128xf32>
    %17 = vector.shape_cast %16 : vector<1x2x128xf32> to vector<2x128xf32>
    %18 = vector.extract_strided_slice %17 {offsets = [0, 60], sizes = [2, 60], strides = [1, 1]} : vector<2x128xf32> to vector<2x60xf32>
    %cst = arith.constant dense<0.000000e+00> : vector<2x60xf32>
    %19 = tpu.matmul %11, %4, %cst {dimension_numbers = #tpu.dot_dimension_numbers<[1], [0], [0], [1], [0, 0, 1, 1], [], []>} : vector<2x20xf32>, vector<20x60xf32>, vector<2x60xf32> -> vector<2x60xf32>
    %20 = vector.broadcast %6 : vector<1x60xf32> to vector<2x60xf32>
    %21 = arith.addf %19, %20 : vector<2x60xf32>
    %22 = vector.extract_strided_slice %15 {offsets = [0, 0], sizes = [2, 20], strides = [1, 1]} : vector<2x60xf32> to vector<2x20xf32>
    %23 = vector.extract_strided_slice %21 {offsets = [0, 0], sizes = [2, 20], strides = [1, 1]} : vector<2x60xf32> to vector<2x20xf32>
    %24 = arith.addf %22, %23 : vector<2x20xf32>
    %25 = arith.negf %24 : vector<2x20xf32>
    %26 = math.exp %25 : vector<2x20xf32>
    %cst_20 = arith.constant 1.000000e+00 : f32
    %27 = vector.broadcast %cst_20 : f32 to vector<2x20xf32>
    %28 = arith.addf %27, %26 : vector<2x20xf32>
    %29 = arith.divf %27, %28 : vector<2x20xf32>
    %30 = vector.extract_strided_slice %15 {offsets = [0, 20], sizes = [2, 20], strides = [1, 1]} : vector<2x60xf32> to vector<2x20xf32>
    %31 = vector.extract_strided_slice %21 {offsets = [0, 20], sizes = [2, 20], strides = [1, 1]} : vector<2x60xf32> to vector<2x20xf32>
    %32 = arith.addf %30, %31 : vector<2x20xf32>
    %33 = arith.negf %32 : vector<2x20xf32>
    %34 = math.exp %33 : vector<2x20xf32>
    %cst_21 = arith.constant 1.000000e+00 : f32
    %35 = vector.broadcast %cst_21 : f32 to vector<2x20xf32>
    %36 = arith.addf %35, %34 : vector<2x20xf32>
    %37 = arith.divf %35, %36 : vector<2x20xf32>
    %38 = vector.extract_strided_slice %15 {offsets = [0, 40], sizes = [2, 20], strides = [1, 1]} : vector<2x60xf32> to vector<2x20xf32>
    %39 = vector.extract_strided_slice %21 {offsets = [0, 40], sizes = [2, 20], strides = [1, 1]} : vector<2x60xf32> to vector<2x20xf32>
    %40 = arith.mulf %29, %39 : vector<2x20xf32>
    %41 = arith.addf %38, %40 : vector<2x20xf32>
    %42 = math.tanh %41 : vector<2x20xf32>
    %cst_22 = arith.constant 1.000000e+00 : f32
    %43 = vector.broadcast %cst_22 : f32 to vector<2x20xf32>
    %44 = arith.subf %43, %37 : vector<2x20xf32>
    %45 = arith.mulf %44, %42 : vector<2x20xf32>
    %46 = arith.mulf %37, %11 : vector<2x20xf32>
    %47 = arith.addf %45, %46 : vector<2x20xf32>
    %cst_23 = arith.constant dense<0.000000e+00> : vector<2x60xf32>
    %48 = tpu.matmul %12, %8, %cst_23 {dimension_numbers = #tpu.dot_dimension_numbers<[1], [0], [0], [1], [0, 0, 1, 1], [], []>} : vector<2x20xf32>, vector<20x60xf32>, vector<2x60xf32> -> vector<2x60xf32>
    %49 = vector.broadcast %10 : vector<1x60xf32> to vector<2x60xf32>
    %50 = arith.addf %48, %49 : vector<2x60xf32>
    %51 = vector.extract_strided_slice %18 {offsets = [0, 0], sizes = [2, 20], strides = [1, 1]} : vector<2x60xf32> to vector<2x20xf32>
    %52 = vector.extract_strided_slice %50 {offsets = [0, 0], sizes = [2, 20], strides = [1, 1]} : vector<2x60xf32> to vector<2x20xf32>
    %53 = arith.addf %51, %52 : vector<2x20xf32>
    %54 = arith.negf %53 : vector<2x20xf32>
    %55 = math.exp %54 : vector<2x20xf32>
    %cst_24 = arith.constant 1.000000e+00 : f32
    %56 = vector.broadcast %cst_24 : f32 to vector<2x20xf32>
    %57 = arith.addf %56, %55 : vector<2x20xf32>
    %58 = arith.divf %56, %57 : vector<2x20xf32>
    %59 = vector.extract_strided_slice %18 {offsets = [0, 20], sizes = [2, 20], strides = [1, 1]} : vector<2x60xf32> to vector<2x20xf32>
    %60 = vector.extract_strided_slice %50 {offsets = [0, 20], sizes = [2, 20], strides = [1, 1]} : vector<2x60xf32> to vector<2x20xf32>
    %61 = arith.addf %59, %60 : vector<2x20xf32>
    %62 = arith.negf %61 : vector<2x20xf32>
    %63 = math.exp %62 : vector<2x20xf32>
    %cst_25 = arith.constant 1.000000e+00 : f32
    %64 = vector.broadcast %cst_25 : f32 to vector<2x20xf32>
    %65 = arith.addf %64, %63 : vector<2x20xf32>
    %66 = arith.divf %64, %65 : vector<2x20xf32>
    %67 = vector.extract_strided_slice %18 {offsets = [0, 40], sizes = [2, 20], strides = [1, 1]} : vector<2x60xf32> to vector<2x20xf32>
    %68 = vector.extract_strided_slice %50 {offsets = [0, 40], sizes = [2, 20], strides = [1, 1]} : vector<2x60xf32> to vector<2x20xf32>
    %69 = arith.mulf %58, %68 : vector<2x20xf32>
    %70 = arith.addf %67, %69 : vector<2x20xf32>
    %71 = math.tanh %70 : vector<2x20xf32>
    %cst_26 = arith.constant 1.000000e+00 : f32
    %72 = vector.broadcast %cst_26 : f32 to vector<2x20xf32>
    %73 = arith.subf %72, %66 : vector<2x20xf32>
    %74 = arith.mulf %73, %71 : vector<2x20xf32>
    %75 = arith.mulf %66, %12 : vector<2x20xf32>
    %76 = arith.addf %74, %75 : vector<2x20xf32>
    %c1_27 = arith.constant 1 : index
    %c0_28 = arith.constant 0 : index
    %c0_29 = arith.constant 0 : index
    %77 = vector.load %arg1[%c1_27, %c0_28, %c0_29] : memref<8x2x128xf32, #tpu.memory_space<vmem>>, vector<1x2x128xf32>
    %78 = vector.shape_cast %77 : vector<1x2x128xf32> to vector<2x128xf32>
    %79 = vector.extract_strided_slice %78 {offsets = [0, 0], sizes = [2, 60], strides = [1, 1]} : vector<2x128xf32> to vector<2x60xf32>
    %c6 = arith.constant 6 : index
    %c0_30 = arith.constant 0 : index
    %c0_31 = arith.constant 0 : index
    %80 = vector.load %arg2[%c6, %c0_30, %c0_31] : memref<8x2x128xf32, #tpu.memory_space<vmem>>, vector<1x2x128xf32>
    %81 = vector.shape_cast %80 : vector<1x2x128xf32> to vector<2x128xf32>
    %82 = vector.extract_strided_slice %81 {offsets = [0, 60], sizes = [2, 60], strides = [1, 1]} : vector<2x128xf32> to vector<2x60xf32>
    %cst_32 = arith.constant dense<0.000000e+00> : vector<2x60xf32>
    %83 = tpu.matmul %47, %4, %cst_32 {dimension_numbers = #tpu.dot_dimension_numbers<[1], [0], [0], [1], [0, 0, 1, 1], [], []>} : vector<2x20xf32>, vector<20x60xf32>, vector<2x60xf32> -> vector<2x60xf32>
    %84 = vector.broadcast %6 : vector<1x60xf32> to vector<2x60xf32>
    %85 = arith.addf %83, %84 : vector<2x60xf32>
    %86 = vector.extract_strided_slice %79 {offsets = [0, 0], sizes = [2, 20], strides = [1, 1]} : vector<2x60xf32> to vector<2x20xf32>
    %87 = vector.extract_strided_slice %85 {offsets = [0, 0], sizes = [2, 20], strides = [1, 1]} : vector<2x60xf32> to vector<2x20xf32>
    %88 = arith.addf %86, %87 : vector<2x20xf32>
    %89 = arith.negf %88 : vector<2x20xf32>
    %90 = math.exp %89 : vector<2x20xf32>
    %cst_33 = arith.constant 1.000000e+00 : f32
    %91 = vector.broadcast %cst_33 : f32 to vector<2x20xf32>
    %92 = arith.addf %91, %90 : vector<2x20xf32>
    %93 = arith.divf %91, %92 : vector<2x20xf32>
    %94 = vector.extract_strided_slice %79 {offsets = [0, 20], sizes = [2, 20], strides = [1, 1]} : vector<2x60xf32> to vector<2x20xf32>
    %95 = vector.extract_strided_slice %85 {offsets = [0, 20], sizes = [2, 20], strides = [1, 1]} : vector<2x60xf32> to vector<2x20xf32>
    %96 = arith.addf %94, %95 : vector<2x20xf32>
    %97 = arith.negf %96 : vector<2x20xf32>
    %98 = math.exp %97 : vector<2x20xf32>
    %cst_34 = arith.constant 1.000000e+00 : f32
    %99 = vector.broadcast %cst_34 : f32 to vector<2x20xf32>
    %100 = arith.addf %99, %98 : vector<2x20xf32>
    %101 = arith.divf %99, %100 : vector<2x20xf32>
    %102 = vector.extract_strided_slice %79 {offsets = [0, 40], sizes = [2, 20], strides = [1, 1]} : vector<2x60xf32> to vector<2x20xf32>
    %103 = vector.extract_strided_slice %85 {offsets = [0, 40], sizes = [2, 20], strides = [1, 1]} : vector<2x60xf32> to vector<2x20xf32>
    %104 = arith.mulf %93, %103 : vector<2x20xf32>
    %105 = arith.addf %102, %104 : vector<2x20xf32>
    %106 = math.tanh %105 : vector<2x20xf32>
    %cst_35 = arith.constant 1.000000e+00 : f32
    %107 = vector.broadcast %cst_35 : f32 to vector<2x20xf32>
    %108 = arith.subf %107, %101 : vector<2x20xf32>
    %109 = arith.mulf %108, %106 : vector<2x20xf32>
    %110 = arith.mulf %101, %47 : vector<2x20xf32>
    %111 = arith.addf %109, %110 : vector<2x20xf32>
    %cst_36 = arith.constant dense<0.000000e+00> : vector<2x60xf32>
    %112 = tpu.matmul %76, %8, %cst_36 {dimension_numbers = #tpu.dot_dimension_numbers<[1], [0], [0], [1], [0, 0, 1, 1], [], []>} : vector<2x20xf32>, vector<20x60xf32>, vector<2x60xf32> -> vector<2x60xf32>
    %113 = vector.broadcast %10 : vector<1x60xf32> to vector<2x60xf32>
    %114 = arith.addf %112, %113 : vector<2x60xf32>
    %115 = vector.extract_strided_slice %82 {offsets = [0, 0], sizes = [2, 20], strides = [1, 1]} : vector<2x60xf32> to vector<2x20xf32>
    %116 = vector.extract_strided_slice %114 {offsets = [0, 0], sizes = [2, 20], strides = [1, 1]} : vector<2x60xf32> to vector<2x20xf32>
    %117 = arith.addf %115, %116 : vector<2x20xf32>
    %118 = arith.negf %117 : vector<2x20xf32>
    %119 = math.exp %118 : vector<2x20xf32>
    %cst_37 = arith.constant 1.000000e+00 : f32
    %120 = vector.broadcast %cst_37 : f32 to vector<2x20xf32>
    %121 = arith.addf %120, %119 : vector<2x20xf32>
    %122 = arith.divf %120, %121 : vector<2x20xf32>
    %123 = vector.extract_strided_slice %82 {offsets = [0, 20], sizes = [2, 20], strides = [1, 1]} : vector<2x60xf32> to vector<2x20xf32>
    %124 = vector.extract_strided_slice %114 {offsets = [0, 20], sizes = [2, 20], strides = [1, 1]} : vector<2x60xf32> to vector<2x20xf32>
    %125 = arith.addf %123, %124 : vector<2x20xf32>
    %126 = arith.negf %125 : vector<2x20xf32>
    %127 = math.exp %126 : vector<2x20xf32>
    %cst_38 = arith.constant 1.000000e+00 : f32
    %128 = vector.broadcast %cst_38 : f32 to vector<2x20xf32>
    %129 = arith.addf %128, %127 : vector<2x20xf32>
    %130 = arith.divf %128, %129 : vector<2x20xf32>
    %131 = vector.extract_strided_slice %82 {offsets = [0, 40], sizes = [2, 20], strides = [1, 1]} : vector<2x60xf32> to vector<2x20xf32>
    %132 = vector.extract_strided_slice %114 {offsets = [0, 40], sizes = [2, 20], strides = [1, 1]} : vector<2x60xf32> to vector<2x20xf32>
    %133 = arith.mulf %122, %132 : vector<2x20xf32>
    %134 = arith.addf %131, %133 : vector<2x20xf32>
    %135 = math.tanh %134 : vector<2x20xf32>
    %cst_39 = arith.constant 1.000000e+00 : f32
    %136 = vector.broadcast %cst_39 : f32 to vector<2x20xf32>
    %137 = arith.subf %136, %130 : vector<2x20xf32>
    %138 = arith.mulf %137, %135 : vector<2x20xf32>
    %139 = arith.mulf %130, %76 : vector<2x20xf32>
    %140 = arith.addf %138, %139 : vector<2x20xf32>
    %c2 = arith.constant 2 : index
    %c0_40 = arith.constant 0 : index
    %c0_41 = arith.constant 0 : index
    %141 = vector.load %arg1[%c2, %c0_40, %c0_41] : memref<8x2x128xf32, #tpu.memory_space<vmem>>, vector<1x2x128xf32>
    %142 = vector.shape_cast %141 : vector<1x2x128xf32> to vector<2x128xf32>
    %143 = vector.extract_strided_slice %142 {offsets = [0, 0], sizes = [2, 60], strides = [1, 1]} : vector<2x128xf32> to vector<2x60xf32>
    %c5 = arith.constant 5 : index
    %c0_42 = arith.constant 0 : index
    %c0_43 = arith.constant 0 : index
    %144 = vector.load %arg2[%c5, %c0_42, %c0_43] : memref<8x2x128xf32, #tpu.memory_space<vmem>>, vector<1x2x128xf32>
    %145 = vector.shape_cast %144 : vector<1x2x128xf32> to vector<2x128xf32>
    %146 = vector.extract_strided_slice %145 {offsets = [0, 60], sizes = [2, 60], strides = [1, 1]} : vector<2x128xf32> to vector<2x60xf32>
    %cst_44 = arith.constant dense<0.000000e+00> : vector<2x60xf32>
    %147 = tpu.matmul %111, %4, %cst_44 {dimension_numbers = #tpu.dot_dimension_numbers<[1], [0], [0], [1], [0, 0, 1, 1], [], []>} : vector<2x20xf32>, vector<20x60xf32>, vector<2x60xf32> -> vector<2x60xf32>
    %148 = vector.broadcast %6 : vector<1x60xf32> to vector<2x60xf32>
    %149 = arith.addf %147, %148 : vector<2x60xf32>
    %150 = vector.extract_strided_slice %143 {offsets = [0, 0], sizes = [2, 20], strides = [1, 1]} : vector<2x60xf32> to vector<2x20xf32>
    %151 = vector.extract_strided_slice %149 {offsets = [0, 0], sizes = [2, 20], strides = [1, 1]} : vector<2x60xf32> to vector<2x20xf32>
    %152 = arith.addf %150, %151 : vector<2x20xf32>
    %153 = arith.negf %152 : vector<2x20xf32>
    %154 = math.exp %153 : vector<2x20xf32>
    %cst_45 = arith.constant 1.000000e+00 : f32
    %155 = vector.broadcast %cst_45 : f32 to vector<2x20xf32>
    %156 = arith.addf %155, %154 : vector<2x20xf32>
    %157 = arith.divf %155, %156 : vector<2x20xf32>
    %158 = vector.extract_strided_slice %143 {offsets = [0, 20], sizes = [2, 20], strides = [1, 1]} : vector<2x60xf32> to vector<2x20xf32>
    %159 = vector.extract_strided_slice %149 {offsets = [0, 20], sizes = [2, 20], strides = [1, 1]} : vector<2x60xf32> to vector<2x20xf32>
    %160 = arith.addf %158, %159 : vector<2x20xf32>
    %161 = arith.negf %160 : vector<2x20xf32>
    %162 = math.exp %161 : vector<2x20xf32>
    %cst_46 = arith.constant 1.000000e+00 : f32
    %163 = vector.broadcast %cst_46 : f32 to vector<2x20xf32>
    %164 = arith.addf %163, %162 : vector<2x20xf32>
    %165 = arith.divf %163, %164 : vector<2x20xf32>
    %166 = vector.extract_strided_slice %143 {offsets = [0, 40], sizes = [2, 20], strides = [1, 1]} : vector<2x60xf32> to vector<2x20xf32>
    %167 = vector.extract_strided_slice %149 {offsets = [0, 40], sizes = [2, 20], strides = [1, 1]} : vector<2x60xf32> to vector<2x20xf32>
    %168 = arith.mulf %157, %167 : vector<2x20xf32>
    %169 = arith.addf %166, %168 : vector<2x20xf32>
    %170 = math.tanh %169 : vector<2x20xf32>
    %cst_47 = arith.constant 1.000000e+00 : f32
    %171 = vector.broadcast %cst_47 : f32 to vector<2x20xf32>
    %172 = arith.subf %171, %165 : vector<2x20xf32>
    %173 = arith.mulf %172, %170 : vector<2x20xf32>
    %174 = arith.mulf %165, %111 : vector<2x20xf32>
    %175 = arith.addf %173, %174 : vector<2x20xf32>
    %cst_48 = arith.constant dense<0.000000e+00> : vector<2x60xf32>
    %176 = tpu.matmul %140, %8, %cst_48 {dimension_numbers = #tpu.dot_dimension_numbers<[1], [0], [0], [1], [0, 0, 1, 1], [], []>} : vector<2x20xf32>, vector<20x60xf32>, vector<2x60xf32> -> vector<2x60xf32>
    %177 = vector.broadcast %10 : vector<1x60xf32> to vector<2x60xf32>
    %178 = arith.addf %176, %177 : vector<2x60xf32>
    %179 = vector.extract_strided_slice %146 {offsets = [0, 0], sizes = [2, 20], strides = [1, 1]} : vector<2x60xf32> to vector<2x20xf32>
    %180 = vector.extract_strided_slice %178 {offsets = [0, 0], sizes = [2, 20], strides = [1, 1]} : vector<2x60xf32> to vector<2x20xf32>
    %181 = arith.addf %179, %180 : vector<2x20xf32>
    %182 = arith.negf %181 : vector<2x20xf32>
    %183 = math.exp %182 : vector<2x20xf32>
    %cst_49 = arith.constant 1.000000e+00 : f32
    %184 = vector.broadcast %cst_49 : f32 to vector<2x20xf32>
    %185 = arith.addf %184, %183 : vector<2x20xf32>
    %186 = arith.divf %184, %185 : vector<2x20xf32>
    %187 = vector.extract_strided_slice %146 {offsets = [0, 20], sizes = [2, 20], strides = [1, 1]} : vector<2x60xf32> to vector<2x20xf32>
    %188 = vector.extract_strided_slice %178 {offsets = [0, 20], sizes = [2, 20], strides = [1, 1]} : vector<2x60xf32> to vector<2x20xf32>
    %189 = arith.addf %187, %188 : vector<2x20xf32>
    %190 = arith.negf %189 : vector<2x20xf32>
    %191 = math.exp %190 : vector<2x20xf32>
    %cst_50 = arith.constant 1.000000e+00 : f32
    %192 = vector.broadcast %cst_50 : f32 to vector<2x20xf32>
    %193 = arith.addf %192, %191 : vector<2x20xf32>
    %194 = arith.divf %192, %193 : vector<2x20xf32>
    %195 = vector.extract_strided_slice %146 {offsets = [0, 40], sizes = [2, 20], strides = [1, 1]} : vector<2x60xf32> to vector<2x20xf32>
    %196 = vector.extract_strided_slice %178 {offsets = [0, 40], sizes = [2, 20], strides = [1, 1]} : vector<2x60xf32> to vector<2x20xf32>
    %197 = arith.mulf %186, %196 : vector<2x20xf32>
    %198 = arith.addf %195, %197 : vector<2x20xf32>
    %199 = math.tanh %198 : vector<2x20xf32>
    %cst_51 = arith.constant 1.000000e+00 : f32
    %200 = vector.broadcast %cst_51 : f32 to vector<2x20xf32>
    %201 = arith.subf %200, %194 : vector<2x20xf32>
    %202 = arith.mulf %201, %199 : vector<2x20xf32>
    %203 = arith.mulf %194, %140 : vector<2x20xf32>
    %204 = arith.addf %202, %203 : vector<2x20xf32>
    %c3 = arith.constant 3 : index
    %c0_52 = arith.constant 0 : index
    %c0_53 = arith.constant 0 : index
    %205 = vector.load %arg1[%c3, %c0_52, %c0_53] : memref<8x2x128xf32, #tpu.memory_space<vmem>>, vector<1x2x128xf32>
    %206 = vector.shape_cast %205 : vector<1x2x128xf32> to vector<2x128xf32>
    %207 = vector.extract_strided_slice %206 {offsets = [0, 0], sizes = [2, 60], strides = [1, 1]} : vector<2x128xf32> to vector<2x60xf32>
    %c4 = arith.constant 4 : index
    %c0_54 = arith.constant 0 : index
    %c0_55 = arith.constant 0 : index
    %208 = vector.load %arg2[%c4, %c0_54, %c0_55] : memref<8x2x128xf32, #tpu.memory_space<vmem>>, vector<1x2x128xf32>
    %209 = vector.shape_cast %208 : vector<1x2x128xf32> to vector<2x128xf32>
    %210 = vector.extract_strided_slice %209 {offsets = [0, 60], sizes = [2, 60], strides = [1, 1]} : vector<2x128xf32> to vector<2x60xf32>
    %cst_56 = arith.constant dense<0.000000e+00> : vector<2x60xf32>
    %211 = tpu.matmul %175, %4, %cst_56 {dimension_numbers = #tpu.dot_dimension_numbers<[1], [0], [0], [1], [0, 0, 1, 1], [], []>} : vector<2x20xf32>, vector<20x60xf32>, vector<2x60xf32> -> vector<2x60xf32>
    %212 = vector.broadcast %6 : vector<1x60xf32> to vector<2x60xf32>
    %213 = arith.addf %211, %212 : vector<2x60xf32>
    %214 = vector.extract_strided_slice %207 {offsets = [0, 0], sizes = [2, 20], strides = [1, 1]} : vector<2x60xf32> to vector<2x20xf32>
    %215 = vector.extract_strided_slice %213 {offsets = [0, 0], sizes = [2, 20], strides = [1, 1]} : vector<2x60xf32> to vector<2x20xf32>
    %216 = arith.addf %214, %215 : vector<2x20xf32>
    %217 = arith.negf %216 : vector<2x20xf32>
    %218 = math.exp %217 : vector<2x20xf32>
    %cst_57 = arith.constant 1.000000e+00 : f32
    %219 = vector.broadcast %cst_57 : f32 to vector<2x20xf32>
    %220 = arith.addf %219, %218 : vector<2x20xf32>
    %221 = arith.divf %219, %220 : vector<2x20xf32>
    %222 = vector.extract_strided_slice %207 {offsets = [0, 20], sizes = [2, 20], strides = [1, 1]} : vector<2x60xf32> to vector<2x20xf32>
    %223 = vector.extract_strided_slice %213 {offsets = [0, 20], sizes = [2, 20], strides = [1, 1]} : vector<2x60xf32> to vector<2x20xf32>
    %224 = arith.addf %222, %223 : vector<2x20xf32>
    %225 = arith.negf %224 : vector<2x20xf32>
    %226 = math.exp %225 : vector<2x20xf32>
    %cst_58 = arith.constant 1.000000e+00 : f32
    %227 = vector.broadcast %cst_58 : f32 to vector<2x20xf32>
    %228 = arith.addf %227, %226 : vector<2x20xf32>
    %229 = arith.divf %227, %228 : vector<2x20xf32>
    %230 = vector.extract_strided_slice %207 {offsets = [0, 40], sizes = [2, 20], strides = [1, 1]} : vector<2x60xf32> to vector<2x20xf32>
    %231 = vector.extract_strided_slice %213 {offsets = [0, 40], sizes = [2, 20], strides = [1, 1]} : vector<2x60xf32> to vector<2x20xf32>
    %232 = arith.mulf %221, %231 : vector<2x20xf32>
    %233 = arith.addf %230, %232 : vector<2x20xf32>
    %234 = math.tanh %233 : vector<2x20xf32>
    %cst_59 = arith.constant 1.000000e+00 : f32
    %235 = vector.broadcast %cst_59 : f32 to vector<2x20xf32>
    %236 = arith.subf %235, %229 : vector<2x20xf32>
    %237 = arith.mulf %236, %234 : vector<2x20xf32>
    %238 = arith.mulf %229, %175 : vector<2x20xf32>
    %239 = arith.addf %237, %238 : vector<2x20xf32>
    %cst_60 = arith.constant dense<0.000000e+00> : vector<2x60xf32>
    %240 = tpu.matmul %204, %8, %cst_60 {dimension_numbers = #tpu.dot_dimension_numbers<[1], [0], [0], [1], [0, 0, 1, 1], [], []>} : vector<2x20xf32>, vector<20x60xf32>, vector<2x60xf32> -> vector<2x60xf32>
    %241 = vector.broadcast %10 : vector<1x60xf32> to vector<2x60xf32>
    %242 = arith.addf %240, %241 : vector<2x60xf32>
    %243 = vector.extract_strided_slice %210 {offsets = [0, 0], sizes = [2, 20], strides = [1, 1]} : vector<2x60xf32> to vector<2x20xf32>
    %244 = vector.extract_strided_slice %242 {offsets = [0, 0], sizes = [2, 20], strides = [1, 1]} : vector<2x60xf32> to vector<2x20xf32>
    %245 = arith.addf %243, %244 : vector<2x20xf32>
    %246 = arith.negf %245 : vector<2x20xf32>
    %247 = math.exp %246 : vector<2x20xf32>
    %cst_61 = arith.constant 1.000000e+00 : f32
    %248 = vector.broadcast %cst_61 : f32 to vector<2x20xf32>
    %249 = arith.addf %248, %247 : vector<2x20xf32>
    %250 = arith.divf %248, %249 : vector<2x20xf32>
    %251 = vector.extract_strided_slice %210 {offsets = [0, 20], sizes = [2, 20], strides = [1, 1]} : vector<2x60xf32> to vector<2x20xf32>
    %252 = vector.extract_strided_slice %242 {offsets = [0, 20], sizes = [2, 20], strides = [1, 1]} : vector<2x60xf32> to vector<2x20xf32>
    %253 = arith.addf %251, %252 : vector<2x20xf32>
    %254 = arith.negf %253 : vector<2x20xf32>
    %255 = math.exp %254 : vector<2x20xf32>
    %cst_62 = arith.constant 1.000000e+00 : f32
    %256 = vector.broadcast %cst_62 : f32 to vector<2x20xf32>
    %257 = arith.addf %256, %255 : vector<2x20xf32>
    %258 = arith.divf %256, %257 : vector<2x20xf32>
    %259 = vector.extract_strided_slice %210 {offsets = [0, 40], sizes = [2, 20], strides = [1, 1]} : vector<2x60xf32> to vector<2x20xf32>
    %260 = vector.extract_strided_slice %242 {offsets = [0, 40], sizes = [2, 20], strides = [1, 1]} : vector<2x60xf32> to vector<2x20xf32>
    %261 = arith.mulf %250, %260 : vector<2x20xf32>
    %262 = arith.addf %259, %261 : vector<2x20xf32>
    %263 = math.tanh %262 : vector<2x20xf32>
    %cst_63 = arith.constant 1.000000e+00 : f32
    %264 = vector.broadcast %cst_63 : f32 to vector<2x20xf32>
    %265 = arith.subf %264, %258 : vector<2x20xf32>
    %266 = arith.mulf %265, %263 : vector<2x20xf32>
    %267 = arith.mulf %258, %204 : vector<2x20xf32>
    %268 = arith.addf %266, %267 : vector<2x20xf32>
    %c4_64 = arith.constant 4 : index
    %c0_65 = arith.constant 0 : index
    %c0_66 = arith.constant 0 : index
    %269 = vector.load %arg1[%c4_64, %c0_65, %c0_66] : memref<8x2x128xf32, #tpu.memory_space<vmem>>, vector<1x2x128xf32>
    %270 = vector.shape_cast %269 : vector<1x2x128xf32> to vector<2x128xf32>
    %271 = vector.extract_strided_slice %270 {offsets = [0, 0], sizes = [2, 60], strides = [1, 1]} : vector<2x128xf32> to vector<2x60xf32>
    %c3_67 = arith.constant 3 : index
    %c0_68 = arith.constant 0 : index
    %c0_69 = arith.constant 0 : index
    %272 = vector.load %arg2[%c3_67, %c0_68, %c0_69] : memref<8x2x128xf32, #tpu.memory_space<vmem>>, vector<1x2x128xf32>
    %273 = vector.shape_cast %272 : vector<1x2x128xf32> to vector<2x128xf32>
    %274 = vector.extract_strided_slice %273 {offsets = [0, 60], sizes = [2, 60], strides = [1, 1]} : vector<2x128xf32> to vector<2x60xf32>
    %cst_70 = arith.constant dense<0.000000e+00> : vector<2x60xf32>
    %275 = tpu.matmul %239, %4, %cst_70 {dimension_numbers = #tpu.dot_dimension_numbers<[1], [0], [0], [1], [0, 0, 1, 1], [], []>} : vector<2x20xf32>, vector<20x60xf32>, vector<2x60xf32> -> vector<2x60xf32>
    %276 = vector.broadcast %6 : vector<1x60xf32> to vector<2x60xf32>
    %277 = arith.addf %275, %276 : vector<2x60xf32>
    %278 = vector.extract_strided_slice %271 {offsets = [0, 0], sizes = [2, 20], strides = [1, 1]} : vector<2x60xf32> to vector<2x20xf32>
    %279 = vector.extract_strided_slice %277 {offsets = [0, 0], sizes = [2, 20], strides = [1, 1]} : vector<2x60xf32> to vector<2x20xf32>
    %280 = arith.addf %278, %279 : vector<2x20xf32>
    %281 = arith.negf %280 : vector<2x20xf32>
    %282 = math.exp %281 : vector<2x20xf32>
    %cst_71 = arith.constant 1.000000e+00 : f32
    %283 = vector.broadcast %cst_71 : f32 to vector<2x20xf32>
    %284 = arith.addf %283, %282 : vector<2x20xf32>
    %285 = arith.divf %283, %284 : vector<2x20xf32>
    %286 = vector.extract_strided_slice %271 {offsets = [0, 20], sizes = [2, 20], strides = [1, 1]} : vector<2x60xf32> to vector<2x20xf32>
    %287 = vector.extract_strided_slice %277 {offsets = [0, 20], sizes = [2, 20], strides = [1, 1]} : vector<2x60xf32> to vector<2x20xf32>
    %288 = arith.addf %286, %287 : vector<2x20xf32>
    %289 = arith.negf %288 : vector<2x20xf32>
    %290 = math.exp %289 : vector<2x20xf32>
    %cst_72 = arith.constant 1.000000e+00 : f32
    %291 = vector.broadcast %cst_72 : f32 to vector<2x20xf32>
    %292 = arith.addf %291, %290 : vector<2x20xf32>
    %293 = arith.divf %291, %292 : vector<2x20xf32>
    %294 = vector.extract_strided_slice %271 {offsets = [0, 40], sizes = [2, 20], strides = [1, 1]} : vector<2x60xf32> to vector<2x20xf32>
    %295 = vector.extract_strided_slice %277 {offsets = [0, 40], sizes = [2, 20], strides = [1, 1]} : vector<2x60xf32> to vector<2x20xf32>
    %296 = arith.mulf %285, %295 : vector<2x20xf32>
    %297 = arith.addf %294, %296 : vector<2x20xf32>
    %298 = math.tanh %297 : vector<2x20xf32>
    %cst_73 = arith.constant 1.000000e+00 : f32
    %299 = vector.broadcast %cst_73 : f32 to vector<2x20xf32>
    %300 = arith.subf %299, %293 : vector<2x20xf32>
    %301 = arith.mulf %300, %298 : vector<2x20xf32>
    %302 = arith.mulf %293, %239 : vector<2x20xf32>
    %303 = arith.addf %301, %302 : vector<2x20xf32>
    %cst_74 = arith.constant dense<0.000000e+00> : vector<2x60xf32>
    %304 = tpu.matmul %268, %8, %cst_74 {dimension_numbers = #tpu.dot_dimension_numbers<[1], [0], [0], [1], [0, 0, 1, 1], [], []>} : vector<2x20xf32>, vector<20x60xf32>, vector<2x60xf32> -> vector<2x60xf32>
    %305 = vector.broadcast %10 : vector<1x60xf32> to vector<2x60xf32>
    %306 = arith.addf %304, %305 : vector<2x60xf32>
    %307 = vector.extract_strided_slice %274 {offsets = [0, 0], sizes = [2, 20], strides = [1, 1]} : vector<2x60xf32> to vector<2x20xf32>
    %308 = vector.extract_strided_slice %306 {offsets = [0, 0], sizes = [2, 20], strides = [1, 1]} : vector<2x60xf32> to vector<2x20xf32>
    %309 = arith.addf %307, %308 : vector<2x20xf32>
    %310 = arith.negf %309 : vector<2x20xf32>
    %311 = math.exp %310 : vector<2x20xf32>
    %cst_75 = arith.constant 1.000000e+00 : f32
    %312 = vector.broadcast %cst_75 : f32 to vector<2x20xf32>
    %313 = arith.addf %312, %311 : vector<2x20xf32>
    %314 = arith.divf %312, %313 : vector<2x20xf32>
    %315 = vector.extract_strided_slice %274 {offsets = [0, 20], sizes = [2, 20], strides = [1, 1]} : vector<2x60xf32> to vector<2x20xf32>
    %316 = vector.extract_strided_slice %306 {offsets = [0, 20], sizes = [2, 20], strides = [1, 1]} : vector<2x60xf32> to vector<2x20xf32>
    %317 = arith.addf %315, %316 : vector<2x20xf32>
    %318 = arith.negf %317 : vector<2x20xf32>
    %319 = math.exp %318 : vector<2x20xf32>
    %cst_76 = arith.constant 1.000000e+00 : f32
    %320 = vector.broadcast %cst_76 : f32 to vector<2x20xf32>
    %321 = arith.addf %320, %319 : vector<2x20xf32>
    %322 = arith.divf %320, %321 : vector<2x20xf32>
    %323 = vector.extract_strided_slice %274 {offsets = [0, 40], sizes = [2, 20], strides = [1, 1]} : vector<2x60xf32> to vector<2x20xf32>
    %324 = vector.extract_strided_slice %306 {offsets = [0, 40], sizes = [2, 20], strides = [1, 1]} : vector<2x60xf32> to vector<2x20xf32>
    %325 = arith.mulf %314, %324 : vector<2x20xf32>
    %326 = arith.addf %323, %325 : vector<2x20xf32>
    %327 = math.tanh %326 : vector<2x20xf32>
    %cst_77 = arith.constant 1.000000e+00 : f32
    %328 = vector.broadcast %cst_77 : f32 to vector<2x20xf32>
    %329 = arith.subf %328, %322 : vector<2x20xf32>
    %330 = arith.mulf %329, %327 : vector<2x20xf32>
    %331 = arith.mulf %322, %268 : vector<2x20xf32>
    %332 = arith.addf %330, %331 : vector<2x20xf32>
    %c5_78 = arith.constant 5 : index
    %c0_79 = arith.constant 0 : index
    %c0_80 = arith.constant 0 : index
    %333 = vector.load %arg1[%c5_78, %c0_79, %c0_80] : memref<8x2x128xf32, #tpu.memory_space<vmem>>, vector<1x2x128xf32>
    %334 = vector.shape_cast %333 : vector<1x2x128xf32> to vector<2x128xf32>
    %335 = vector.extract_strided_slice %334 {offsets = [0, 0], sizes = [2, 60], strides = [1, 1]} : vector<2x128xf32> to vector<2x60xf32>
    %c2_81 = arith.constant 2 : index
    %c0_82 = arith.constant 0 : index
    %c0_83 = arith.constant 0 : index
    %336 = vector.load %arg2[%c2_81, %c0_82, %c0_83] : memref<8x2x128xf32, #tpu.memory_space<vmem>>, vector<1x2x128xf32>
    %337 = vector.shape_cast %336 : vector<1x2x128xf32> to vector<2x128xf32>
    %338 = vector.extract_strided_slice %337 {offsets = [0, 60], sizes = [2, 60], strides = [1, 1]} : vector<2x128xf32> to vector<2x60xf32>
    %cst_84 = arith.constant dense<0.000000e+00> : vector<2x60xf32>
    %339 = tpu.matmul %303, %4, %cst_84 {dimension_numbers = #tpu.dot_dimension_numbers<[1], [0], [0], [1], [0, 0, 1, 1], [], []>} : vector<2x20xf32>, vector<20x60xf32>, vector<2x60xf32> -> vector<2x60xf32>
    %340 = vector.broadcast %6 : vector<1x60xf32> to vector<2x60xf32>
    %341 = arith.addf %339, %340 : vector<2x60xf32>
    %342 = vector.extract_strided_slice %335 {offsets = [0, 0], sizes = [2, 20], strides = [1, 1]} : vector<2x60xf32> to vector<2x20xf32>
    %343 = vector.extract_strided_slice %341 {offsets = [0, 0], sizes = [2, 20], strides = [1, 1]} : vector<2x60xf32> to vector<2x20xf32>
    %344 = arith.addf %342, %343 : vector<2x20xf32>
    %345 = arith.negf %344 : vector<2x20xf32>
    %346 = math.exp %345 : vector<2x20xf32>
    %cst_85 = arith.constant 1.000000e+00 : f32
    %347 = vector.broadcast %cst_85 : f32 to vector<2x20xf32>
    %348 = arith.addf %347, %346 : vector<2x20xf32>
    %349 = arith.divf %347, %348 : vector<2x20xf32>
    %350 = vector.extract_strided_slice %335 {offsets = [0, 20], sizes = [2, 20], strides = [1, 1]} : vector<2x60xf32> to vector<2x20xf32>
    %351 = vector.extract_strided_slice %341 {offsets = [0, 20], sizes = [2, 20], strides = [1, 1]} : vector<2x60xf32> to vector<2x20xf32>
    %352 = arith.addf %350, %351 : vector<2x20xf32>
    %353 = arith.negf %352 : vector<2x20xf32>
    %354 = math.exp %353 : vector<2x20xf32>
    %cst_86 = arith.constant 1.000000e+00 : f32
    %355 = vector.broadcast %cst_86 : f32 to vector<2x20xf32>
    %356 = arith.addf %355, %354 : vector<2x20xf32>
    %357 = arith.divf %355, %356 : vector<2x20xf32>
    %358 = vector.extract_strided_slice %335 {offsets = [0, 40], sizes = [2, 20], strides = [1, 1]} : vector<2x60xf32> to vector<2x20xf32>
    %359 = vector.extract_strided_slice %341 {offsets = [0, 40], sizes = [2, 20], strides = [1, 1]} : vector<2x60xf32> to vector<2x20xf32>
    %360 = arith.mulf %349, %359 : vector<2x20xf32>
    %361 = arith.addf %358, %360 : vector<2x20xf32>
    %362 = math.tanh %361 : vector<2x20xf32>
    %cst_87 = arith.constant 1.000000e+00 : f32
    %363 = vector.broadcast %cst_87 : f32 to vector<2x20xf32>
    %364 = arith.subf %363, %357 : vector<2x20xf32>
    %365 = arith.mulf %364, %362 : vector<2x20xf32>
    %366 = arith.mulf %357, %303 : vector<2x20xf32>
    %367 = arith.addf %365, %366 : vector<2x20xf32>
    %cst_88 = arith.constant dense<0.000000e+00> : vector<2x60xf32>
    %368 = tpu.matmul %332, %8, %cst_88 {dimension_numbers = #tpu.dot_dimension_numbers<[1], [0], [0], [1], [0, 0, 1, 1], [], []>} : vector<2x20xf32>, vector<20x60xf32>, vector<2x60xf32> -> vector<2x60xf32>
    %369 = vector.broadcast %10 : vector<1x60xf32> to vector<2x60xf32>
    %370 = arith.addf %368, %369 : vector<2x60xf32>
    %371 = vector.extract_strided_slice %338 {offsets = [0, 0], sizes = [2, 20], strides = [1, 1]} : vector<2x60xf32> to vector<2x20xf32>
    %372 = vector.extract_strided_slice %370 {offsets = [0, 0], sizes = [2, 20], strides = [1, 1]} : vector<2x60xf32> to vector<2x20xf32>
    %373 = arith.addf %371, %372 : vector<2x20xf32>
    %374 = arith.negf %373 : vector<2x20xf32>
    %375 = math.exp %374 : vector<2x20xf32>
    %cst_89 = arith.constant 1.000000e+00 : f32
    %376 = vector.broadcast %cst_89 : f32 to vector<2x20xf32>
    %377 = arith.addf %376, %375 : vector<2x20xf32>
    %378 = arith.divf %376, %377 : vector<2x20xf32>
    %379 = vector.extract_strided_slice %338 {offsets = [0, 20], sizes = [2, 20], strides = [1, 1]} : vector<2x60xf32> to vector<2x20xf32>
    %380 = vector.extract_strided_slice %370 {offsets = [0, 20], sizes = [2, 20], strides = [1, 1]} : vector<2x60xf32> to vector<2x20xf32>
    %381 = arith.addf %379, %380 : vector<2x20xf32>
    %382 = arith.negf %381 : vector<2x20xf32>
    %383 = math.exp %382 : vector<2x20xf32>
    %cst_90 = arith.constant 1.000000e+00 : f32
    %384 = vector.broadcast %cst_90 : f32 to vector<2x20xf32>
    %385 = arith.addf %384, %383 : vector<2x20xf32>
    %386 = arith.divf %384, %385 : vector<2x20xf32>
    %387 = vector.extract_strided_slice %338 {offsets = [0, 40], sizes = [2, 20], strides = [1, 1]} : vector<2x60xf32> to vector<2x20xf32>
    %388 = vector.extract_strided_slice %370 {offsets = [0, 40], sizes = [2, 20], strides = [1, 1]} : vector<2x60xf32> to vector<2x20xf32>
    %389 = arith.mulf %378, %388 : vector<2x20xf32>
    %390 = arith.addf %387, %389 : vector<2x20xf32>
    %391 = math.tanh %390 : vector<2x20xf32>
    %cst_91 = arith.constant 1.000000e+00 : f32
    %392 = vector.broadcast %cst_91 : f32 to vector<2x20xf32>
    %393 = arith.subf %392, %386 : vector<2x20xf32>
    %394 = arith.mulf %393, %391 : vector<2x20xf32>
    %395 = arith.mulf %386, %332 : vector<2x20xf32>
    %396 = arith.addf %394, %395 : vector<2x20xf32>
    %c6_92 = arith.constant 6 : index
    %c0_93 = arith.constant 0 : index
    %c0_94 = arith.constant 0 : index
    %397 = vector.load %arg1[%c6_92, %c0_93, %c0_94] : memref<8x2x128xf32, #tpu.memory_space<vmem>>, vector<1x2x128xf32>
    %398 = vector.shape_cast %397 : vector<1x2x128xf32> to vector<2x128xf32>
    %399 = vector.extract_strided_slice %398 {offsets = [0, 0], sizes = [2, 60], strides = [1, 1]} : vector<2x128xf32> to vector<2x60xf32>
    %c1_95 = arith.constant 1 : index
    %c0_96 = arith.constant 0 : index
    %c0_97 = arith.constant 0 : index
    %400 = vector.load %arg2[%c1_95, %c0_96, %c0_97] : memref<8x2x128xf32, #tpu.memory_space<vmem>>, vector<1x2x128xf32>
    %401 = vector.shape_cast %400 : vector<1x2x128xf32> to vector<2x128xf32>
    %402 = vector.extract_strided_slice %401 {offsets = [0, 60], sizes = [2, 60], strides = [1, 1]} : vector<2x128xf32> to vector<2x60xf32>
    %cst_98 = arith.constant dense<0.000000e+00> : vector<2x60xf32>
    %403 = tpu.matmul %367, %4, %cst_98 {dimension_numbers = #tpu.dot_dimension_numbers<[1], [0], [0], [1], [0, 0, 1, 1], [], []>} : vector<2x20xf32>, vector<20x60xf32>, vector<2x60xf32> -> vector<2x60xf32>
    %404 = vector.broadcast %6 : vector<1x60xf32> to vector<2x60xf32>
    %405 = arith.addf %403, %404 : vector<2x60xf32>
    %406 = vector.extract_strided_slice %399 {offsets = [0, 0], sizes = [2, 20], strides = [1, 1]} : vector<2x60xf32> to vector<2x20xf32>
    %407 = vector.extract_strided_slice %405 {offsets = [0, 0], sizes = [2, 20], strides = [1, 1]} : vector<2x60xf32> to vector<2x20xf32>
    %408 = arith.addf %406, %407 : vector<2x20xf32>
    %409 = arith.negf %408 : vector<2x20xf32>
    %410 = math.exp %409 : vector<2x20xf32>
    %cst_99 = arith.constant 1.000000e+00 : f32
    %411 = vector.broadcast %cst_99 : f32 to vector<2x20xf32>
    %412 = arith.addf %411, %410 : vector<2x20xf32>
    %413 = arith.divf %411, %412 : vector<2x20xf32>
    %414 = vector.extract_strided_slice %399 {offsets = [0, 20], sizes = [2, 20], strides = [1, 1]} : vector<2x60xf32> to vector<2x20xf32>
    %415 = vector.extract_strided_slice %405 {offsets = [0, 20], sizes = [2, 20], strides = [1, 1]} : vector<2x60xf32> to vector<2x20xf32>
    %416 = arith.addf %414, %415 : vector<2x20xf32>
    %417 = arith.negf %416 : vector<2x20xf32>
    %418 = math.exp %417 : vector<2x20xf32>
    %cst_100 = arith.constant 1.000000e+00 : f32
    %419 = vector.broadcast %cst_100 : f32 to vector<2x20xf32>
    %420 = arith.addf %419, %418 : vector<2x20xf32>
    %421 = arith.divf %419, %420 : vector<2x20xf32>
    %422 = vector.extract_strided_slice %399 {offsets = [0, 40], sizes = [2, 20], strides = [1, 1]} : vector<2x60xf32> to vector<2x20xf32>
    %423 = vector.extract_strided_slice %405 {offsets = [0, 40], sizes = [2, 20], strides = [1, 1]} : vector<2x60xf32> to vector<2x20xf32>
    %424 = arith.mulf %413, %423 : vector<2x20xf32>
    %425 = arith.addf %422, %424 : vector<2x20xf32>
    %426 = math.tanh %425 : vector<2x20xf32>
    %cst_101 = arith.constant 1.000000e+00 : f32
    %427 = vector.broadcast %cst_101 : f32 to vector<2x20xf32>
    %428 = arith.subf %427, %421 : vector<2x20xf32>
    %429 = arith.mulf %428, %426 : vector<2x20xf32>
    %430 = arith.mulf %421, %367 : vector<2x20xf32>
    %431 = arith.addf %429, %430 : vector<2x20xf32>
    %cst_102 = arith.constant dense<0.000000e+00> : vector<2x60xf32>
    %432 = tpu.matmul %396, %8, %cst_102 {dimension_numbers = #tpu.dot_dimension_numbers<[1], [0], [0], [1], [0, 0, 1, 1], [], []>} : vector<2x20xf32>, vector<20x60xf32>, vector<2x60xf32> -> vector<2x60xf32>
    %433 = vector.broadcast %10 : vector<1x60xf32> to vector<2x60xf32>
    %434 = arith.addf %432, %433 : vector<2x60xf32>
    %435 = vector.extract_strided_slice %402 {offsets = [0, 0], sizes = [2, 20], strides = [1, 1]} : vector<2x60xf32> to vector<2x20xf32>
    %436 = vector.extract_strided_slice %434 {offsets = [0, 0], sizes = [2, 20], strides = [1, 1]} : vector<2x60xf32> to vector<2x20xf32>
    %437 = arith.addf %435, %436 : vector<2x20xf32>
    %438 = arith.negf %437 : vector<2x20xf32>
    %439 = math.exp %438 : vector<2x20xf32>
    %cst_103 = arith.constant 1.000000e+00 : f32
    %440 = vector.broadcast %cst_103 : f32 to vector<2x20xf32>
    %441 = arith.addf %440, %439 : vector<2x20xf32>
    %442 = arith.divf %440, %441 : vector<2x20xf32>
    %443 = vector.extract_strided_slice %402 {offsets = [0, 20], sizes = [2, 20], strides = [1, 1]} : vector<2x60xf32> to vector<2x20xf32>
    %444 = vector.extract_strided_slice %434 {offsets = [0, 20], sizes = [2, 20], strides = [1, 1]} : vector<2x60xf32> to vector<2x20xf32>
    %445 = arith.addf %443, %444 : vector<2x20xf32>
    %446 = arith.negf %445 : vector<2x20xf32>
    %447 = math.exp %446 : vector<2x20xf32>
    %cst_104 = arith.constant 1.000000e+00 : f32
    %448 = vector.broadcast %cst_104 : f32 to vector<2x20xf32>
    %449 = arith.addf %448, %447 : vector<2x20xf32>
    %450 = arith.divf %448, %449 : vector<2x20xf32>
    %451 = vector.extract_strided_slice %402 {offsets = [0, 40], sizes = [2, 20], strides = [1, 1]} : vector<2x60xf32> to vector<2x20xf32>
    %452 = vector.extract_strided_slice %434 {offsets = [0, 40], sizes = [2, 20], strides = [1, 1]} : vector<2x60xf32> to vector<2x20xf32>
    %453 = arith.mulf %442, %452 : vector<2x20xf32>
    %454 = arith.addf %451, %453 : vector<2x20xf32>
    %455 = math.tanh %454 : vector<2x20xf32>
    %cst_105 = arith.constant 1.000000e+00 : f32
    %456 = vector.broadcast %cst_105 : f32 to vector<2x20xf32>
    %457 = arith.subf %456, %450 : vector<2x20xf32>
    %458 = arith.mulf %457, %455 : vector<2x20xf32>
    %459 = arith.mulf %450, %396 : vector<2x20xf32>
    %460 = arith.addf %458, %459 : vector<2x20xf32>
    %c7_106 = arith.constant 7 : index
    %c0_107 = arith.constant 0 : index
    %c0_108 = arith.constant 0 : index
    %461 = vector.load %arg1[%c7_106, %c0_107, %c0_108] : memref<8x2x128xf32, #tpu.memory_space<vmem>>, vector<1x2x128xf32>
    %462 = vector.shape_cast %461 : vector<1x2x128xf32> to vector<2x128xf32>
    %463 = vector.extract_strided_slice %462 {offsets = [0, 0], sizes = [2, 60], strides = [1, 1]} : vector<2x128xf32> to vector<2x60xf32>
    %c0_109 = arith.constant 0 : index
    %c0_110 = arith.constant 0 : index
    %c0_111 = arith.constant 0 : index
    %464 = vector.load %arg2[%c0_109, %c0_110, %c0_111] : memref<8x2x128xf32, #tpu.memory_space<vmem>>, vector<1x2x128xf32>
    %465 = vector.shape_cast %464 : vector<1x2x128xf32> to vector<2x128xf32>
    %466 = vector.extract_strided_slice %465 {offsets = [0, 60], sizes = [2, 60], strides = [1, 1]} : vector<2x128xf32> to vector<2x60xf32>
    %cst_112 = arith.constant dense<0.000000e+00> : vector<2x60xf32>
    %467 = tpu.matmul %431, %4, %cst_112 {dimension_numbers = #tpu.dot_dimension_numbers<[1], [0], [0], [1], [0, 0, 1, 1], [], []>} : vector<2x20xf32>, vector<20x60xf32>, vector<2x60xf32> -> vector<2x60xf32>
    %468 = vector.broadcast %6 : vector<1x60xf32> to vector<2x60xf32>
    %469 = arith.addf %467, %468 : vector<2x60xf32>
    %470 = vector.extract_strided_slice %463 {offsets = [0, 0], sizes = [2, 20], strides = [1, 1]} : vector<2x60xf32> to vector<2x20xf32>
    %471 = vector.extract_strided_slice %469 {offsets = [0, 0], sizes = [2, 20], strides = [1, 1]} : vector<2x60xf32> to vector<2x20xf32>
    %472 = arith.addf %470, %471 : vector<2x20xf32>
    %473 = arith.negf %472 : vector<2x20xf32>
    %474 = math.exp %473 : vector<2x20xf32>
    %cst_113 = arith.constant 1.000000e+00 : f32
    %475 = vector.broadcast %cst_113 : f32 to vector<2x20xf32>
    %476 = arith.addf %475, %474 : vector<2x20xf32>
    %477 = arith.divf %475, %476 : vector<2x20xf32>
    %478 = vector.extract_strided_slice %463 {offsets = [0, 20], sizes = [2, 20], strides = [1, 1]} : vector<2x60xf32> to vector<2x20xf32>
    %479 = vector.extract_strided_slice %469 {offsets = [0, 20], sizes = [2, 20], strides = [1, 1]} : vector<2x60xf32> to vector<2x20xf32>
    %480 = arith.addf %478, %479 : vector<2x20xf32>
    %481 = arith.negf %480 : vector<2x20xf32>
    %482 = math.exp %481 : vector<2x20xf32>
    %cst_114 = arith.constant 1.000000e+00 : f32
    %483 = vector.broadcast %cst_114 : f32 to vector<2x20xf32>
    %484 = arith.addf %483, %482 : vector<2x20xf32>
    %485 = arith.divf %483, %484 : vector<2x20xf32>
    %486 = vector.extract_strided_slice %463 {offsets = [0, 40], sizes = [2, 20], strides = [1, 1]} : vector<2x60xf32> to vector<2x20xf32>
    %487 = vector.extract_strided_slice %469 {offsets = [0, 40], sizes = [2, 20], strides = [1, 1]} : vector<2x60xf32> to vector<2x20xf32>
    %488 = arith.mulf %477, %487 : vector<2x20xf32>
    %489 = arith.addf %486, %488 : vector<2x20xf32>
    %490 = math.tanh %489 : vector<2x20xf32>
    %cst_115 = arith.constant 1.000000e+00 : f32
    %491 = vector.broadcast %cst_115 : f32 to vector<2x20xf32>
    %492 = arith.subf %491, %485 : vector<2x20xf32>
    %493 = arith.mulf %492, %490 : vector<2x20xf32>
    %494 = arith.mulf %485, %431 : vector<2x20xf32>
    %495 = arith.addf %493, %494 : vector<2x20xf32>
    %cst_116 = arith.constant dense<0.000000e+00> : vector<2x60xf32>
    %496 = tpu.matmul %460, %8, %cst_116 {dimension_numbers = #tpu.dot_dimension_numbers<[1], [0], [0], [1], [0, 0, 1, 1], [], []>} : vector<2x20xf32>, vector<20x60xf32>, vector<2x60xf32> -> vector<2x60xf32>
    %497 = vector.broadcast %10 : vector<1x60xf32> to vector<2x60xf32>
    %498 = arith.addf %496, %497 : vector<2x60xf32>
    %499 = vector.extract_strided_slice %466 {offsets = [0, 0], sizes = [2, 20], strides = [1, 1]} : vector<2x60xf32> to vector<2x20xf32>
    %500 = vector.extract_strided_slice %498 {offsets = [0, 0], sizes = [2, 20], strides = [1, 1]} : vector<2x60xf32> to vector<2x20xf32>
    %501 = arith.addf %499, %500 : vector<2x20xf32>
    %502 = arith.negf %501 : vector<2x20xf32>
    %503 = math.exp %502 : vector<2x20xf32>
    %cst_117 = arith.constant 1.000000e+00 : f32
    %504 = vector.broadcast %cst_117 : f32 to vector<2x20xf32>
    %505 = arith.addf %504, %503 : vector<2x20xf32>
    %506 = arith.divf %504, %505 : vector<2x20xf32>
    %507 = vector.extract_strided_slice %466 {offsets = [0, 20], sizes = [2, 20], strides = [1, 1]} : vector<2x60xf32> to vector<2x20xf32>
    %508 = vector.extract_strided_slice %498 {offsets = [0, 20], sizes = [2, 20], strides = [1, 1]} : vector<2x60xf32> to vector<2x20xf32>
    %509 = arith.addf %507, %508 : vector<2x20xf32>
    %510 = arith.negf %509 : vector<2x20xf32>
    %511 = math.exp %510 : vector<2x20xf32>
    %cst_118 = arith.constant 1.000000e+00 : f32
    %512 = vector.broadcast %cst_118 : f32 to vector<2x20xf32>
    %513 = arith.addf %512, %511 : vector<2x20xf32>
    %514 = arith.divf %512, %513 : vector<2x20xf32>
    %515 = vector.extract_strided_slice %466 {offsets = [0, 40], sizes = [2, 20], strides = [1, 1]} : vector<2x60xf32> to vector<2x20xf32>
    %516 = vector.extract_strided_slice %498 {offsets = [0, 40], sizes = [2, 20], strides = [1, 1]} : vector<2x60xf32> to vector<2x20xf32>
    %517 = arith.mulf %506, %516 : vector<2x20xf32>
    %518 = arith.addf %515, %517 : vector<2x20xf32>
    %519 = math.tanh %518 : vector<2x20xf32>
    %cst_119 = arith.constant 1.000000e+00 : f32
    %520 = vector.broadcast %cst_119 : f32 to vector<2x20xf32>
    %521 = arith.subf %520, %514 : vector<2x20xf32>
    %522 = arith.mulf %521, %519 : vector<2x20xf32>
    %523 = arith.mulf %514, %460 : vector<2x20xf32>
    %524 = arith.addf %522, %523 : vector<2x20xf32>
    %c0_120 = arith.constant 0 : index
    %c0_121 = arith.constant 0 : index
    %525 = vector.load %arg8[%c0_120, %c0_121] : memref<2x20xf32, #tpu.memory_space<vmem>>, vector<2x20xf32>
    tpu.vector_store %arg8[%c0_120, %c0_121], %495 {strides = array<i32>} : memref<2x20xf32, #tpu.memory_space<vmem>>, vector<2x20xf32>,
    %c0_122 = arith.constant 0 : index
    %c0_123 = arith.constant 0 : index
    %526 = vector.load %arg9[%c0_122, %c0_123] : memref<2x20xf32, #tpu.memory_space<vmem>>, vector<2x20xf32>
    tpu.vector_store %arg9[%c0_122, %c0_123], %524 {strides = array<i32>} : memref<2x20xf32, #tpu.memory_space<vmem>>, vector<2x20xf32>,
    %c0_i32_124 = arith.constant 0 : i32
    %527 = arith.cmpi eq, %arg0, %c0_i32_124 : i32
    %528 = arith.extui %527 : i1 to i32
    %c0_i32_125 = arith.constant 0 : i32
    %529 = arith.cmpi ne, %528, %c0_i32_125 : i32
    scf.if %529 {
      %c0_126 = arith.constant 0 : index
      %c0_127 = arith.constant 0 : index
      %c0_128 = arith.constant 0 : index
      %530 = vector.load %arg5[%c0_126, %c0_127, %c0_128] : memref<2x20x5xf32, #tpu.memory_space<vmem>>, vector<1x20x5xf32>
      %531 = vector.shape_cast %530 : vector<1x20x5xf32> to vector<20x5xf32>
      %cst_129 = arith.constant dense<0.000000e+00> : vector<2x5xf32>
      %532 = tpu.matmul %495, %531, %cst_129 {dimension_numbers = #tpu.dot_dimension_numbers<[1], [0], [0], [1], [0, 0, 1, 1], [], []>} : vector<2x20xf32>, vector<20x5xf32>, vector<2x5xf32> -> vector<2x5xf32>
      %c1_130 = arith.constant 1 : index
      %c0_131 = arith.constant 0 : index
      %c0_132 = arith.constant 0 : index
      %533 = vector.load %arg5[%c1_130, %c0_131, %c0_132] : memref<2x20x5xf32, #tpu.memory_space<vmem>>, vector<1x20x5xf32>
      %534 = vector.shape_cast %533 : vector<1x20x5xf32> to vector<20x5xf32>
      %cst_133 = arith.constant dense<0.000000e+00> : vector<2x5xf32>
      %535 = tpu.matmul %524, %534, %cst_133 {dimension_numbers = #tpu.dot_dimension_numbers<[1], [0], [0], [1], [0, 0, 1, 1], [], []>} : vector<2x20xf32>, vector<20x5xf32>, vector<2x5xf32> -> vector<2x5xf32>
      %536 = arith.addf %532, %535 : vector<2x5xf32>
      %c0_134 = arith.constant 0 : index
      %c0_135 = arith.constant 0 : index
      %537 = vector.load %arg6[%c0_134, %c0_135] : memref<1x5xf32, #tpu.memory_space<vmem>>, vector<1x5xf32>
      %538 = vector.broadcast %537 : vector<1x5xf32> to vector<2x5xf32>
      %539 = arith.addf %536, %538 : vector<2x5xf32>
      %cst_136 = arith.constant dense<0xFF800000> : vector<2xf32>
      %540 = vector.multi_reduction <maximumf>, %539, %cst_136 [1] : vector<2x5xf32> to vector<2xf32>
      %cst_137 = arith.constant 0xFF800000 : f32
      %541 = vector.broadcast %cst_137 : f32 to vector<2xf32>
      %542 = arith.maximumf %541, %540 : vector<2xf32>
      %543 = vector.shape_cast %542 : vector<2xf32> to vector<2x1xf32>
      %544 = vector.broadcast %543 : vector<2x1xf32> to vector<2x5xf32>
      %545 = arith.subf %539, %544 : vector<2x5xf32>
      %546 = math.exp %545 : vector<2x5xf32>
      %cst_138 = arith.constant dense<0.000000e+00> : vector<2xf32>
      %547 = vector.multi_reduction <add>, %546, %cst_138 [1] : vector<2x5xf32> to vector<2xf32>
      %548 = vector.shape_cast %547 : vector<2xf32> to vector<2x1xf32>
      %549 = vector.broadcast %548 : vector<2x1xf32> to vector<2x5xf32>
      %550 = arith.divf %546, %549 : vector<2x5xf32>
      %cst_139 = arith.constant 5.000000e+00 : f32
      %551 = vector.broadcast %cst_139 : f32 to vector<2x5xf32>
      %552 = arith.mulf %550, %551 : vector<2x5xf32>
      %cst_140 = arith.constant 9.99999968E-21 : f32
      %553 = vector.broadcast %cst_140 : f32 to vector<2x5xf32>
      %554 = arith.addf %552, %553 : vector<2x5xf32>
      %555 = math.log %554 : vector<2x5xf32>
      %556 = arith.mulf %550, %555 : vector<2x5xf32>
      %cst_141 = arith.constant dense<0.000000e+00> : vector<2xf32>
      %557 = vector.multi_reduction <add>, %556, %cst_141 [1] : vector<2x5xf32> to vector<2xf32>
      %558 = vector.shape_cast %557 : vector<2xf32> to vector<2x1xf32>
      %c0_142 = arith.constant 0 : index
      %c0_143 = arith.constant 0 : index
      %559 = vector.load %arg7[%c0_142, %c0_143] : memref<2x1xf32, #tpu.memory_space<vmem>>, vector<2x1xf32>
      tpu.vector_store %arg7[%c0_142, %c0_143], %558 {strides = array<i32>} : memref<2x1xf32, #tpu.memory_space<vmem>>, vector<2x1xf32>,
    } else {
    }
    return
  }
  func.func @transform_0(%arg0: i32) -> (i32, i32, i32) {
    %c0_i32 = arith.constant 0 : i32
    %c0_i32_0 = arith.constant 0 : i32
    %c0_i32_1 = arith.constant 0 : i32
    return %arg0, %c0_i32, %c0_i32_0 : i32, i32, i32
  }
  func.func @transform_1(%arg0: i32) -> (i32, i32, i32) {
    %c0_i32 = arith.constant 0 : i32
    %0 = arith.subi %c0_i32, %arg0 : i32
    %c0_i32_0 = arith.constant 0 : i32
    %c0_i32_1 = arith.constant 0 : i32
    %c0_i32_2 = arith.constant 0 : i32
    return %0, %c0_i32_0, %c0_i32_1 : i32, i32, i32
  }
  func.func @transform_2(%arg0: i32) -> (i32, i32, i32) {
    %c0_i32 = arith.constant 0 : i32
    %c0_i32_0 = arith.constant 0 : i32
    %c0_i32_1 = arith.constant 0 : i32
    %c0_i32_2 = arith.constant 0 : i32
    return %c0_i32, %c0_i32_0, %c0_i32_1 : i32, i32, i32
  }
  func.func @transform_3(%arg0: i32) -> (i32, i32, i32) {
    %c0_i32 = arith.constant 0 : i32
    %c0_i32_0 = arith.constant 0 : i32
    %c0_i32_1 = arith.constant 0 : i32
    %c0_i32_2 = arith.constant 0 : i32
    return %c0_i32, %c0_i32_0, %c0_i32_1 : i32, i32, i32
  }
  func.func @transform_4(%arg0: i32) -> (i32, i32, i32) {
    %c0_i32 = arith.constant 0 : i32
    %c0_i32_0 = arith.constant 0 : i32
    %c0_i32_1 = arith.constant 0 : i32
    %c0_i32_2 = arith.constant 0 : i32
    return %c0_i32, %c0_i32_0, %c0_i32_1 : i32, i32, i32
  }
  func.func @transform_5(%arg0: i32) -> (i32, i32) {
    %c0_i32 = arith.constant 0 : i32
    %c0_i32_0 = arith.constant 0 : i32
    %c0_i32_1 = arith.constant 0 : i32
    return %c0_i32, %c0_i32_0 : i32, i32
  }
  func.func @transform_6(%arg0: i32) -> (i32, i32) {
    %c0_i32 = arith.constant 0 : i32
    %c0_i32_0 = arith.constant 0 : i32
    %c0_i32_1 = arith.constant 0 : i32
    return %c0_i32, %c0_i32_0 : i32, i32
  }
}

</mosaic_0001>

<llo_original>
// kernel: squeeze.0
$region0: #{squeeze.0}
  %s0 = inlined_call_operand.vmem [shape: f32[8,2,1], index: 0, kind: input, shape index: {}]
  %s1 = inlined_call_operand.vmem [shape: f32[16,1], index: 1, kind: output, shape index: {}]
  %v2 = vld [vmem:[%s0] sm:$0xff]
  %vm3 = vcmask 7168
  %4 = vst.msk [vmem:[%s1] ss:$2 sm:$0xff] %vm3, %v2
  %v5 = vld [vmem:[%s0] sm:$0xff]
  %6 = vrot.lane.b32.xlu0 %v5, 127
  %v7 = vpop.permute.xlu0 %6
  %vm8 = vcmask 7168
  %s9 = scalar_lea.vmem %s1, 1
  %10 = vst.msk [vmem:[%s9] ss:$2 sm:$0xff] %vm8, %v7

// kernel: _lambda_.4
$region0: #{_lambda_.4}
  #allocation0 [shape = 'u32[]', space=smem, size = 0x4, offset = 0x4, fixed_abs, tag = 'smem constant byte address 0x4 - core index']
  #allocation1 [shape = 'u32[72,128]{1,0:T(1,128)}', space=vmem, size = 0x9000, scoped, tag = 'internal scratch']
  %s0 = inlined_call_operand.vmem [shape: f32[16,20], index: 0, kind: input, shape index: {}]
  %s1 = inlined_call_operand.vmem [shape: f32[16,2], index: 1, kind: input, shape index: {}]
  %s2 = inlined_call_operand.vmem [shape: f32[2,64], index: 2, kind: input, shape index: {}]
  %s3 = inlined_call_operand.vmem [shape: f32[1,64], index: 3, kind: input, shape index: {}]
  %s4 = inlined_call_operand.vmem [shape: bf16[20,128], index: 4, kind: input, shape index: {}]
  %s5 = inlined_call_operand.vmem [shape: bf16[64,128], index: 5, kind: input, shape index: {}]
  %s6 = inlined_call_operand.vmem [shape: f32[1,128], index: 6, kind: input, shape index: {}]
  %s7 = inlined_call_operand.hbm [shape: bf16[128,768], index: 7, kind: input, shape index: {}]
  %s8 = inlined_call_operand.vmem [shape: f32[1,768], index: 8, kind: input, shape index: {}]
  %s9 = inlined_call_operand.vmem [shape: bf16[16,128], index: 9, kind: output, shape index: {0}]
  %s10 = inlined_call_operand.vmem [shape: f32[2,16,384], index: 10, kind: output, shape index: {1}]
  %11 = xla_tuple %s9, %s10
  %s12 = sld [smem:[#allocation0]]
  $region58: #{_lambda_.4} parent=0
    _
  %s14 = ssub.s32 1, %s12
  %s15 = scalar_select 0, %s14, %s12
  $region1: #{_lambda_.4} parent=0
    #allocation2 [shape = 'u8[196608]{0}', space=vmem, size = 0x30000, scoped, tag = 'input window, operand 7, single buffered']
    #allocation3 [shape = 's32[1]{0}', space=sflag, size = 0x4, scoped, tag = 'scoped memory for _lambda_.4']
    %16 = vsyncpa [#allocation3], 0
    // Predicated region
    $region2: #{_lambda_.4} parent=1 // pred_check
      _
    $region3: #{_lambda_.4} parent=1 // pred_check_branch
      %18 = sbr.rel (0) target = $region5
    $region4: #{_lambda_.4} parent=1 // pred_region
      _
    $region5: #{_lambda_.4} parent=1 // pred_fallthru
      _
    // Predicated region
    $region6: #{_lambda_.4} parent=1 // pred_check
      _
    $region7: #{_lambda_.4} parent=1 // pred_check_branch
      %20 = sbr.rel (0) target = $region9
    $region8: #{_lambda_.4} parent=1 // pred_region
      _
    $region9: #{_lambda_.4} parent=1 // pred_fallthru
      _
    // Predicated region
    $region10: #{_lambda_.4} parent=1 // pred_check
      _
    $region11: #{_lambda_.4} parent=1 // pred_check_branch
      %22 = sbr.rel (0) target = $region13
    $region12: #{_lambda_.4} parent=1 // pred_region
      _
    $region13: #{_lambda_.4} parent=1 // pred_fallthru
      _
    // Predicated region
    $region14: #{_lambda_.4} parent=1 // pred_check
      _
    $region15: #{_lambda_.4} parent=1 // pred_check_branch
      %24 = sbr.rel (0) target = $region17
    $region16: #{_lambda_.4} parent=1 // pred_region
      _
    $region17: #{_lambda_.4} parent=1 // pred_fallthru
      _
    // Predicated region
    $region18: #{_lambda_.4} parent=1 // pred_check
      _
    $region19: #{_lambda_.4} parent=1 // pred_check_branch
      %26 = sbr.rel (0) target = $region21
    $region20: #{_lambda_.4} parent=1 // pred_region
      _
    $region21: #{_lambda_.4} parent=1 // pred_fallthru
      _
    // Predicated region
    $region22: #{_lambda_.4} parent=1 // pred_check
      _
    $region23: #{_lambda_.4} parent=1 // pred_check_branch
      %28 = sbr.rel (0) target = $region25
    $region24: #{_lambda_.4} parent=1 // pred_region
      _
    $region25: #{_lambda_.4} parent=1 // pred_fallthru
      _
    // Predicated region
    $region26: #{_lambda_.4} parent=1 // pred_check
      _
    $region27: #{_lambda_.4} parent=1 // pred_check_branch
      %30 = sbr.rel (0) target = $region29
    $region28: #{_lambda_.4} parent=1 // pred_region
      _
    $region29: #{_lambda_.4} parent=1 // pred_fallthru
      _
    // Predicated region
    $region30: #{_lambda_.4} parent=1 // pred_check
      _
    $region31: #{_lambda_.4} parent=1 // pred_check_branch
      %32 = sbr.rel (0) target = $region33
    $region32: #{_lambda_.4} parent=1 // pred_region
      %34 = vsyncadd [#allocation3], 0
      %s35 = sshll.u32 %s7, 4
      %s36 = int_to_ptr.hbm [resolvable:$true] %s35
      %s37 = sshll.u32 [#allocation2], 4
      %s38 = int_to_ptr.vmem [resolvable:$true] %s37
      %43 = dma.hbm_to_vmem [thread:$0]  %s36, 6144, %s38, [#allocation3], 384, 384, 24
    $region33: #{_lambda_.4} parent=1 // pred_fallthru
      _
    // Predicated region
    $region34: #{_lambda_.4} parent=1 // pred_check
      _
    $region35: #{_lambda_.4} parent=1 // pred_check_branch
      %45 = sbr.rel (0) target = $region37
    $region36: #{_lambda_.4} parent=1 // pred_region
      _
    $region37: #{_lambda_.4} parent=1 // pred_fallthru
      _
    // Predicated region
    $region38: #{_lambda_.4} parent=1 // pred_check
      _
    $region39: #{_lambda_.4} parent=1 // pred_check_branch
      %47 = sbr.rel (0) target = $region41
    $region40: #{_lambda_.4} parent=1 // pred_region
      %49 = dma.done [#allocation3], 6144
    $region41: #{_lambda_.4} parent=1 // pred_fallthru
      _
    %v51 = vld [vmem:[%s0] sm:$0xff]
    %v52 = vld [vmem:[%s0 + $0x8] sm:$0xff]
    %v53 = vld [vmem:[%s1] sm:$0xff]
    %v54 = vld [vmem:[%s1 + $0x8] sm:$0xff]
    %v55 = vld [vmem:[%s2] sm:$0x3]
    %v56 = vld [vmem:[%s3] sm:$0x1]
    %v58 = vperm.slane %v56, 0
    %vm60 = vcmask 15360
    %v62 = vsel %vm60, %v53, 0
    %v65 = vsel %vm60, %v54, 0
    %vm67 = vcmask 1041408
    %v69 = vsel %vm67, %v55, 0
    %71 = vmatpush.msra.mxu0 0.0
    %72 = vmatpush.msra.mxu0 0.0
    %73 = vmatpush.msra.mxu0 0.0
    %74 = vmatpush.msra.mxu0 0.0
    %75 = vmatpush.msra.mxu0 0.0
    %76 = vmatpush.msra.mxu0 0.0
    %77 = vmatpush.msra.mxu0 0.0
    %78 = vmatpush.msra.mxu0 0.0
    %79 = vmatpush.msra.mxu0 0.0
    %80 = vmatpush.msra.mxu0 0.0
    %81 = vmatpush.msra.mxu0 0.0
    %82 = vmatpush.msra.mxu0 0.0
    %83 = vmatpush.msra.mxu0 0.0
    %84 = vmatpush.msra.mxu0 0.0
    %85 = vmatpush.msra.mxu0 0.0
    %86 = vmatpush.msra.mxu0 %v69
    %87 = vmatmul.f32.gmra.mxu0 %v62
    %v88 = vpop.f32.mrf.mxu0
    %v89 = vadd.f32 %v58, %v88
    %90 = vmatmul.f32.gmra.mxu0 %v65
    %v91 = vpop.f32.mrf.mxu0
    %v92 = vadd.f32 %v58, %v91
    %93 = vdwg.mxu0
    %v94 = vmax.f32 %v89, 0.0
    %v95 = vmax.f32 %v92, 0.0
    %v96 = vpack.c.bf16 %v52, %v51
    %v97 = vld [vmem:[%s4] sm:$0xf]
    %v98 = vld [vmem:[%s4 + $0x4] sm:$0xf]
    %v99 = vld [vmem:[%s4 + $0x8] sm:$0x3]
    %v100 = vpack.c.bf16 %v95, %v94
    %v101 = vld [vmem:[%s5] sm:$0xf]
    %v102 = vld [vmem:[%s5 + $0x4] sm:$0xf]
    %v103 = vld [vmem:[%s5 + $0x8] sm:$0xf]
    %v104 = vld [vmem:[%s5 + $0xc] sm:$0xf]
    %v105 = vld [vmem:[%s5 + $0x10] sm:$0xf]
    %v106 = vld [vmem:[%s5 + $0x14] sm:$0xf]
    %v107 = vld [vmem:[%s5 + $0x18] sm:$0xf]
    %v108 = vld [vmem:[%s5 + $0x1c] sm:$0xf]
    %v117 = vunpack.c.l.b16 %v101
    %v118 = vunpack.c.l.b16 %v102
    %v119 = vunpack.c.l.b16 %v103
    %v120 = vunpack.c.l.b16 %v104
    %v121 = vunpack.c.l.b16 %v105
    %v122 = vunpack.c.l.b16 %v106
    %v123 = vunpack.c.l.b16 %v107
    %v124 = vunpack.c.l.b16 %v108
    %v125 = vpack.c.b16 %v118, %v117
    %v126 = vpack.c.b16 %v120, %v119
    %v127 = vpack.c.b16 %v122, %v121
    %v128 = vpack.c.b16 %v124, %v123
    %vm133 = vcmask 523264
    %v135 = vsel %vm133, %v100, 0
    %137 = vmatpush.bf16.msra.mxu0 0
    %138 = vmatpush.bf16.msra.mxu0 0
    %139 = vmatpush.bf16.msra.mxu0 0
    %140 = vmatpush.bf16.msra.mxu0 0
    %141 = vmatpush.bf16.msra.mxu0 %v128
    %142 = vmatpush.bf16.msra.mxu0 %v127
    %143 = vmatpush.bf16.msra.mxu0 %v126
    %144 = vmatpush.bf16.msra.mxu0 %v125
    %145 = vmatmul.bf16.gmra.mxu0 %v135
    %v146 = vpop.f32.mrf.mxu0
    %v147 = vadd.f32 0.0, %v146
    %v148 = vpop.f32.mrf.mxu0
    %v149 = vadd.f32 0.0, %v148
    %150 = vdwg.mxu0
    %v154 = vunpack.c.l.b16 %v97
    %v155 = vunpack.c.l.b16 %v98
    %v156 = vunpack.c.l.b16 %v99
    %v157 = vpack.c.b16 %v155, %v154
    %v158 = vpack.c.b16 %v156, %v156
    %vm160 = vcmask 162816
    %v162 = vsel %vm160, %v96, 0
    %v165 = vsel %vm67, %v158, 0
    %167 = vmatpush.bf16.msra.mxu0 0
    %168 = vmatpush.bf16.msra.mxu0 0
    %169 = vmatpush.bf16.msra.mxu0 0
    %170 = vmatpush.bf16.msra.mxu0 0
    %171 = vmatpush.bf16.msra.mxu0 0
    %172 = vmatpush.bf16.msra.mxu0 0
    %173 = vmatpush.bf16.msra.mxu0 %v165
    %174 = vmatpush.bf16.msra.mxu0 %v157
    %175 = vmatmul.bf16.gmra.mxu0 %v162
    %v176 = vpop.f32.mrf.mxu0
    %v177 = vadd.f32 %v147, %v176
    %v178 = vpop.f32.mrf.mxu0
    %v179 = vadd.f32 %v149, %v178
    %180 = vdwg.mxu0
    %v181 = vld [vmem:[%s6] sm:$0x1]
    %v183 = vperm.slane %v181, 0
    %v185 = vadd.f32 %v177, %v183
    %v186 = vadd.f32 %v179, %v183
    %v187 = vpack.c.bf16 %v185, %v185
    %v188 = vpack.c.bf16 %v186, %v186
    %189 = vst [vmem:[%s9] sm:$0xf] %v187
    %190 = vst [vmem:[%s9 + $0x4] sm:$0xf] %v188
    %v191 = vld [vmem:[#allocation2] sm:$0xff]
    %v192 = vld [vmem:[#allocation2 + $0x8] sm:$0xff]
    %v193 = vld [vmem:[#allocation2 + $0x10] sm:$0xff]
    %v194 = vld [vmem:[#allocation2 + $0x18] sm:$0xff]
    %v195 = vld [vmem:[#allocation2 + $0x20] sm:$0xff]
    %v196 = vld [vmem:[#allocation2 + $0x28] sm:$0xff]
    %v197 = vld [vmem:[#allocation2 + $0x30] sm:$0xff]
    %v198 = vld [vmem:[#allocation2 + $0x38] sm:$0xff]
    %v199 = vld [vmem:[#allocation2 + $0x40] sm:$0xff]
    %v200 = vld [vmem:[#allocation2 + $0x48] sm:$0xff]
    %v201 = vld [vmem:[#allocation2 + $0x50] sm:$0xff]
    %v202 = vld [vmem:[#allocation2 + $0x58] sm:$0xff]
    %v203 = vld [vmem:[#allocation2 + $0x60] sm:$0xff]
    %v204 = vld [vmem:[#allocation2 + $0x68] sm:$0xff]
    %v205 = vld [vmem:[#allocation2 + $0x70] sm:$0xff]
    %v206 = vld [vmem:[#allocation2 + $0x78] sm:$0xff]
    %v207 = vld [vmem:[#allocation2 + $0x80] sm:$0xff]
    %v208 = vld [vmem:[#allocation2 + $0x88] sm:$0xff]
    %v209 = vld [vmem:[#allocation2 + $0x90] sm:$0xff]
    %v210 = vld [vmem:[#allocation2 + $0x98] sm:$0xff]
    %v211 = vld [vmem:[#allocation2 + $0xa0] sm:$0xff]
    %v212 = vld [vmem:[#allocation2 + $0xa8] sm:$0xff]
    %v213 = vld [vmem:[#allocation2 + $0xb0] sm:$0xff]
    %v214 = vld [vmem:[#allocation2 + $0xb8] sm:$0xff]
    %v215 = vld [vmem:[#allocation2 + $0xc0] sm:$0xff]
    %v216 = vld [vmem:[#allocation2 + $0xc8] sm:$0xff]
    %v217 = vld [vmem:[#allocation2 + $0xd0] sm:$0xff]
    %v218 = vld [vmem:[#allocation2 + $0xd8] sm:$0xff]
    %v219 = vld [vmem:[#allocation2 + $0xe0] sm:$0xff]
    %v220 = vld [vmem:[#allocation2 + $0xe8] sm:$0xff]
    %v221 = vld [vmem:[#allocation2 + $0xf0] sm:$0xff]
    %v222 = vld [vmem:[#allocation2 + $0xf8] sm:$0xff]
    %v223 = vld [vmem:[#allocation2 + $0x100] sm:$0xff]
    %v224 = vld [vmem:[#allocation2 + $0x108] sm:$0xff]
    %v225 = vld [vmem:[#allocation2 + $0x110] sm:$0xff]
    %v226 = vld [vmem:[#allocation2 + $0x118] sm:$0xff]
    %v227 = vld [vmem:[#allocation2 + $0x120] sm:$0xff]
    %v228 = vld [vmem:[#allocation2 + $0x128] sm:$0xff]
    %v229 = vld [vmem:[#allocation2 + $0x130] sm:$0xff]
    %v230 = vld [vmem:[#allocation2 + $0x138] sm:$0xff]
    %v231 = vld [vmem:[#allocation2 + $0x140] sm:$0xff]
    %v232 = vld [vmem:[#allocation2 + $0x148] sm:$0xff]
    %v233 = vld [vmem:[#allocation2 + $0x150] sm:$0xff]
    %v234 = vld [vmem:[#allocation2 + $0x158] sm:$0xff]
    %v235 = vld [vmem:[#allocation2 + $0x160] sm:$0xff]
    %v236 = vld [vmem:[#allocation2 + $0x168] sm:$0xff]
    %v237 = vld [vmem:[#allocation2 + $0x170] sm:$0xff]
    %v238 = vld [vmem:[#allocation2 + $0x178] sm:$0xff]
    %v239 = vld [vmem:[%s8] sm:$0x3f]
    %v241 = vperm.slane %v239, 0
    %v242 = vperm.slane %v239, 1
    %v243 = vperm.slane %v239, 2
    %v244 = vperm.slane %v239, 3
    %v245 = vperm.slane %v239, 4
    %v246 = vperm.slane %v239, 5
    %v255 = vunpack.c.l.b16 %v187
    %v256 = vunpack.c.l.b16 %v188
    %v257 = vpack.c.b16 %v256, %v255
    %v307 = vunpack.c.l.b16 %v191
    %v308 = vunpack.c.h.b16 %v191
    %v309 = vunpack.c.l.b16 %v192
    %v310 = vunpack.c.h.b16 %v192
    %v311 = vunpack.c.l.b16 %v193
    %v312 = vunpack.c.h.b16 %v193
    %v313 = vunpack.c.l.b16 %v194
    %v314 = vunpack.c.h.b16 %v194
    %v315 = vunpack.c.l.b16 %v195
    %v316 = vunpack.c.h.b16 %v195
    %v317 = vunpack.c.l.b16 %v196
    %v318 = vunpack.c.h.b16 %v196
    %v319 = vunpack.c.l.b16 %v197
    %v320 = vunpack.c.h.b16 %v197
    %v321 = vunpack.c.l.b16 %v198
    %v322 = vunpack.c.h.b16 %v198
    %v323 = vunpack.c.l.b16 %v199
    %v324 = vunpack.c.h.b16 %v199
    %v325 = vunpack.c.l.b16 %v200
    %v326 = vunpack.c.h.b16 %v200
    %v327 = vunpack.c.l.b16 %v201
    %v328 = vunpack.c.h.b16 %v201
    %v329 = vunpack.c.l.b16 %v202
    %v330 = vunpack.c.h.b16 %v202
    %v331 = vunpack.c.l.b16 %v203
    %v332 = vunpack.c.h.b16 %v203
    %v333 = vunpack.c.l.b16 %v204
    %v334 = vunpack.c.h.b16 %v204
    %v335 = vunpack.c.l.b16 %v205
    %v336 = vunpack.c.h.b16 %v205
    %v337 = vunpack.c.l.b16 %v206
    %v338 = vunpack.c.h.b16 %v206
    %v339 = vunpack.c.l.b16 %v207
    %v340 = vunpack.c.h.b16 %v207
    %v341 = vunpack.c.l.b16 %v208
    %v342 = vunpack.c.h.b16 %v208
    %v343 = vunpack.c.l.b16 %v209
    %v344 = vunpack.c.h.b16 %v209
    %v345 = vunpack.c.l.b16 %v210
    %v346 = vunpack.c.h.b16 %v210
    %v347 = vunpack.c.l.b16 %v211
    %v348 = vunpack.c.h.b16 %v211
    %v349 = vunpack.c.l.b16 %v212
    %v350 = vunpack.c.h.b16 %v212
    %v351 = vunpack.c.l.b16 %v213
    %v352 = vunpack.c.h.b16 %v213
    %v353 = vunpack.c.l.b16 %v214
    %v354 = vunpack.c.h.b16 %v214
    %v355 = vunpack.c.l.b16 %v215
    %v356 = vunpack.c.h.b16 %v215
    %v357 = vunpack.c.l.b16 %v216
    %v358 = vunpack.c.h.b16 %v216
    %v359 = vunpack.c.l.b16 %v217
    %v360 = vunpack.c.h.b16 %v217
    %v361 = vunpack.c.l.b16 %v218
    %v362 = vunpack.c.h.b16 %v218
    %v363 = vunpack.c.l.b16 %v219
    %v364 = vunpack.c.h.b16 %v219
    %v365 = vunpack.c.l.b16 %v220
    %v366 = vunpack.c.h.b16 %v220
    %v367 = vunpack.c.l.b16 %v221
    %v368 = vunpack.c.h.b16 %v221
    %v369 = vunpack.c.l.b16 %v222
    %v370 = vunpack.c.h.b16 %v222
    %v371 = vunpack.c.l.b16 %v223
    %v372 = vunpack.c.h.b16 %v223
    %v373 = vunpack.c.l.b16 %v224
    %v374 = vunpack.c.h.b16 %v224
    %v375 = vunpack.c.l.b16 %v225
    %v376 = vunpack.c.h.b16 %v225
    %v377 = vunpack.c.l.b16 %v226
    %v378 = vunpack.c.h.b16 %v226
    %v379 = vunpack.c.l.b16 %v227
    %v380 = vunpack.c.h.b16 %v227
    %v381 = vunpack.c.l.b16 %v228
    %v382 = vunpack.c.h.b16 %v228
    %v383 = vunpack.c.l.b16 %v229
    %v384 = vunpack.c.h.b16 %v229
    %v385 = vunpack.c.l.b16 %v230
    %v386 = vunpack.c.h.b16 %v230
    %v387 = vunpack.c.l.b16 %v231
    %v388 = vunpack.c.h.b16 %v231
    %v389 = vunpack.c.l.b16 %v232
    %v390 = vunpack.c.h.b16 %v232
    %v391 = vunpack.c.l.b16 %v233
    %v392 = vunpack.c.h.b16 %v233
    %v393 = vunpack.c.l.b16 %v234
    %v394 = vunpack.c.h.b16 %v234
    %v395 = vunpack.c.l.b16 %v235
    %v396 = vunpack.c.h.b16 %v235
    %v397 = vunpack.c.l.b16 %v236
    %v398 = vunpack.c.h.b16 %v236
    %v399 = vunpack.c.l.b16 %v237
    %v400 = vunpack.c.h.b16 %v237
    %v401 = vunpack.c.l.b16 %v238
    %v402 = vunpack.c.h.b16 %v238
    %v403 = vpack.c.b16 %v313, %v307
    %v404 = vpack.c.b16 %v314, %v308
    %v405 = vpack.c.b16 %v315, %v309
    %v406 = vpack.c.b16 %v316, %v310
    %v407 = vpack.c.b16 %v317, %v311
    %v408 = vpack.c.b16 %v318, %v312
    %v409 = vpack.c.b16 %v325, %v319
    %v410 = vpack.c.b16 %v326, %v320
    %v411 = vpack.c.b16 %v327, %v321
    %v412 = vpack.c.b16 %v328, %v322
    %v413 = vpack.c.b16 %v329, %v323
    %v414 = vpack.c.b16 %v330, %v324
    %v415 = vpack.c.b16 %v337, %v331
    %v416 = vpack.c.b16 %v338, %v332
    %v417 = vpack.c.b16 %v339, %v333
    %v418 = vpack.c.b16 %v340, %v334
    %v419 = vpack.c.b16 %v341, %v335
    %v420 = vpack.c.b16 %v342, %v336
    %v421 = vpack.c.b16 %v349, %v343
    %v422 = vpack.c.b16 %v350, %v344
    %v423 = vpack.c.b16 %v351, %v345
    %v424 = vpack.c.b16 %v352, %v346
    %v425 = vpack.c.b16 %v353, %v347
    %v426 = vpack.c.b16 %v354, %v348
    %v427 = vpack.c.b16 %v361, %v355
    %v428 = vpack.c.b16 %v362, %v356
    %v429 = vpack.c.b16 %v363, %v357
    %v430 = vpack.c.b16 %v364, %v358
    %v431 = vpack.c.b16 %v365, %v359
    %v432 = vpack.c.b16 %v366, %v360
    %v433 = vpack.c.b16 %v373, %v367
    %v434 = vpack.c.b16 %v374, %v368
    %v435 = vpack.c.b16 %v375, %v369
    %v436 = vpack.c.b16 %v376, %v370
    %v437 = vpack.c.b16 %v377, %v371
    %v438 = vpack.c.b16 %v378, %v372
    %v439 = vpack.c.b16 %v385, %v379
    %v440 = vpack.c.b16 %v386, %v380
    %v441 = vpack.c.b16 %v387, %v381
    %v442 = vpack.c.b16 %v388, %v382
    %v443 = vpack.c.b16 %v389, %v383
    %v444 = vpack.c.b16 %v390, %v384
    %v445 = vpack.c.b16 %v397, %v391
    %v446 = vpack.c.b16 %v398, %v392
    %v447 = vpack.c.b16 %v399, %v393
    %v448 = vpack.c.b16 %v400, %v394
    %v449 = vpack.c.b16 %v401, %v395
    %v450 = vpack.c.b16 %v402, %v396
    %499 = vmatpush.bf16.msra.mxu0 %v445
    %500 = vmatpush.bf16.msra.mxu0 %v439
    %501 = vmatpush.bf16.msra.mxu0 %v433
    %502 = vmatpush.bf16.msra.mxu0 %v427
    %503 = vmatpush.bf16.msra.mxu0 %v421
    %504 = vmatpush.bf16.msra.mxu0 %v415
    %505 = vmatpush.bf16.msra.mxu0 %v409
    %506 = vmatpush.bf16.msra.mxu0 %v403
    %507 = vmatmul.bf16.gmra.mxu0 %v257
    %v508 = vpop.f32.mrf.mxu0
    %v509 = vadd.f32 %v241, %v508
    %v510 = vpop.f32.mrf.mxu0
    %v511 = vadd.f32 %v241, %v510
    %512 = vdwg.mxu0
    %513 = vmatpush.bf16.msra.mxu0 %v446
    %514 = vmatpush.bf16.msra.mxu0 %v440
    %515 = vmatpush.bf16.msra.mxu0 %v434
    %516 = vmatpush.bf16.msra.mxu0 %v428
    %517 = vmatpush.bf16.msra.mxu0 %v422
    %518 = vmatpush.bf16.msra.mxu0 %v416
    %519 = vmatpush.bf16.msra.mxu0 %v410
    %520 = vmatpush.bf16.msra.mxu0 %v404
    %521 = vmatmul.bf16.gmra.mxu0 %v257
    %v522 = vpop.f32.mrf.mxu0
    %v523 = vadd.f32 %v242, %v522
    %v524 = vpop.f32.mrf.mxu0
    %v525 = vadd.f32 %v242, %v524
    %526 = vdwg.mxu0
    %527 = vmatpush.bf16.msra.mxu0 %v447
    %528 = vmatpush.bf16.msra.mxu0 %v441
    %529 = vmatpush.bf16.msra.mxu0 %v435
    %530 = vmatpush.bf16.msra.mxu0 %v429
    %531 = vmatpush.bf16.msra.mxu0 %v423
    %532 = vmatpush.bf16.msra.mxu0 %v417
    %533 = vmatpush.bf16.msra.mxu0 %v411
    %534 = vmatpush.bf16.msra.mxu0 %v405
    %535 = vmatmul.bf16.gmra.mxu0 %v257
    %v536 = vpop.f32.mrf.mxu0
    %v537 = vadd.f32 %v243, %v536
    %v538 = vpop.f32.mrf.mxu0
    %v539 = vadd.f32 %v243, %v538
    %540 = vdwg.mxu0
    %541 = vmatpush.bf16.msra.mxu0 %v448
    %542 = vmatpush.bf16.msra.mxu0 %v442
    %543 = vmatpush.bf16.msra.mxu0 %v436
    %544 = vmatpush.bf16.msra.mxu0 %v430
    %545 = vmatpush.bf16.msra.mxu0 %v424
    %546 = vmatpush.bf16.msra.mxu0 %v418
    %547 = vmatpush.bf16.msra.mxu0 %v412
    %548 = vmatpush.bf16.msra.mxu0 %v406
    %549 = vmatmul.bf16.gmra.mxu0 %v257
    %v550 = vpop.f32.mrf.mxu0
    %v551 = vadd.f32 %v244, %v550
    %v552 = vpop.f32.mrf.mxu0
    %v553 = vadd.f32 %v244, %v552
    %554 = vdwg.mxu0
    %555 = vmatpush.bf16.msra.mxu0 %v449
    %556 = vmatpush.bf16.msra.mxu0 %v443
    %557 = vmatpush.bf16.msra.mxu0 %v437
    %558 = vmatpush.bf16.msra.mxu0 %v431
    %559 = vmatpush.bf16.msra.mxu0 %v425
    %560 = vmatpush.bf16.msra.mxu0 %v419
    %561 = vmatpush.bf16.msra.mxu0 %v413
    %562 = vmatpush.bf16.msra.mxu0 %v407
    %563 = vmatmul.bf16.gmra.mxu0 %v257
    %v564 = vpop.f32.mrf.mxu0
    %v565 = vadd.f32 %v245, %v564
    %v566 = vpop.f32.mrf.mxu0
    %v567 = vadd.f32 %v245, %v566
    %568 = vdwg.mxu0
    %569 = vmatpush.bf16.msra.mxu0 %v450
    %570 = vmatpush.bf16.msra.mxu0 %v444
    %571 = vmatpush.bf16.msra.mxu0 %v438
    %572 = vmatpush.bf16.msra.mxu0 %v432
    %573 = vmatpush.bf16.msra.mxu0 %v426
    %574 = vmatpush.bf16.msra.mxu0 %v420
    %575 = vmatpush.bf16.msra.mxu0 %v414
    %576 = vmatpush.bf16.msra.mxu0 %v408
    %577 = vmatmul.bf16.gmra.mxu0 %v257
    %v578 = vpop.f32.mrf.mxu0
    %v579 = vadd.f32 %v246, %v578
    %v580 = vpop.f32.mrf.mxu0
    %v581 = vadd.f32 %v246, %v580
    %582 = vdwg.mxu0
    %583 = vst [vmem:[%s10] sm:$0xff] %v509
    %584 = vst [vmem:[%s10 + $0x8] sm:$0xff] %v523
    %585 = vst [vmem:[%s10 + $0x10] sm:$0xff] %v537
    %586 = vst [vmem:[%s10 + $0x18] sm:$0xff] %v511
    %587 = vst [vmem:[%s10 + $0x20] sm:$0xff] %v525
    %588 = vst [vmem:[%s10 + $0x28] sm:$0xff] %v539
    %s589 = scalar_lea.vmem %s10, 48
    %590 = vst [vmem:[%s589] sm:$0xff] %v551
    %591 = vst [vmem:[%s589 + $0x8] sm:$0xff] %v565
    %592 = vst [vmem:[%s589 + $0x10] sm:$0xff] %v579
    %593 = vst [vmem:[%s589 + $0x18] sm:$0xff] %v553
    %594 = vst [vmem:[%s589 + $0x20] sm:$0xff] %v567
    %595 = vst [vmem:[%s589 + $0x28] sm:$0xff] %v581
    // Predicated region
    $region42: #{_lambda_.4} parent=1 // pred_check
      _
    $region43: #{_lambda_.4} parent=1 // pred_check_branch
      %597 = sbr.rel (0) target = $region45
    $region44: #{_lambda_.4} parent=1 // pred_region
      _
    $region45: #{_lambda_.4} parent=1 // pred_fallthru
      _
    // Predicated region
    $region46: #{_lambda_.4} parent=1 // pred_check
      _
    $region47: #{_lambda_.4} parent=1 // pred_check_branch
      %599 = sbr.rel (0) target = $region49
    $region48: #{_lambda_.4} parent=1 // pred_region
      _
    $region49: #{_lambda_.4} parent=1 // pred_fallthru
      _
    // Predicated region
    $region50: #{_lambda_.4} parent=1 // pred_check
      _
    $region51: #{_lambda_.4} parent=1 // pred_check_branch
      %601 = sbr.rel (0) target = $region53
    $region52: #{_lambda_.4} parent=1 // pred_region
      _
    $region53: #{_lambda_.4} parent=1 // pred_fallthru
      _
    // Predicated region
    $region54: #{_lambda_.4} parent=1 // pred_check
      _
    $region55: #{_lambda_.4} parent=1 // pred_check_branch
      %603 = sbr.rel (0) target = $region57
    $region56: #{_lambda_.4} parent=1 // pred_region
      _
    $region57: #{_lambda_.4} parent=1 // pred_fallthru
      _
    %604 = vsyncpa [#allocation3], 1

// kernel: _lambda_.5
$region0: #{_lambda_.5}
  #allocation0 [shape = 'u32[]', space=smem, size = 0x4, offset = 0x4, fixed_abs, tag = 'smem constant byte address 0x4 - core index']
  #allocation1 [shape = 'u32[72,128]{1,0:T(1,128)}', space=vmem, size = 0x9000, scoped, tag = 'internal scratch']
  #allocation2 [shape = 'f32[2,2,128]{2,1,0:T(2,128)}', space=vmem, size = 0x800, scoped, tag = 'scratch operand']
  %s0 = inlined_call_operand.vmem [shape: f32[2,8,2,384], index: 0, kind: input, shape index: {}]
  %s1 = inlined_call_operand.hbm [shape: bf16[2,128,384], index: 1, kind: input, shape index: {}]
  %s2 = inlined_call_operand.vmem [shape: f32[2,1,384], index: 2, kind: input, shape index: {}]
  %s3 = inlined_call_operand.vmem [shape: bf16[2,8,2,128], index: 3, kind: output, shape index: {}]
  %s4 = sld [smem:[#allocation0]]
  $region53: #{_lambda_.5} parent=0
    _
  %s6 = ssub.s32 1, %s4
  %s7 = scalar_select 0, %s6, %s4
  $region1: #{_lambda_.5} parent=0
    #allocation3 [shape = 'u8[196608]{0}', space=vmem, size = 0x30000, scoped, tag = 'input window, operand 1']
    #allocation4 [shape = 's32[2]{0}', space=sflag, size = 0x8, scoped, tag = 'scoped memory for _lambda_.5']
    %8 = vsyncpa [#allocation4], 0
    %s9 = scalar_lea.sflag [#allocation4], 1
    %10 = vsyncpa %s9, 0
    loop: start=0, step=1, limit=4
    $region2: #{_lambda_.5} parent=1 // loop_pre_header
      _
    $region3: #{_lambda_.5} parent=1 // loop_header
      %s12 = sphi 0, %s16
      %p13 = scmp.ge.s32.totalorder %s12, 4
      %s19 = sphi 0, %s31
      %s20 = sphi 0, %s27
      %s21 = sphi 0, %s19
      %s22 = sphi 0, %s20
      %s23 = sphi 0, %s21
      %s24 = sphi 0, %s22
      %s36 = sphi 0, %s38
      %s39 = sphi 0, %s36
      %s40 = sphi 0, %s39
      %s56 = sphi 0, %s40
      %s62 = sphi 0, %s64
      %s65 = sphi 0, %s62
      %s66 = sphi 0, %s65
      %s82 = sphi 0, %s66
      %s88 = sphi 0, %s90
      %s91 = sphi 0, %s88
      %s92 = sphi 0, %s91
      %s108 = sphi 0, %s92
      %s116 = sphi 0, %s118
      %s119 = sphi 0, %s116
      %s120 = sphi 0, %s119
      %s136 = sphi 0, %s120
    $region4: #{_lambda_.5} parent=1 // loop_header_branch
      %15 = sbr.rel (%p13) target = $region8
    $region5: #{_lambda_.5} parent=1 // loop_body
      %s17 = ssub.s32 %s12, 1
      %s18 = ssub.s32 %s12, 2
      %s25 = sadd.s32 1, %s20
      %p26 = scmp.ge.s32.totalorder %s25, 1
      %s27 = scalar_select %p26, 0, %s25
      %s28 = sadd.s32 1, %s19
      %s29 = scalar_select %p26, %s28, %s19
      %p30 = scmp.ge.s32.totalorder %s29, 2
      %s31 = scalar_select %p30, 0, %s29
      %s32 = ssub.s32 %s19, %s31
      %s33 = ssub.s32 %s20, %s27
      %s34 = sor.u32 %s32, %s33
      %p35 = scmp.eq.s32.totalorder %s34, 0
      %s37 = sadd.s32 %s36, 1
      %s38 = scalar_select %p35, %s36, %s37
      %p41 = pneg %p35
      %p42 = scmp.eq.s32.totalorder %s12, 1
      %p43 = por %p41, %p42
      %p44 = scmp.ne.s32.totalorder %s36, %s39
      %p45 = scmp.eq.s32.totalorder %s12, 0
      %p46 = por %p44, %p45
      %p47 = scmp.ne.s32.totalorder %s36, %s39
      %p48 = scmp.eq.s32.totalorder %s17, 1
      %p49 = por %p47, %p48
      %p50 = scmp.ne.s32.totalorder %s39, %s40
      %p51 = scmp.eq.s32.totalorder %s17, 0
      %p52 = por %p50, %p51
      %p53 = scmp.ne.s32.totalorder %s39, %s40
      %p54 = scmp.eq.s32.totalorder %s18, 1
      %p55 = por %p53, %p54
      %p57 = scmp.ne.s32.totalorder %s40, %s56
      %p58 = scmp.eq.s32.totalorder %s18, 0
      %p59 = por %p57, %p58
      %s60 = ssub.s32 %s19, %s31
      %p61 = scmp.eq.s32.totalorder %s60, 0
      %s63 = sadd.s32 %s62, 1
      %s64 = scalar_select %p61, %s62, %s63
      %p67 = pneg %p61
      %p68 = scmp.eq.s32.totalorder %s12, 1
      %p69 = por %p67, %p68
      %p70 = scmp.ne.s32.totalorder %s62, %s65
      %p71 = scmp.eq.s32.totalorder %s12, 0
      %p72 = por %p70, %p71
      %p73 = scmp.ne.s32.totalorder %s62, %s65
      %p74 = scmp.eq.s32.totalorder %s17, 1
      %p75 = por %p73, %p74
      %p76 = scmp.ne.s32.totalorder %s65, %s66
      %p77 = scmp.eq.s32.totalorder %s17, 0
      %p78 = por %p76, %p77
      %p79 = scmp.ne.s32.totalorder %s65, %s66
      %p80 = scmp.eq.s32.totalorder %s18, 1
      %p81 = por %p79, %p80
      %p83 = scmp.ne.s32.totalorder %s66, %s82
      %p84 = scmp.eq.s32.totalorder %s18, 0
      %p85 = por %p83, %p84
      %s86 = ssub.s32 %s19, %s31
      %p87 = scmp.eq.s32.totalorder %s86, 0
      %s89 = sadd.s32 %s88, 1
      %s90 = scalar_select %p87, %s88, %s89
      %p93 = pneg %p87
      %p94 = scmp.eq.s32.totalorder %s12, 1
      %p95 = por %p93, %p94
      %p96 = scmp.ne.s32.totalorder %s88, %s91
      %p97 = scmp.eq.s32.totalorder %s12, 0
      %p98 = por %p96, %p97
      %p99 = scmp.ne.s32.totalorder %s88, %s91
      %p100 = scmp.eq.s32.totalorder %s17, 1
      %p101 = por %p99, %p100
      %p102 = scmp.ne.s32.totalorder %s91, %s92
      %p103 = scmp.eq.s32.totalorder %s17, 0
      %p104 = por %p102, %p103
      %p105 = scmp.ne.s32.totalorder %s91, %s92
      %p106 = scmp.eq.s32.totalorder %s18, 1
      %p107 = por %p105, %p106
      %p109 = scmp.ne.s32.totalorder %s92, %s108
      %p110 = scmp.eq.s32.totalorder %s18, 0
      %p111 = por %p109, %p110
      %s112 = ssub.s32 %s19, %s31
      %s113 = ssub.s32 %s20, %s27
      %s114 = sor.u32 %s112, %s113
      %p115 = scmp.eq.s32.totalorder %s114, 0
      %s117 = sadd.s32 %s116, 1
      %s118 = scalar_select %p115, %s116, %s117
      %p121 = pneg %p115
      %p122 = scmp.eq.s32.totalorder %s12, 1
      %p123 = por %p121, %p122
      %p124 = scmp.ne.s32.totalorder %s116, %s119
      %p125 = scmp.eq.s32.totalorder %s12, 0
      %p126 = por %p124, %p125
      %p127 = scmp.ne.s32.totalorder %s116, %s119
      %p128 = scmp.eq.s32.totalorder %s17, 1
      %p129 = por %p127, %p128
      %p130 = scmp.ne.s32.totalorder %s119, %s120
      %p131 = scmp.eq.s32.totalorder %s17, 0
      %p132 = por %p130, %p131
      %p133 = scmp.ne.s32.totalorder %s119, %s120
      %p134 = scmp.eq.s32.totalorder %s18, 1
      %p135 = por %p133, %p134
      %p137 = scmp.ne.s32.totalorder %s120, %s136
      %p138 = scmp.eq.s32.totalorder %s18, 0
      %p139 = por %p137, %p138
      %p140 = scmp.le.s32.totalorder 1, %s12
      %p141 = scmp.lt.s32.totalorder %s12, 3
      %p142 = pnand %p140, %p141
      %p143 = pneg %p142
      // Predicated region
      $region9: #{_lambda_.5} parent=5 // pred_check
        _
      $region10: #{_lambda_.5} parent=5 // pred_check_branch
        %145 = sbr.rel (%p142) target = $region12
      $region11: #{_lambda_.5} parent=5 // pred_region
        %s146 = ssub.s32 %s12, 1
      $region12: #{_lambda_.5} parent=5 // pred_fallthru
        _
      %p147 = scmp.lt.s32.totalorder %s12, 2
      // Predicated region
      $region13: #{_lambda_.5} parent=5 // pred_check
        %p148 = pneg %p147
      $region14: #{_lambda_.5} parent=5 // pred_check_branch
        %150 = sbr.rel (%p148) target = $region16
      $region15: #{_lambda_.5} parent=5 // pred_region
        // Predicated region
        $region17: #{_lambda_.5} parent=15 // pred_check
          %p151 = pneg %p46
        $region18: #{_lambda_.5} parent=15 // pred_check_branch
          %153 = sbr.rel (%p151) target = $region20
        $region19: #{_lambda_.5} parent=15 // pred_region
          %s154 = smul.u32 8, %s20
          %p155 = scmp.lt.s32.totalorder %s19, 1
          %s156 = scalar_select %p155, %s19, 1
          %p157 = scmp.lt.s32.totalorder %s154, 7
          %s158 = scalar_select %p157, %s154, 7
          %s159 = smul.addr %s158, 3
          %s160 = smul.addr %s156, 24
          %s161 = sadd.s32 %s159, %s160
          %s162 = smul.addr %s161, 2
          %s163 = scalar_lea.vmem %s0, %s162
          %s164 = smul.u32 8, %s20
        $region20: #{_lambda_.5} parent=15 // pred_fallthru
          _
        // Predicated region
        $region21: #{_lambda_.5} parent=15 // pred_check
          %p165 = pneg %p72
        $region22: #{_lambda_.5} parent=15 // pred_check_branch
          %167 = sbr.rel (%p165) target = $region24
        $region23: #{_lambda_.5} parent=15 // pred_region
          %s168 = sand.u32 %s62, 1
          %s169 = scalar_lea.sflag [#allocation4], %s168
          %s170 = sand.u32 %s62, 1
          %s171 = smul.addr %s170, 192
          %s172 = scalar_lea.vmem [#allocation3], %s171
          %174 = vsyncadd %s169, 0
          %s175 = smul.addr %s19, 48
          %s176 = smul.addr %s175, 4
          %s177 = scalar_lea.hbm %s1, %s176
          %s178 = sshll.u32 %s177, 4
          %s179 = int_to_ptr.hbm [resolvable:$true] %s178
          %s180 = sshll.u32 %s172, 4
          %s181 = int_to_ptr.vmem [resolvable:$true] %s180
          %186 = dma.hbm_to_vmem [thread:$0]  %s179, 3072, %s181, %s169, 192, 192, 12
        $region24: #{_lambda_.5} parent=15 // pred_fallthru
          _
        // Predicated region
        $region25: #{_lambda_.5} parent=15 // pred_check
          %p187 = pneg %p98
        $region26: #{_lambda_.5} parent=15 // pred_check_branch
          %189 = sbr.rel (%p187) target = $region28
        $region27: #{_lambda_.5} parent=15 // pred_region
          %p190 = scmp.lt.s32.totalorder %s19, 1
          %s191 = scalar_select %p190, %s19, 1
          %s192 = smul.addr %s191, 3
          %s193 = scalar_lea.vmem %s2, %s192
        $region28: #{_lambda_.5} parent=15 // pred_fallthru
          _
      $region16: #{_lambda_.5} parent=5 // pred_fallthru
        _
      %p194 = scmp.le.s32.totalorder 1, %s12
      %p195 = scmp.lt.s32.totalorder %s12, 3
      %p196 = pnand %p194, %p195
      %p197 = pneg %p196
      // Predicated region
      $region29: #{_lambda_.5} parent=5 // pred_check
        _
      $region30: #{_lambda_.5} parent=5 // pred_check_branch
        %199 = sbr.rel (%p196) target = $region32
      $region31: #{_lambda_.5} parent=5 // pred_region
        %s200 = ssub.s32 %s12, 1
        %s201 = sand.u32 %s65, 1
        %s202 = scalar_lea.sflag [#allocation4], %s201
        %s203 = sand.u32 %s65, 1
        %s204 = smul.addr %s203, 192
        %s205 = scalar_lea.vmem [#allocation3], %s204
        // Predicated region
        $region33: #{_lambda_.5} parent=31 // pred_check
          %p206 = pneg %p78
        $region34: #{_lambda_.5} parent=31 // pred_check_branch
          %208 = sbr.rel (%p206) target = $region36
        $region35: #{_lambda_.5} parent=31 // pred_region
          %210 = dma.done %s202, 3072
        $region36: #{_lambda_.5} parent=31 // pred_fallthru
          _
        %s211 = smul.u32 8, %s22
        %p212 = scmp.lt.s32.totalorder %s21, 1
        %s213 = scalar_select %p212, %s21, 1
        %p214 = scmp.lt.s32.totalorder %s211, 7
        %s215 = scalar_select %p214, %s211, 7
        %s216 = smul.addr %s215, 3
        %s217 = smul.addr %s213, 24
        %s218 = sadd.s32 %s216, %s217
        %s219 = smul.addr %s218, 2
        %s220 = scalar_lea.vmem %s0, %s219
        %p221 = pneg %p52
        %p222 = pneg %p49
        %s223 = sand.u32 %s65, 1
        %s224 = scalar_lea.sflag [#allocation4], %s223
        %s225 = sand.u32 %s65, 1
        %s226 = smul.addr %s225, 192
        %s227 = scalar_lea.vmem [#allocation3], %s226
        %p228 = pneg %p78
        %p229 = pneg %p75
        %p230 = scmp.lt.s32.totalorder %s21, 1
        %s231 = scalar_select %p230, %s21, 1
        %s232 = smul.addr %s231, 3
        %s233 = scalar_lea.vmem %s2, %s232
        %p234 = pneg %p104
        %p235 = pneg %p101
        %p236 = pneg %p132
        %p237 = pneg %p129
        %s238 = smul.u32 8, %s22
        %p239 = scmp.lt.s32.totalorder %s21, 1
        %s240 = scalar_select %p239, %s21, 1
        %p241 = scmp.lt.s32.totalorder %s238, 7
        %s242 = scalar_select %p241, %s238, 7
        %s243 = smul.addr %s240, 8
        %s244 = sadd.s32 %s242, %s243
        %s245 = scalar_lea.vmem %s3, %s244
        %s246 = smul.u32 8, %s22
        %p247 = scmp.lt.s32.totalorder %s21, 1
        %s248 = scalar_select %p247, %s21, 1
        %p249 = scmp.lt.s32.totalorder %s246, 7
        %s250 = scalar_select %p249, %s246, 7
        %s251 = smul.addr %s250, 3
        %s252 = smul.addr %s248, 24
        %s253 = sadd.s32 %s251, %s252
        %s254 = smul.addr %s253, 2
        %s255 = scalar_lea.vmem %s0, %s254
        %s256 = smul.u32 8, %s22
        %p257 = scmp.lt.s32.totalorder %s21, 1
        %s258 = scalar_select %p257, %s21, 1
        %s259 = smul.addr %s258, 3
        %s260 = scalar_lea.vmem %s2, %s259
        %s261 = smul.u32 8, %s22
        %p262 = scmp.lt.s32.totalorder %s21, 1
        %s263 = scalar_select %p262, %s21, 1
        %p264 = scmp.lt.s32.totalorder %s261, 7
        %s265 = scalar_select %p264, %s261, 7
        %s266 = smul.addr %s263, 8
        %s267 = sadd.s32 %s265, %s266
        %s268 = scalar_lea.vmem %s3, %s267
        %s269 = smul.u32 8, %s22
        %p270 = scmp.eq.s32.totalorder %s22, 0
        // Predicated region
        $region37: #{_lambda_.5} parent=31 // pred_check
          %p271 = pneg %p270
        $region38: #{_lambda_.5} parent=31 // pred_check_branch
          %273 = sbr.rel (%p271) target = $region40
        $region39: #{_lambda_.5} parent=31 // pred_region
          %s274 = smul.u32 %s21, 2
          %s275 = scalar_lea.vmem [#allocation2], %s274
          %276 = vst [vmem:[%s275] sm:$0x3] 0.0
        $region40: #{_lambda_.5} parent=31 // pred_fallthru
          _
        %v277 = vld [vmem:[%s205] sm:$0xff]
        %v278 = vld [vmem:[%s205 + $0x8] sm:$0xf]
        %v279 = vld [vmem:[%s205 + $0xc] sm:$0xff]
        %v280 = vld [vmem:[%s205 + $0x14] sm:$0xf]
        %v281 = vld [vmem:[%s205 + $0x18] sm:$0xff]
        %v282 = vld [vmem:[%s205 + $0x20] sm:$0xf]
        %v283 = vld [vmem:[%s205 + $0x24] sm:$0xff]
        %v284 = vld [vmem:[%s205 + $0x2c] sm:$0xf]
        %v285 = vld [vmem:[%s205 + $0x30] sm:$0xff]
        %v286 = vld [vmem:[%s205 + $0x38] sm:$0xf]
        %v287 = vld [vmem:[%s205 + $0x3c] sm:$0xff]
        %v288 = vld [vmem:[%s205 + $0x44] sm:$0xf]
        %v289 = vld [vmem:[%s205 + $0x48] sm:$0xff]
        %v290 = vld [vmem:[%s205 + $0x50] sm:$0xf]
        %v291 = vld [vmem:[%s205 + $0x54] sm:$0xff]
        %v292 = vld [vmem:[%s205 + $0x5c] sm:$0xf]
        %v293 = vld [vmem:[%s205 + $0x60] sm:$0xff]
        %v294 = vld [vmem:[%s205 + $0x68] sm:$0xf]
        %v295 = vld [vmem:[%s205 + $0x6c] sm:$0xff]
        %v296 = vld [vmem:[%s205 + $0x74] sm:$0xf]
        %v297 = vld [vmem:[%s205 + $0x78] sm:$0xff]
        %v298 = vld [vmem:[%s205 + $0x80] sm:$0xf]
        %v299 = vld [vmem:[%s205 + $0x84] sm:$0xff]
        %v300 = vld [vmem:[%s205 + $0x8c] sm:$0xf]
        %v301 = vld [vmem:[%s205 + $0x90] sm:$0xff]
        %v302 = vld [vmem:[%s205 + $0x98] sm:$0xf]
        %v303 = vld [vmem:[%s205 + $0x9c] sm:$0xff]
        %v304 = vld [vmem:[%s205 + $0xa4] sm:$0xf]
        %v305 = vld [vmem:[%s205 + $0xa8] sm:$0xff]
        %v306 = vld [vmem:[%s205 + $0xb0] sm:$0xf]
        %v307 = vld [vmem:[%s205 + $0xb4] sm:$0xff]
        %v308 = vld [vmem:[%s205 + $0xbc] sm:$0xf]
        %v309 = vld [vmem:[%s260] sm:$0x7]
        %p310 = scmp.eq.s32.totalorder %s21, 0
        %s311 = smul.u32 %s21, 2
        %s312 = scalar_lea.vmem [#allocation2], %s311
        %v313 = vld [vmem:[%s312] sm:$0x3]
        %v314 = vld [vmem:[%s255] sm:$0x3f]
        %v315 = vpack.c.bf16 %v313, %v313
        %v317 = vperm.slane %v309, 0
        %v318 = vperm.slane %v309, 1
        %v319 = vperm.slane %v309, 2
        %v355 = vunpack.c.l.b16 %v277
        %v356 = vunpack.c.h.b16 %v277
        %v357 = vunpack.c.l.b16 %v278
        %v358 = vunpack.c.l.b16 %v279
        %v359 = vunpack.c.h.b16 %v279
        %v360 = vunpack.c.l.b16 %v280
        %v361 = vunpack.c.l.b16 %v281
        %v362 = vunpack.c.h.b16 %v281
        %v363 = vunpack.c.l.b16 %v282
        %v364 = vunpack.c.l.b16 %v283
        %v365 = vunpack.c.h.b16 %v283
        %v366 = vunpack.c.l.b16 %v284
        %v367 = vunpack.c.l.b16 %v285
        %v368 = vunpack.c.h.b16 %v285
        %v369 = vunpack.c.l.b16 %v286
        %v370 = vunpack.c.l.b16 %v287
        %v371 = vunpack.c.h.b16 %v287
        %v372 = vunpack.c.l.b16 %v288
        %v373 = vunpack.c.l.b16 %v289
        %v374 = vunpack.c.h.b16 %v289
        %v375 = vunpack.c.l.b16 %v290
        %v376 = vunpack.c.l.b16 %v291
        %v377 = vunpack.c.h.b16 %v291
        %v378 = vunpack.c.l.b16 %v292
        %v379 = vunpack.c.l.b16 %v293
        %v380 = vunpack.c.h.b16 %v293
        %v381 = vunpack.c.l.b16 %v294
        %v382 = vunpack.c.l.b16 %v295
        %v383 = vunpack.c.h.b16 %v295
        %v384 = vunpack.c.l.b16 %v296
        %v385 = vunpack.c.l.b16 %v297
        %v386 = vunpack.c.h.b16 %v297
        %v387 = vunpack.c.l.b16 %v298
        %v388 = vunpack.c.l.b16 %v299
        %v389 = vunpack.c.h.b16 %v299
        %v390 = vunpack.c.l.b16 %v300
        %v391 = vunpack.c.l.b16 %v301
        %v392 = vunpack.c.h.b16 %v301
        %v393 = vunpack.c.l.b16 %v302
        %v394 = vunpack.c.l.b16 %v303
        %v395 = vunpack.c.h.b16 %v303
        %v396 = vunpack.c.l.b16 %v304
        %v397 = vunpack.c.l.b16 %v305
        %v398 = vunpack.c.h.b16 %v305
        %v399 = vunpack.c.l.b16 %v306
        %v400 = vunpack.c.l.b16 %v307
        %v401 = vunpack.c.h.b16 %v307
        %v402 = vunpack.c.l.b16 %v308
        %v403 = vpack.c.b16 %v358, %v355
        %v404 = vpack.c.b16 %v359, %v356
        %v405 = vpack.c.b16 %v360, %v357
        %v406 = vpack.c.b16 %v364, %v361
        %v407 = vpack.c.b16 %v365, %v362
        %v408 = vpack.c.b16 %v366, %v363
        %v409 = vpack.c.b16 %v370, %v367
        %v410 = vpack.c.b16 %v371, %v368
        %v411 = vpack.c.b16 %v372, %v369
        %v412 = vpack.c.b16 %v376, %v373
        %v413 = vpack.c.b16 %v377, %v374
        %v414 = vpack.c.b16 %v378, %v375
        %v415 = vpack.c.b16 %v382, %v379
        %v416 = vpack.c.b16 %v383, %v380
        %v417 = vpack.c.b16 %v384, %v381
        %v418 = vpack.c.b16 %v388, %v385
        %v419 = vpack.c.b16 %v389, %v386
        %v420 = vpack.c.b16 %v390, %v387
        %v421 = vpack.c.b16 %v394, %v391
        %v422 = vpack.c.b16 %v395, %v392
        %v423 = vpack.c.b16 %v396, %v393
        %v424 = vpack.c.b16 %v400, %v397
        %v425 = vpack.c.b16 %v401, %v398
        %v426 = vpack.c.b16 %v402, %v399
        %451 = vmatpush.bf16.msra.mxu0 %v424
        %452 = vmatpush.bf16.msra.mxu0 %v421
        %453 = vmatpush.bf16.msra.mxu0 %v418
        %454 = vmatpush.bf16.msra.mxu0 %v415
        %455 = vmatpush.bf16.msra.mxu0 %v412
        %456 = vmatpush.bf16.msra.mxu0 %v409
        %457 = vmatpush.bf16.msra.mxu0 %v406
        %458 = vmatpush.bf16.msra.mxu0 %v403
        %459 = vmatmul.bf16.gmra.mxu0 %v315
        %v460 = vpop.f32.mrf.mxu0
        %v461 = vadd.f32 %v317, %v460
        %v462 = vpop.f32.mrf.mxu0
        %463 = vdwg.mxu0
        %464 = vmatpush.bf16.msra.mxu0 %v425
        %465 = vmatpush.bf16.msra.mxu0 %v422
        %466 = vmatpush.bf16.msra.mxu0 %v419
        %467 = vmatpush.bf16.msra.mxu0 %v416
        %468 = vmatpush.bf16.msra.mxu0 %v413
        %469 = vmatpush.bf16.msra.mxu0 %v410
        %470 = vmatpush.bf16.msra.mxu0 %v407
        %471 = vmatpush.bf16.msra.mxu0 %v404
        %472 = vmatmul.bf16.gmra.mxu0 %v315
        %v473 = vpop.f32.mrf.mxu0
        %v474 = vadd.f32 %v318, %v473
        %v475 = vpop.f32.mrf.mxu0
        %476 = vdwg.mxu0
        %477 = vmatpush.bf16.msra.mxu0 %v426
        %478 = vmatpush.bf16.msra.mxu0 %v423
        %479 = vmatpush.bf16.msra.mxu0 %v420
        %480 = vmatpush.bf16.msra.mxu0 %v417
        %481 = vmatpush.bf16.msra.mxu0 %v414
        %482 = vmatpush.bf16.msra.mxu0 %v411
        %483 = vmatpush.bf16.msra.mxu0 %v408
        %484 = vmatpush.bf16.msra.mxu0 %v405
        %485 = vmatmul.bf16.gmra.mxu0 %v315
        %v486 = vpop.f32.mrf.mxu0
        %v487 = vadd.f32 %v319, %v486
        %v488 = vpop.f32.mrf.mxu0
        %489 = vdwg.mxu0
        %v490 = vadd.f32 %v314, %v461
        %v491 = vxor.u32 %v490, 2147483648
        %v492 = vmul.f32 %v491, 1.442695
        %v493 = vpow.pop %v492
        %v494 = vadd.f32 %v493, 1.0
        %v495 = vrcp.pop %v494
        %v496 = vmul.f32 %v494, %v495
        %v497 = vsub.f32 1.0, %v496
        %v498 = vmul.f32 %v495, %v497
        %v499 = vadd.f32 %v495, %v498
        %vm500 = vweird.f32 %v494
        %vm501 = vweird.f32 %v495
        %vm502 = vmor %vm500, %vm501
        %v503 = vsel %vm502, %v495, %v499
        %v504 = vand.u32 2147483647, %v494
        %vm505 = vcmp.eq.f32.partialorder %v504, 8.507059e+37
        %v506 = vand.u32 %v494, 2147483648
        %v507 = vor.u32 1.1754944e-38, %v506
        %v508 = vsel %vm505, %v507, %v503
        %v509 = vmul.f32 1.0, %v508
        %v511 = vrot.slane %v314, 2
        %v513 = vadd.f32 %v511, %v474
        %v514 = vxor.u32 %v513, 2147483648
        %v515 = vmul.f32 %v514, 1.442695
        %v516 = vpow.pop %v515
        %v517 = vadd.f32 %v516, 1.0
        %v518 = vrcp.pop %v517
        %v519 = vmul.f32 %v517, %v518
        %v520 = vsub.f32 1.0, %v519
        %v521 = vmul.f32 %v518, %v520
        %v522 = vadd.f32 %v518, %v521
        %vm523 = vweird.f32 %v517
        %vm524 = vweird.f32 %v518
        %vm525 = vmor %vm523, %vm524
        %v526 = vsel %vm525, %v518, %v522
        %v527 = vand.u32 2147483647, %v517
        %vm528 = vcmp.eq.f32.partialorder %v527, 8.507059e+37
        %v529 = vand.u32 %v517, 2147483648
        %v530 = vor.u32 1.1754944e-38, %v529
        %v531 = vsel %vm528, %v530, %v526
        %v532 = vmul.f32 1.0, %v531
        %v533 = vmul.f32 %v509, %v487
        %v534 = vrot.slane %v314, 4
        %v536 = vadd.f32 %v534, %v533
        %v537 = vtanh.pop %v536
        %v538 = vsub.f32 1.0, %v532
        %v539 = vmul.f32 %v538, %v537
        %v540 = vmul.f32 %v532, %v313
        %v541 = vadd.f32 %v539, %v540
        %s542 = scalar_select %p310, 1, 0
        %v543 = vstv %s542
        %vm544 = vcmp.eq.s32.totalorder %v543, 1
        %v545 = vsel %vm544, %v313, %v541
        %v546 = vpack.c.bf16 %v545, %v545
        %547 = vst [vmem:[%s268] sm:$0x1] %v546
        %s548 = scalar_lea.vmem %s255, 6
        %v549 = vld [vmem:[%s548] sm:$0x3f]
        %v550 = vpack.c.bf16 %v541, %v541
        %551 = vmatpush.bf16.msra.mxu0 %v424
        %552 = vmatpush.bf16.msra.mxu0 %v421
        %553 = vmatpush.bf16.msra.mxu0 %v418
        %554 = vmatpush.bf16.msra.mxu0 %v415
        %555 = vmatpush.bf16.msra.mxu0 %v412
        %556 = vmatpush.bf16.msra.mxu0 %v409
        %557 = vmatpush.bf16.msra.mxu0 %v406
        %558 = vmatpush.bf16.msra.mxu0 %v403
        %559 = vmatmul.bf16.gmra.mxu0 %v550
        %v560 = vpop.f32.mrf.mxu0
        %v561 = vadd.f32 %v317, %v560
        %v562 = vpop.f32.mrf.mxu0
        %563 = vdwg.mxu0
        %564 = vmatpush.bf16.msra.mxu0 %v425
        %565 = vmatpush.bf16.msra.mxu0 %v422
        %566 = vmatpush.bf16.msra.mxu0 %v419
        %567 = vmatpush.bf16.msra.mxu0 %v416
        %568 = vmatpush.bf16.msra.mxu0 %v413
        %569 = vmatpush.bf16.msra.mxu0 %v410
        %570 = vmatpush.bf16.msra.mxu0 %v407
        %571 = vmatpush.bf16.msra.mxu0 %v404
        %572 = vmatmul.bf16.gmra.mxu0 %v550
        %v573 = vpop.f32.mrf.mxu0
        %v574 = vadd.f32 %v318, %v573
        %v575 = vpop.f32.mrf.mxu0
        %576 = vdwg.mxu0
        %577 = vmatpush.bf16.msra.mxu0 %v426
        %578 = vmatpush.bf16.msra.mxu0 %v423
        %579 = vmatpush.bf16.msra.mxu0 %v420
        %580 = vmatpush.bf16.msra.mxu0 %v417
        %581 = vmatpush.bf16.msra.mxu0 %v414
        %582 = vmatpush.bf16.msra.mxu0 %v411
        %583 = vmatpush.bf16.msra.mxu0 %v408
        %584 = vmatpush.bf16.msra.mxu0 %v405
        %585 = vmatmul.bf16.gmra.mxu0 %v550
        %v586 = vpop.f32.mrf.mxu0
        %v587 = vadd.f32 %v319, %v586
        %v588 = vpop.f32.mrf.mxu0
        %589 = vdwg.mxu0
        %v590 = vadd.f32 %v549, %v561
        %v591 = vxor.u32 %v590, 2147483648
        %v592 = vmul.f32 %v591, 1.442695
        %v593 = vpow.pop %v592
        %v594 = vadd.f32 %v593, 1.0
        %v595 = vrcp.pop %v594
        %v596 = vmul.f32 %v594, %v595
        %v597 = vsub.f32 1.0, %v596
        %v598 = vmul.f32 %v595, %v597
        %v599 = vadd.f32 %v595, %v598
        %vm600 = vweird.f32 %v594
        %vm601 = vweird.f32 %v595
        %vm602 = vmor %vm600, %vm601
        %v603 = vsel %vm602, %v595, %v599
        %v604 = vand.u32 2147483647, %v594
        %vm605 = vcmp.eq.f32.partialorder %v604, 8.507059e+37
        %v606 = vand.u32 %v594, 2147483648
        %v607 = vor.u32 1.1754944e-38, %v606
        %v608 = vsel %vm605, %v607, %v603
        %v609 = vmul.f32 1.0, %v608
        %v611 = vrot.slane %v549, 2
        %v613 = vadd.f32 %v611, %v574
        %v614 = vxor.u32 %v613, 2147483648
        %v615 = vmul.f32 %v614, 1.442695
        %v616 = vpow.pop %v615
        %v617 = vadd.f32 %v616, 1.0
        %v618 = vrcp.pop %v617
        %v619 = vmul.f32 %v617, %v618
        %v620 = vsub.f32 1.0, %v619
        %v621 = vmul.f32 %v618, %v620
        %v622 = vadd.f32 %v618, %v621
        %vm623 = vweird.f32 %v617
        %vm624 = vweird.f32 %v618
        %vm625 = vmor %vm623, %vm624
        %v626 = vsel %vm625, %v618, %v622
        %v627 = vand.u32 2147483647, %v617
        %vm628 = vcmp.eq.f32.partialorder %v627, 8.507059e+37
        %v629 = vand.u32 %v617, 2147483648
        %v630 = vor.u32 1.1754944e-38, %v629
        %v631 = vsel %vm628, %v630, %v626
        %v632 = vmul.f32 1.0, %v631
        %v633 = vmul.f32 %v609, %v587
        %v634 = vrot.slane %v549, 4
        %v636 = vadd.f32 %v634, %v633
        %v637 = vtanh.pop %v636
        %v638 = vsub.f32 1.0, %v632
        %v639 = vmul.f32 %v638, %v637
        %v640 = vmul.f32 %v632, %v541
        %v641 = vadd.f32 %v639, %v640
        %v642 = vsel %vm544, %v541, %v641
        %v643 = vpack.c.bf16 %v642, %v642
        %s644 = scalar_lea.vmem %s268, 1
        %645 = vst [vmem:[%s644] sm:$0x1] %v643
        %s646 = scalar_lea.vmem %s255, 12
        %v647 = vld [vmem:[%s646] sm:$0x3f]
        %v648 = vpack.c.bf16 %v641, %v641
        %649 = vmatpush.bf16.msra.mxu0 %v424
        %650 = vmatpush.bf16.msra.mxu0 %v421
        %651 = vmatpush.bf16.msra.mxu0 %v418
        %652 = vmatpush.bf16.msra.mxu0 %v415
        %653 = vmatpush.bf16.msra.mxu0 %v412
        %654 = vmatpush.bf16.msra.mxu0 %v409
        %655 = vmatpush.bf16.msra.mxu0 %v406
        %656 = vmatpush.bf16.msra.mxu0 %v403
        %657 = vmatmul.bf16.gmra.mxu0 %v648
        %v658 = vpop.f32.mrf.mxu0
        %v659 = vadd.f32 %v317, %v658
        %v660 = vpop.f32.mrf.mxu0
        %661 = vdwg.mxu0
        %662 = vmatpush.bf16.msra.mxu0 %v425
        %663 = vmatpush.bf16.msra.mxu0 %v422
        %664 = vmatpush.bf16.msra.mxu0 %v419
        %665 = vmatpush.bf16.msra.mxu0 %v416
        %666 = vmatpush.bf16.msra.mxu0 %v413
        %667 = vmatpush.bf16.msra.mxu0 %v410
        %668 = vmatpush.bf16.msra.mxu0 %v407
        %669 = vmatpush.bf16.msra.mxu0 %v404
        %670 = vmatmul.bf16.gmra.mxu0 %v648
        %v671 = vpop.f32.mrf.mxu0
        %v672 = vadd.f32 %v318, %v671
        %v673 = vpop.f32.mrf.mxu0
        %674 = vdwg.mxu0
        %675 = vmatpush.bf16.msra.mxu0 %v426
        %676 = vmatpush.bf16.msra.mxu0 %v423
        %677 = vmatpush.bf16.msra.mxu0 %v420
        %678 = vmatpush.bf16.msra.mxu0 %v417
        %679 = vmatpush.bf16.msra.mxu0 %v414
        %680 = vmatpush.bf16.msra.mxu0 %v411
        %681 = vmatpush.bf16.msra.mxu0 %v408
        %682 = vmatpush.bf16.msra.mxu0 %v405
        %683 = vmatmul.bf16.gmra.mxu0 %v648
        %v684 = vpop.f32.mrf.mxu0
        %v685 = vadd.f32 %v319, %v684
        %v686 = vpop.f32.mrf.mxu0
        %687 = vdwg.mxu0
        %v688 = vadd.f32 %v647, %v659
        %v689 = vxor.u32 %v688, 2147483648
        %v690 = vmul.f32 %v689, 1.442695
        %v691 = vpow.pop %v690
        %v692 = vadd.f32 %v691, 1.0
        %v693 = vrcp.pop %v692
        %v694 = vmul.f32 %v692, %v693
        %v695 = vsub.f32 1.0, %v694
        %v696 = vmul.f32 %v693, %v695
        %v697 = vadd.f32 %v693, %v696
        %vm698 = vweird.f32 %v692
        %vm699 = vweird.f32 %v693
        %vm700 = vmor %vm698, %vm699
        %v701 = vsel %vm700, %v693, %v697
        %v702 = vand.u32 2147483647, %v692
        %vm703 = vcmp.eq.f32.partialorder %v702, 8.507059e+37
        %v704 = vand.u32 %v692, 2147483648
        %v705 = vor.u32 1.1754944e-38, %v704
        %v706 = vsel %vm703, %v705, %v701
        %v707 = vmul.f32 1.0, %v706
        %v709 = vrot.slane %v647, 2
        %v711 = vadd.f32 %v709, %v672
        %v712 = vxor.u32 %v711, 2147483648
        %v713 = vmul.f32 %v712, 1.442695
        %v714 = vpow.pop %v713
        %v715 = vadd.f32 %v714, 1.0
        %v716 = vrcp.pop %v715
        %v717 = vmul.f32 %v715, %v716
        %v718 = vsub.f32 1.0, %v717
        %v719 = vmul.f32 %v716, %v718
        %v720 = vadd.f32 %v716, %v719
        %vm721 = vweird.f32 %v715
        %vm722 = vweird.f32 %v716
        %vm723 = vmor %vm721, %vm722
        %v724 = vsel %vm723, %v716, %v720
        %v725 = vand.u32 2147483647, %v715
        %vm726 = vcmp.eq.f32.partialorder %v725, 8.507059e+37
        %v727 = vand.u32 %v715, 2147483648
        %v728 = vor.u32 1.1754944e-38, %v727
        %v729 = vsel %vm726, %v728, %v724
        %v730 = vmul.f32 1.0, %v729
        %v731 = vmul.f32 %v707, %v685
        %v732 = vrot.slane %v647, 4
        %v734 = vadd.f32 %v732, %v731
        %v735 = vtanh.pop %v734
        %v736 = vsub.f32 1.0, %v730
        %v737 = vmul.f32 %v736, %v735
        %v738 = vmul.f32 %v730, %v641
        %v739 = vadd.f32 %v737, %v738
        %v740 = vsel %vm544, %v641, %v739
        %v741 = vpack.c.bf16 %v740, %v740
        %s742 = scalar_lea.vmem %s268, 2
        %743 = vst [vmem:[%s742] sm:$0x1] %v741
        %s744 = scalar_lea.vmem %s255, 18
        %v745 = vld [vmem:[%s744] sm:$0x3f]
        %v746 = vpack.c.bf16 %v739, %v739
        %747 = vmatpush.bf16.msra.mxu0 %v424
        %748 = vmatpush.bf16.msra.mxu0 %v421
        %749 = vmatpush.bf16.msra.mxu0 %v418
        %750 = vmatpush.bf16.msra.mxu0 %v415
        %751 = vmatpush.bf16.msra.mxu0 %v412
        %752 = vmatpush.bf16.msra.mxu0 %v409
        %753 = vmatpush.bf16.msra.mxu0 %v406
        %754 = vmatpush.bf16.msra.mxu0 %v403
        %755 = vmatmul.bf16.gmra.mxu0 %v746
        %v756 = vpop.f32.mrf.mxu0
        %v757 = vadd.f32 %v317, %v756
        %v758 = vpop.f32.mrf.mxu0
        %759 = vdwg.mxu0
        %760 = vmatpush.bf16.msra.mxu0 %v425
        %761 = vmatpush.bf16.msra.mxu0 %v422
        %762 = vmatpush.bf16.msra.mxu0 %v419
        %763 = vmatpush.bf16.msra.mxu0 %v416
        %764 = vmatpush.bf16.msra.mxu0 %v413
        %765 = vmatpush.bf16.msra.mxu0 %v410
        %766 = vmatpush.bf16.msra.mxu0 %v407
        %767 = vmatpush.bf16.msra.mxu0 %v404
        %768 = vmatmul.bf16.gmra.mxu0 %v746
        %v769 = vpop.f32.mrf.mxu0
        %v770 = vadd.f32 %v318, %v769
        %v771 = vpop.f32.mrf.mxu0
        %772 = vdwg.mxu0
        %773 = vmatpush.bf16.msra.mxu0 %v426
        %774 = vmatpush.bf16.msra.mxu0 %v423
        %775 = vmatpush.bf16.msra.mxu0 %v420
        %776 = vmatpush.bf16.msra.mxu0 %v417
        %777 = vmatpush.bf16.msra.mxu0 %v414
        %778 = vmatpush.bf16.msra.mxu0 %v411
        %779 = vmatpush.bf16.msra.mxu0 %v408
        %780 = vmatpush.bf16.msra.mxu0 %v405
        %781 = vmatmul.bf16.gmra.mxu0 %v746
        %v782 = vpop.f32.mrf.mxu0
        %v783 = vadd.f32 %v319, %v782
        %v784 = vpop.f32.mrf.mxu0
        %785 = vdwg.mxu0
        %v786 = vadd.f32 %v745, %v757
        %v787 = vxor.u32 %v786, 2147483648
        %v788 = vmul.f32 %v787, 1.442695
        %v789 = vpow.pop %v788
        %v790 = vadd.f32 %v789, 1.0
        %v791 = vrcp.pop %v790
        %v792 = vmul.f32 %v790, %v791
        %v793 = vsub.f32 1.0, %v792
        %v794 = vmul.f32 %v791, %v793
        %v795 = vadd.f32 %v791, %v794
        %vm796 = vweird.f32 %v790
        %vm797 = vweird.f32 %v791
        %vm798 = vmor %vm796, %vm797
        %v799 = vsel %vm798, %v791, %v795
        %v800 = vand.u32 2147483647, %v790
        %vm801 = vcmp.eq.f32.partialorder %v800, 8.507059e+37
        %v802 = vand.u32 %v790, 2147483648
        %v803 = vor.u32 1.1754944e-38, %v802
        %v804 = vsel %vm801, %v803, %v799
        %v805 = vmul.f32 1.0, %v804
        %v807 = vrot.slane %v745, 2
        %v809 = vadd.f32 %v807, %v770
        %v810 = vxor.u32 %v809, 2147483648
        %v811 = vmul.f32 %v810, 1.442695
        %v812 = vpow.pop %v811
        %v813 = vadd.f32 %v812, 1.0
        %v814 = vrcp.pop %v813
        %v815 = vmul.f32 %v813, %v814
        %v816 = vsub.f32 1.0, %v815
        %v817 = vmul.f32 %v814, %v816
        %v818 = vadd.f32 %v814, %v817
        %vm819 = vweird.f32 %v813
        %vm820 = vweird.f32 %v814
        %vm821 = vmor %vm819, %vm820
        %v822 = vsel %vm821, %v814, %v818
        %v823 = vand.u32 2147483647, %v813
        %vm824 = vcmp.eq.f32.partialorder %v823, 8.507059e+37
        %v825 = vand.u32 %v813, 2147483648
        %v826 = vor.u32 1.1754944e-38, %v825
        %v827 = vsel %vm824, %v826, %v822
        %v828 = vmul.f32 1.0, %v827
        %v829 = vmul.f32 %v805, %v783
        %v830 = vrot.slane %v745, 4
        %v832 = vadd.f32 %v830, %v829
        %v833 = vtanh.pop %v832
        %v834 = vsub.f32 1.0, %v828
        %v835 = vmul.f32 %v834, %v833
        %v836 = vmul.f32 %v828, %v739
        %v837 = vadd.f32 %v835, %v836
        %v838 = vsel %vm544, %v739, %v837
        %v839 = vpack.c.bf16 %v838, %v838
        %s840 = scalar_lea.vmem %s268, 3
        %841 = vst [vmem:[%s840] sm:$0x1] %v839
        %s842 = scalar_lea.vmem %s255, 24
        %v843 = vld [vmem:[%s842] sm:$0x3f]
        %v844 = vpack.c.bf16 %v837, %v837
        %845 = vmatpush.bf16.msra.mxu0 %v424
        %846 = vmatpush.bf16.msra.mxu0 %v421
        %847 = vmatpush.bf16.msra.mxu0 %v418
        %848 = vmatpush.bf16.msra.mxu0 %v415
        %849 = vmatpush.bf16.msra.mxu0 %v412
        %850 = vmatpush.bf16.msra.mxu0 %v409
        %851 = vmatpush.bf16.msra.mxu0 %v406
        %852 = vmatpush.bf16.msra.mxu0 %v403
        %853 = vmatmul.bf16.gmra.mxu0 %v844
        %v854 = vpop.f32.mrf.mxu0
        %v855 = vadd.f32 %v317, %v854
        %v856 = vpop.f32.mrf.mxu0
        %857 = vdwg.mxu0
        %858 = vmatpush.bf16.msra.mxu0 %v425
        %859 = vmatpush.bf16.msra.mxu0 %v422
        %860 = vmatpush.bf16.msra.mxu0 %v419
        %861 = vmatpush.bf16.msra.mxu0 %v416
        %862 = vmatpush.bf16.msra.mxu0 %v413
        %863 = vmatpush.bf16.msra.mxu0 %v410
        %864 = vmatpush.bf16.msra.mxu0 %v407
        %865 = vmatpush.bf16.msra.mxu0 %v404
        %866 = vmatmul.bf16.gmra.mxu0 %v844
        %v867 = vpop.f32.mrf.mxu0
        %v868 = vadd.f32 %v318, %v867
        %v869 = vpop.f32.mrf.mxu0
        %870 = vdwg.mxu0
        %871 = vmatpush.bf16.msra.mxu0 %v426
        %872 = vmatpush.bf16.msra.mxu0 %v423
        %873 = vmatpush.bf16.msra.mxu0 %v420
        %874 = vmatpush.bf16.msra.mxu0 %v417
        %875 = vmatpush.bf16.msra.mxu0 %v414
        %876 = vmatpush.bf16.msra.mxu0 %v411
        %877 = vmatpush.bf16.msra.mxu0 %v408
        %878 = vmatpush.bf16.msra.mxu0 %v405
        %879 = vmatmul.bf16.gmra.mxu0 %v844
        %v880 = vpop.f32.mrf.mxu0
        %v881 = vadd.f32 %v319, %v880
        %v882 = vpop.f32.mrf.mxu0
        %883 = vdwg.mxu0
        %v884 = vadd.f32 %v843, %v855
        %v885 = vxor.u32 %v884, 2147483648
        %v886 = vmul.f32 %v885, 1.442695
        %v887 = vpow.pop %v886
        %v888 = vadd.f32 %v887, 1.0
        %v889 = vrcp.pop %v888
        %v890 = vmul.f32 %v888, %v889
        %v891 = vsub.f32 1.0, %v890
        %v892 = vmul.f32 %v889, %v891
        %v893 = vadd.f32 %v889, %v892
        %vm894 = vweird.f32 %v888
        %vm895 = vweird.f32 %v889
        %vm896 = vmor %vm894, %vm895
        %v897 = vsel %vm896, %v889, %v893
        %v898 = vand.u32 2147483647, %v888
        %vm899 = vcmp.eq.f32.partialorder %v898, 8.507059e+37
        %v900 = vand.u32 %v888, 2147483648
        %v901 = vor.u32 1.1754944e-38, %v900
        %v902 = vsel %vm899, %v901, %v897
        %v903 = vmul.f32 1.0, %v902
        %v905 = vrot.slane %v843, 2
        %v907 = vadd.f32 %v905, %v868
        %v908 = vxor.u32 %v907, 2147483648
        %v909 = vmul.f32 %v908, 1.442695
        %v910 = vpow.pop %v909
        %v911 = vadd.f32 %v910, 1.0
        %v912 = vrcp.pop %v911
        %v913 = vmul.f32 %v911, %v912
        %v914 = vsub.f32 1.0, %v913
        %v915 = vmul.f32 %v912, %v914
        %v916 = vadd.f32 %v912, %v915
        %vm917 = vweird.f32 %v911
        %vm918 = vweird.f32 %v912
        %vm919 = vmor %vm917, %vm918
        %v920 = vsel %vm919, %v912, %v916
        %v921 = vand.u32 2147483647, %v911
        %vm922 = vcmp.eq.f32.partialorder %v921, 8.507059e+37
        %v923 = vand.u32 %v911, 2147483648
        %v924 = vor.u32 1.1754944e-38, %v923
        %v925 = vsel %vm922, %v924, %v920
        %v926 = vmul.f32 1.0, %v925
        %v927 = vmul.f32 %v903, %v881
        %v928 = vrot.slane %v843, 4
        %v930 = vadd.f32 %v928, %v927
        %v931 = vtanh.pop %v930
        %v932 = vsub.f32 1.0, %v926
        %v933 = vmul.f32 %v932, %v931
        %v934 = vmul.f32 %v926, %v837
        %v935 = vadd.f32 %v933, %v934
        %v936 = vsel %vm544, %v837, %v935
        %v937 = vpack.c.bf16 %v936, %v936
        %s938 = scalar_lea.vmem %s268, 4
        %939 = vst [vmem:[%s938] sm:$0x1] %v937
        %s940 = scalar_lea.vmem %s255, 30
        %v941 = vld [vmem:[%s940] sm:$0x3f]
        %v942 = vpack.c.bf16 %v935, %v935
        %943 = vmatpush.bf16.msra.mxu0 %v424
        %944 = vmatpush.bf16.msra.mxu0 %v421
        %945 = vmatpush.bf16.msra.mxu0 %v418
        %946 = vmatpush.bf16.msra.mxu0 %v415
        %947 = vmatpush.bf16.msra.mxu0 %v412
        %948 = vmatpush.bf16.msra.mxu0 %v409
        %949 = vmatpush.bf16.msra.mxu0 %v406
        %950 = vmatpush.bf16.msra.mxu0 %v403
        %951 = vmatmul.bf16.gmra.mxu0 %v942
        %v952 = vpop.f32.mrf.mxu0
        %v953 = vadd.f32 %v317, %v952
        %v954 = vpop.f32.mrf.mxu0
        %955 = vdwg.mxu0
        %956 = vmatpush.bf16.msra.mxu0 %v425
        %957 = vmatpush.bf16.msra.mxu0 %v422
        %958 = vmatpush.bf16.msra.mxu0 %v419
        %959 = vmatpush.bf16.msra.mxu0 %v416
        %960 = vmatpush.bf16.msra.mxu0 %v413
        %961 = vmatpush.bf16.msra.mxu0 %v410
        %962 = vmatpush.bf16.msra.mxu0 %v407
        %963 = vmatpush.bf16.msra.mxu0 %v404
        %964 = vmatmul.bf16.gmra.mxu0 %v942
        %v965 = vpop.f32.mrf.mxu0
        %v966 = vadd.f32 %v318, %v965
        %v967 = vpop.f32.mrf.mxu0
        %968 = vdwg.mxu0
        %969 = vmatpush.bf16.msra.mxu0 %v426
        %970 = vmatpush.bf16.msra.mxu0 %v423
        %971 = vmatpush.bf16.msra.mxu0 %v420
        %972 = vmatpush.bf16.msra.mxu0 %v417
        %973 = vmatpush.bf16.msra.mxu0 %v414
        %974 = vmatpush.bf16.msra.mxu0 %v411
        %975 = vmatpush.bf16.msra.mxu0 %v408
        %976 = vmatpush.bf16.msra.mxu0 %v405
        %977 = vmatmul.bf16.gmra.mxu0 %v942
        %v978 = vpop.f32.mrf.mxu0
        %v979 = vadd.f32 %v319, %v978
        %v980 = vpop.f32.mrf.mxu0
        %981 = vdwg.mxu0
        %v982 = vadd.f32 %v941, %v953
        %v983 = vxor.u32 %v982, 2147483648
        %v984 = vmul.f32 %v983, 1.442695
        %v985 = vpow.pop %v984
        %v986 = vadd.f32 %v985, 1.0
        %v987 = vrcp.pop %v986
        %v988 = vmul.f32 %v986, %v987
        %v989 = vsub.f32 1.0, %v988
        %v990 = vmul.f32 %v987, %v989
        %v991 = vadd.f32 %v987, %v990
        %vm992 = vweird.f32 %v986
        %vm993 = vweird.f32 %v987
        %vm994 = vmor %vm992, %vm993
        %v995 = vsel %vm994, %v987, %v991
        %v996 = vand.u32 2147483647, %v986
        %vm997 = vcmp.eq.f32.partialorder %v996, 8.507059e+37
        %v998 = vand.u32 %v986, 2147483648
        %v999 = vor.u32 1.1754944e-38, %v998
        %v1000 = vsel %vm997, %v999, %v995
        %v1001 = vmul.f32 1.0, %v1000
        %v1003 = vrot.slane %v941, 2
        %v1005 = vadd.f32 %v1003, %v966
        %v1006 = vxor.u32 %v1005, 2147483648
        %v1007 = vmul.f32 %v1006, 1.442695
        %v1008 = vpow.pop %v1007
        %v1009 = vadd.f32 %v1008, 1.0
        %v1010 = vrcp.pop %v1009
        %v1011 = vmul.f32 %v1009, %v1010
        %v1012 = vsub.f32 1.0, %v1011
        %v1013 = vmul.f32 %v1010, %v1012
        %v1014 = vadd.f32 %v1010, %v1013
        %vm1015 = vweird.f32 %v1009
        %vm1016 = vweird.f32 %v1010
        %vm1017 = vmor %vm1015, %vm1016
        %v1018 = vsel %vm1017, %v1010, %v1014
        %v1019 = vand.u32 2147483647, %v1009
        %vm1020 = vcmp.eq.f32.partialorder %v1019, 8.507059e+37
        %v1021 = vand.u32 %v1009, 2147483648
        %v1022 = vor.u32 1.1754944e-38, %v1021
        %v1023 = vsel %vm1020, %v1022, %v1018
        %v1024 = vmul.f32 1.0, %v1023
        %v1025 = vmul.f32 %v1001, %v979
        %v1026 = vrot.slane %v941, 4
        %v1028 = vadd.f32 %v1026, %v1025
        %v1029 = vtanh.pop %v1028
        %v1030 = vsub.f32 1.0, %v1024
        %v1031 = vmul.f32 %v1030, %v1029
        %v1032 = vmul.f32 %v1024, %v935
        %v1033 = vadd.f32 %v1031, %v1032
        %v1034 = vsel %vm544, %v935, %v1033
        %v1035 = vpack.c.bf16 %v1034, %v1034
        %s1036 = scalar_lea.vmem %s268, 5
        %1037 = vst [vmem:[%s1036] sm:$0x1] %v1035
        %s1038 = scalar_lea.vmem %s255, 36
        %v1039 = vld [vmem:[%s1038] sm:$0x3f]
        %v1040 = vpack.c.bf16 %v1033, %v1033
        %1041 = vmatpush.bf16.msra.mxu0 %v424
        %1042 = vmatpush.bf16.msra.mxu0 %v421
        %1043 = vmatpush.bf16.msra.mxu0 %v418
        %1044 = vmatpush.bf16.msra.mxu0 %v415
        %1045 = vmatpush.bf16.msra.mxu0 %v412
        %1046 = vmatpush.bf16.msra.mxu0 %v409
        %1047 = vmatpush.bf16.msra.mxu0 %v406
        %1048 = vmatpush.bf16.msra.mxu0 %v403
        %1049 = vmatmul.bf16.gmra.mxu0 %v1040
        %v1050 = vpop.f32.mrf.mxu0
        %v1051 = vadd.f32 %v317, %v1050
        %v1052 = vpop.f32.mrf.mxu0
        %1053 = vdwg.mxu0
        %1054 = vmatpush.bf16.msra.mxu0 %v425
        %1055 = vmatpush.bf16.msra.mxu0 %v422
        %1056 = vmatpush.bf16.msra.mxu0 %v419
        %1057 = vmatpush.bf16.msra.mxu0 %v416
        %1058 = vmatpush.bf16.msra.mxu0 %v413
        %1059 = vmatpush.bf16.msra.mxu0 %v410
        %1060 = vmatpush.bf16.msra.mxu0 %v407
        %1061 = vmatpush.bf16.msra.mxu0 %v404
        %1062 = vmatmul.bf16.gmra.mxu0 %v1040
        %v1063 = vpop.f32.mrf.mxu0
        %v1064 = vadd.f32 %v318, %v1063
        %v1065 = vpop.f32.mrf.mxu0
        %1066 = vdwg.mxu0
        %1067 = vmatpush.bf16.msra.mxu0 %v426
        %1068 = vmatpush.bf16.msra.mxu0 %v423
        %1069 = vmatpush.bf16.msra.mxu0 %v420
        %1070 = vmatpush.bf16.msra.mxu0 %v417
        %1071 = vmatpush.bf16.msra.mxu0 %v414
        %1072 = vmatpush.bf16.msra.mxu0 %v411
        %1073 = vmatpush.bf16.msra.mxu0 %v408
        %1074 = vmatpush.bf16.msra.mxu0 %v405
        %1075 = vmatmul.bf16.gmra.mxu0 %v1040
        %v1076 = vpop.f32.mrf.mxu0
        %v1077 = vadd.f32 %v319, %v1076
        %v1078 = vpop.f32.mrf.mxu0
        %1079 = vdwg.mxu0
        %v1080 = vadd.f32 %v1039, %v1051
        %v1081 = vxor.u32 %v1080, 2147483648
        %v1082 = vmul.f32 %v1081, 1.442695
        %v1083 = vpow.pop %v1082
        %v1084 = vadd.f32 %v1083, 1.0
        %v1085 = vrcp.pop %v1084
        %v1086 = vmul.f32 %v1084, %v1085
        %v1087 = vsub.f32 1.0, %v1086
        %v1088 = vmul.f32 %v1085, %v1087
        %v1089 = vadd.f32 %v1085, %v1088
        %vm1090 = vweird.f32 %v1084
        %vm1091 = vweird.f32 %v1085
        %vm1092 = vmor %vm1090, %vm1091
        %v1093 = vsel %vm1092, %v1085, %v1089
        %v1094 = vand.u32 2147483647, %v1084
        %vm1095 = vcmp.eq.f32.partialorder %v1094, 8.507059e+37
        %v1096 = vand.u32 %v1084, 2147483648
        %v1097 = vor.u32 1.1754944e-38, %v1096
        %v1098 = vsel %vm1095, %v1097, %v1093
        %v1099 = vmul.f32 1.0, %v1098
        %v1101 = vrot.slane %v1039, 2
        %v1103 = vadd.f32 %v1101, %v1064
        %v1104 = vxor.u32 %v1103, 2147483648
        %v1105 = vmul.f32 %v1104, 1.442695
        %v1106 = vpow.pop %v1105
        %v1107 = vadd.f32 %v1106, 1.0
        %v1108 = vrcp.pop %v1107
        %v1109 = vmul.f32 %v1107, %v1108
        %v1110 = vsub.f32 1.0, %v1109
        %v1111 = vmul.f32 %v1108, %v1110
        %v1112 = vadd.f32 %v1108, %v1111
        %vm1113 = vweird.f32 %v1107
        %vm1114 = vweird.f32 %v1108
        %vm1115 = vmor %vm1113, %vm1114
        %v1116 = vsel %vm1115, %v1108, %v1112
        %v1117 = vand.u32 2147483647, %v1107
        %vm1118 = vcmp.eq.f32.partialorder %v1117, 8.507059e+37
        %v1119 = vand.u32 %v1107, 2147483648
        %v1120 = vor.u32 1.1754944e-38, %v1119
        %v1121 = vsel %vm1118, %v1120, %v1116
        %v1122 = vmul.f32 1.0, %v1121
        %v1123 = vmul.f32 %v1099, %v1077
        %v1124 = vrot.slane %v1039, 4
        %v1126 = vadd.f32 %v1124, %v1123
        %v1127 = vtanh.pop %v1126
        %v1128 = vsub.f32 1.0, %v1122
        %v1129 = vmul.f32 %v1128, %v1127
        %v1130 = vmul.f32 %v1122, %v1033
        %v1131 = vadd.f32 %v1129, %v1130
        %v1132 = vsel %vm544, %v1033, %v1131
        %v1133 = vpack.c.bf16 %v1132, %v1132
        %s1134 = scalar_lea.vmem %s268, 6
        %1135 = vst [vmem:[%s1134] sm:$0x1] %v1133
        %s1136 = scalar_lea.vmem %s255, 42
        %v1137 = vld [vmem:[%s1136] sm:$0x3f]
        %v1138 = vpack.c.bf16 %v1131, %v1131
        %1139 = vmatpush.bf16.msra.mxu0 %v424
        %1140 = vmatpush.bf16.msra.mxu0 %v421
        %1141 = vmatpush.bf16.msra.mxu0 %v418
        %1142 = vmatpush.bf16.msra.mxu0 %v415
        %1143 = vmatpush.bf16.msra.mxu0 %v412
        %1144 = vmatpush.bf16.msra.mxu0 %v409
        %1145 = vmatpush.bf16.msra.mxu0 %v406
        %1146 = vmatpush.bf16.msra.mxu0 %v403
        %1147 = vmatmul.bf16.gmra.mxu0 %v1138
        %v1148 = vpop.f32.mrf.mxu0
        %v1149 = vadd.f32 %v317, %v1148
        %v1150 = vpop.f32.mrf.mxu0
        %1151 = vdwg.mxu0
        %1152 = vmatpush.bf16.msra.mxu0 %v425
        %1153 = vmatpush.bf16.msra.mxu0 %v422
        %1154 = vmatpush.bf16.msra.mxu0 %v419
        %1155 = vmatpush.bf16.msra.mxu0 %v416
        %1156 = vmatpush.bf16.msra.mxu0 %v413
        %1157 = vmatpush.bf16.msra.mxu0 %v410
        %1158 = vmatpush.bf16.msra.mxu0 %v407
        %1159 = vmatpush.bf16.msra.mxu0 %v404
        %1160 = vmatmul.bf16.gmra.mxu0 %v1138
        %v1161 = vpop.f32.mrf.mxu0
        %v1162 = vadd.f32 %v318, %v1161
        %v1163 = vpop.f32.mrf.mxu0
        %1164 = vdwg.mxu0
        %1165 = vmatpush.bf16.msra.mxu0 %v426
        %1166 = vmatpush.bf16.msra.mxu0 %v423
        %1167 = vmatpush.bf16.msra.mxu0 %v420
        %1168 = vmatpush.bf16.msra.mxu0 %v417
        %1169 = vmatpush.bf16.msra.mxu0 %v414
        %1170 = vmatpush.bf16.msra.mxu0 %v411
        %1171 = vmatpush.bf16.msra.mxu0 %v408
        %1172 = vmatpush.bf16.msra.mxu0 %v405
        %1173 = vmatmul.bf16.gmra.mxu0 %v1138
        %v1174 = vpop.f32.mrf.mxu0
        %v1175 = vadd.f32 %v319, %v1174
        %v1176 = vpop.f32.mrf.mxu0
        %1177 = vdwg.mxu0
        %v1178 = vadd.f32 %v1137, %v1149
        %v1179 = vxor.u32 %v1178, 2147483648
        %v1180 = vmul.f32 %v1179, 1.442695
        %v1181 = vpow.pop %v1180
        %v1182 = vadd.f32 %v1181, 1.0
        %v1183 = vrcp.pop %v1182
        %v1184 = vmul.f32 %v1182, %v1183
        %v1185 = vsub.f32 1.0, %v1184
        %v1186 = vmul.f32 %v1183, %v1185
        %v1187 = vadd.f32 %v1183, %v1186
        %vm1188 = vweird.f32 %v1182
        %vm1189 = vweird.f32 %v1183
        %vm1190 = vmor %vm1188, %vm1189
        %v1191 = vsel %vm1190, %v1183, %v1187
        %v1192 = vand.u32 2147483647, %v1182
        %vm1193 = vcmp.eq.f32.partialorder %v1192, 8.507059e+37
        %v1194 = vand.u32 %v1182, 2147483648
        %v1195 = vor.u32 1.1754944e-38, %v1194
        %v1196 = vsel %vm1193, %v1195, %v1191
        %v1197 = vmul.f32 1.0, %v1196
        %v1199 = vrot.slane %v1137, 2
        %v1201 = vadd.f32 %v1199, %v1162
        %v1202 = vxor.u32 %v1201, 2147483648
        %v1203 = vmul.f32 %v1202, 1.442695
        %v1204 = vpow.pop %v1203
        %v1205 = vadd.f32 %v1204, 1.0
        %v1206 = vrcp.pop %v1205
        %v1207 = vmul.f32 %v1205, %v1206
        %v1208 = vsub.f32 1.0, %v1207
        %v1209 = vmul.f32 %v1206, %v1208
        %v1210 = vadd.f32 %v1206, %v1209
        %vm1211 = vweird.f32 %v1205
        %vm1212 = vweird.f32 %v1206
        %vm1213 = vmor %vm1211, %vm1212
        %v1214 = vsel %vm1213, %v1206, %v1210
        %v1215 = vand.u32 2147483647, %v1205
        %vm1216 = vcmp.eq.f32.partialorder %v1215, 8.507059e+37
        %v1217 = vand.u32 %v1205, 2147483648
        %v1218 = vor.u32 1.1754944e-38, %v1217
        %v1219 = vsel %vm1216, %v1218, %v1214
        %v1220 = vmul.f32 1.0, %v1219
        %v1221 = vmul.f32 %v1197, %v1175
        %v1222 = vrot.slane %v1137, 4
        %v1224 = vadd.f32 %v1222, %v1221
        %v1225 = vtanh.pop %v1224
        %v1226 = vsub.f32 1.0, %v1220
        %v1227 = vmul.f32 %v1226, %v1225
        %v1228 = vmul.f32 %v1220, %v1131
        %v1229 = vadd.f32 %v1227, %v1228
        %v1230 = vsel %vm544, %v1131, %v1229
        %v1231 = vpack.c.bf16 %v1230, %v1230
        %s1232 = scalar_lea.vmem %s268, 7
        %1233 = vst [vmem:[%s1232] sm:$0x1] %v1231
        %1234 = vst [vmem:[%s312] sm:$0x3] %v1229
        %s1235 = smul.u32 8, %s22
        %p1236 = scmp.lt.s32.totalorder %s21, 1
        %s1237 = scalar_select %p1236, %s21, 1
        %p1238 = scmp.lt.s32.totalorder %s1235, 7
        %s1239 = scalar_select %p1238, %s1235, 7
        %s1240 = smul.addr %s1237, 8
        %s1241 = sadd.s32 %s1239, %s1240
        %s1242 = scalar_lea.vmem %s3, %s1241
        // Predicated region
        $region41: #{_lambda_.5} parent=31 // pred_check
          %p1243 = pneg %p129
        $region42: #{_lambda_.5} parent=31 // pred_check_branch
          %1245 = sbr.rel (%p1243) target = $region44
        $region43: #{_lambda_.5} parent=31 // pred_region
          %s1246 = smul.u32 8, %s22
        $region44: #{_lambda_.5} parent=31 // pred_fallthru
          _
      $region32: #{_lambda_.5} parent=5 // pred_fallthru
        _
      %p1247 = scmp.le.s32.totalorder 2, %s12
      // Predicated region
      $region45: #{_lambda_.5} parent=5 // pred_check
        %p1248 = pneg %p1247
      $region46: #{_lambda_.5} parent=5 // pred_check_branch
        %1250 = sbr.rel (%p1248) target = $region48
      $region47: #{_lambda_.5} parent=5 // pred_region
        %s1251 = ssub.s32 %s12, 2
        // Predicated region
        $region49: #{_lambda_.5} parent=47 // pred_check
          %p1252 = pneg %p135
        $region50: #{_lambda_.5} parent=47 // pred_check_branch
          %1254 = sbr.rel (%p1252) target = $region52
        $region51: #{_lambda_.5} parent=47 // pred_region
          %s1255 = smul.u32 8, %s24
          %p1256 = scmp.lt.s32.totalorder %s23, 1
          %s1257 = scalar_select %p1256, %s23, 1
          %p1258 = scmp.lt.s32.totalorder %s1255, 7
          %s1259 = scalar_select %p1258, %s1255, 7
          %s1260 = smul.addr %s1257, 8
          %s1261 = sadd.s32 %s1259, %s1260
          %s1262 = scalar_lea.vmem %s3, %s1261
        $region52: #{_lambda_.5} parent=47 // pred_fallthru
          _
      $region48: #{_lambda_.5} parent=5 // pred_fallthru
        _
    $region6: #{_lambda_.5} parent=1 // loop_footer
      %s16 = sadd.s32 1, %s12
    $region7: #{_lambda_.5} parent=1 // loop_footer_branch
      %11 = sbr.rel target = $region3
    $region8: #{_lambda_.5} parent=1 // loop_exit
      _
    %1263 = vsyncpa [#allocation4], 1
    %s1264 = scalar_lea.sflag [#allocation4], 1
    %1265 = vsyncpa %s1264, 1

// kernel: _lambda_.6
$region0: #{_lambda_.6}
  #allocation0 [shape = 'u32[]', space=smem, size = 0x4, offset = 0x4, fixed_abs, tag = 'smem constant byte address 0x4 - core index']
  #allocation1 [shape = 'u32[72,128]{1,0:T(1,128)}', space=vmem, size = 0x9000, scoped, tag = 'internal scratch']
  #allocation2 [shape = 'f32[1,1]{1,0:T(1,128)S(6)}', space=smem, size = 0x200, scoped, tag = 'scoped memory for _lambda_.6']
  #allocation3 [shape = 'f32[1,1]{1,0:T(1,128)S(6)}', space=smem, size = 0x200, scoped, tag = 'scoped memory for _lambda_.6']
  %s0 = inlined_call_operand.vmem [shape: bf16[2,16,128], index: 0, kind: input, shape index: {}]
  %s1 = inlined_call_operand.vmem [shape: bf16[16,128], index: 1, kind: input, shape index: {}]
  %s2 = inlined_call_operand.vmem [shape: f32[16,20], index: 2, kind: input, shape index: {}]
  %s3 = inlined_call_operand.vmem [shape: f32[16,1], index: 3, kind: input, shape index: {}]
  %s4 = inlined_call_operand.vmem [shape: f32[16,20], index: 4, kind: input, shape index: {}]
  %s5 = inlined_call_operand.vmem [shape: bf16[128,64], index: 5, kind: input, shape index: {}]
  %s6 = inlined_call_operand.vmem [shape: bf16[128,64], index: 6, kind: input, shape index: {}]
  %s7 = inlined_call_operand.vmem [shape: f32[1,64], index: 7, kind: input, shape index: {}]
  %s8 = inlined_call_operand.vmem [shape: bf16[64,40], index: 8, kind: input, shape index: {}]
  %s9 = inlined_call_operand.vmem [shape: f32[1,40], index: 9, kind: input, shape index: {}]
  %s10 = inlined_call_operand.vmem [shape: f32[20,128], index: 10, kind: input, shape index: {}]
  %s11 = inlined_call_operand.vmem [shape: f32[1,128], index: 11, kind: input, shape index: {}]
  %s12 = inlined_call_operand.vmem [shape: bf16[128,64], index: 12, kind: input, shape index: {}]
  %s13 = inlined_call_operand.vmem [shape: bf16[20,64], index: 13, kind: input, shape index: {}]
  %s14 = inlined_call_operand.vmem [shape: f32[1,64], index: 14, kind: input, shape index: {}]
  %s15 = inlined_call_operand.vmem [shape: bf16[64,41], index: 15, kind: input, shape index: {}]
  %s16 = inlined_call_operand.vmem [shape: f32[1,41], index: 16, kind: input, shape index: {}]
  %s17 = inlined_call_operand.<no memory space> [shape: f32[1,1], index: 17, kind: input, shape index: {}]
  %s18 = inlined_call_operand.<no memory space> [shape: f32[1,1], index: 18, kind: input, shape index: {}]
  %s19 = inlined_call_operand.vmem [shape: f32[16,128], index: 19, kind: output, shape index: {0}]
  %s20 = inlined_call_operand.vmem [shape: f32[16,128], index: 20, kind: output, shape index: {1}]
  %21 = xla_tuple %s19, %s20
  %s22 = sld [smem:[#allocation0]]
  $region94: #{_lambda_.6} parent=0
    _
  %s24 = ssub.s32 1, %s22
  %s25 = scalar_select 0, %s24, %s22
  %26 = sst [smem:[#allocation2]] %s17
  %27 = sst [smem:[#allocation3]] %s18
  // Predicated region
  $region2: #{_lambda_.6} parent=0 // pred_check
    _
  $region3: #{_lambda_.6} parent=0 // pred_check_branch
    %29 = sbr.rel (0) target = $region5
  $region4: #{_lambda_.6} parent=0 // pred_region
    _
  $region5: #{_lambda_.6} parent=0 // pred_fallthru
    _
  // Predicated region
  $region6: #{_lambda_.6} parent=0 // pred_check
    _
  $region7: #{_lambda_.6} parent=0 // pred_check_branch
    %31 = sbr.rel (0) target = $region9
  $region8: #{_lambda_.6} parent=0 // pred_region
    _
  $region9: #{_lambda_.6} parent=0 // pred_fallthru
    _
  // Predicated region
  $region10: #{_lambda_.6} parent=0 // pred_check
    _
  $region11: #{_lambda_.6} parent=0 // pred_check_branch
    %33 = sbr.rel (0) target = $region13
  $region12: #{_lambda_.6} parent=0 // pred_region
    _
  $region13: #{_lambda_.6} parent=0 // pred_fallthru
    _
  // Predicated region
  $region14: #{_lambda_.6} parent=0 // pred_check
    _
  $region15: #{_lambda_.6} parent=0 // pred_check_branch
    %35 = sbr.rel (0) target = $region17
  $region16: #{_lambda_.6} parent=0 // pred_region
    _
  $region17: #{_lambda_.6} parent=0 // pred_fallthru
    _
  // Predicated region
  $region18: #{_lambda_.6} parent=0 // pred_check
    _
  $region19: #{_lambda_.6} parent=0 // pred_check_branch
    %37 = sbr.rel (0) target = $region21
  $region20: #{_lambda_.6} parent=0 // pred_region
    _
  $region21: #{_lambda_.6} parent=0 // pred_fallthru
    _
  // Predicated region
  $region22: #{_lambda_.6} parent=0 // pred_check
    _
  $region23: #{_lambda_.6} parent=0 // pred_check_branch
    %39 = sbr.rel (0) target = $region25
  $region24: #{_lambda_.6} parent=0 // pred_region
    _
  $region25: #{_lambda_.6} parent=0 // pred_fallthru
    _
  // Predicated region
  $region26: #{_lambda_.6} parent=0 // pred_check
    _
  $region27: #{_lambda_.6} parent=0 // pred_check_branch
    %41 = sbr.rel (0) target = $region29
  $region28: #{_lambda_.6} parent=0 // pred_region
    _
  $region29: #{_lambda_.6} parent=0 // pred_fallthru
    _
  // Predicated region
  $region30: #{_lambda_.6} parent=0 // pred_check
    _
  $region31: #{_lambda_.6} parent=0 // pred_check_branch
    %43 = sbr.rel (0) target = $region33
  $region32: #{_lambda_.6} parent=0 // pred_region
    _
  $region33: #{_lambda_.6} parent=0 // pred_fallthru
    _
  // Predicated region
  $region34: #{_lambda_.6} parent=0 // pred_check
    _
  $region35: #{_lambda_.6} parent=0 // pred_check_branch
    %45 = sbr.rel (0) target = $region37
  $region36: #{_lambda_.6} parent=0 // pred_region
    _
  $region37: #{_lambda_.6} parent=0 // pred_fallthru
    _
  // Predicated region
  $region38: #{_lambda_.6} parent=0 // pred_check
    _
  $region39: #{_lambda_.6} parent=0 // pred_check_branch
    %47 = sbr.rel (0) target = $region41
  $region40: #{_lambda_.6} parent=0 // pred_region
    _
  $region41: #{_lambda_.6} parent=0 // pred_fallthru
    _
  // Predicated region
  $region42: #{_lambda_.6} parent=0 // pred_check
    _
  $region43: #{_lambda_.6} parent=0 // pred_check_branch
    %49 = sbr.rel (0) target = $region45
  $region44: #{_lambda_.6} parent=0 // pred_region
    _
  $region45: #{_lambda_.6} parent=0 // pred_fallthru
    _
  // Predicated region
  $region46: #{_lambda_.6} parent=0 // pred_check
    _
  $region47: #{_lambda_.6} parent=0 // pred_check_branch
    %51 = sbr.rel (0) target = $region49
  $region48: #{_lambda_.6} parent=0 // pred_region
    _
  $region49: #{_lambda_.6} parent=0 // pred_fallthru
    _
  // Predicated region
  $region50: #{_lambda_.6} parent=0 // pred_check
    _
  $region51: #{_lambda_.6} parent=0 // pred_check_branch
    %53 = sbr.rel (0) target = $region53
  $region52: #{_lambda_.6} parent=0 // pred_region
    _
  $region53: #{_lambda_.6} parent=0 // pred_fallthru
    _
  // Predicated region
  $region54: #{_lambda_.6} parent=0 // pred_check
    _
  $region55: #{_lambda_.6} parent=0 // pred_check_branch
    %55 = sbr.rel (0) target = $region57
  $region56: #{_lambda_.6} parent=0 // pred_region
    _
  $region57: #{_lambda_.6} parent=0 // pred_fallthru
    _
  // Predicated region
  $region58: #{_lambda_.6} parent=0 // pred_check
    _
  $region59: #{_lambda_.6} parent=0 // pred_check_branch
    %57 = sbr.rel (0) target = $region61
  $region60: #{_lambda_.6} parent=0 // pred_region
    _
  $region61: #{_lambda_.6} parent=0 // pred_fallthru
    _
  // Predicated region
  $region62: #{_lambda_.6} parent=0 // pred_check
    _
  $region63: #{_lambda_.6} parent=0 // pred_check_branch
    %59 = sbr.rel (0) target = $region65
  $region64: #{_lambda_.6} parent=0 // pred_region
    _
  $region65: #{_lambda_.6} parent=0 // pred_fallthru
    _
  // Predicated region
  $region66: #{_lambda_.6} parent=0 // pred_check
    _
  $region67: #{_lambda_.6} parent=0 // pred_check_branch
    %61 = sbr.rel (0) target = $region69
  $region68: #{_lambda_.6} parent=0 // pred_region
    _
  $region69: #{_lambda_.6} parent=0 // pred_fallthru
    _
  // Predicated region
  $region70: #{_lambda_.6} parent=0 // pred_check
    _
  $region71: #{_lambda_.6} parent=0 // pred_check_branch
    %63 = sbr.rel (0) target = $region73
  $region72: #{_lambda_.6} parent=0 // pred_region
    _
  $region73: #{_lambda_.6} parent=0 // pred_fallthru
    _
  // Predicated region
  $region74: #{_lambda_.6} parent=0 // pred_check
    _
  $region75: #{_lambda_.6} parent=0 // pred_check_branch
    %65 = sbr.rel (0) target = $region77
  $region76: #{_lambda_.6} parent=0 // pred_region
    _
  $region77: #{_lambda_.6} parent=0 // pred_fallthru
    _
  %v67 = vld [vmem:[%s0] sm:$0xf]
  %v68 = vld [vmem:[%s0 + $0x4] sm:$0xf]
  %s69 = scalar_lea.vmem %s0, 8
  %v70 = vld [vmem:[%s69] sm:$0xf]
  %v71 = vld [vmem:[%s69 + $0x4] sm:$0xf]
  %v72 = vld [vmem:[%s1] sm:$0xf]
  %v73 = vld [vmem:[%s1 + $0x4] sm:$0xf]
  %v74 = vld [vmem:[%s2] sm:$0xff]
  %v75 = vld [vmem:[%s2 + $0x8] sm:$0xff]
  %v76 = vld [vmem:[%s3] sm:$0xff]
  %v77 = vld [vmem:[%s3 + $0x8] sm:$0xff]
  %v78 = vld [vmem:[%s4] sm:$0xff]
  %v79 = vld [vmem:[%s4 + $0x8] sm:$0xff]
  %v80 = vld [vmem:[%s5] sm:$0xf]
  %v81 = vld [vmem:[%s5 + $0x4] sm:$0xf]
  %v82 = vld [vmem:[%s5 + $0x8] sm:$0xf]
  %v83 = vld [vmem:[%s5 + $0xc] sm:$0xf]
  %v84 = vld [vmem:[%s5 + $0x10] sm:$0xf]
  %v85 = vld [vmem:[%s5 + $0x14] sm:$0xf]
  %v86 = vld [vmem:[%s5 + $0x18] sm:$0xf]
  %v87 = vld [vmem:[%s5 + $0x1c] sm:$0xf]
  %v88 = vld [vmem:[%s5 + $0x20] sm:$0xf]
  %v89 = vld [vmem:[%s5 + $0x24] sm:$0xf]
  %v90 = vld [vmem:[%s5 + $0x28] sm:$0xf]
  %v91 = vld [vmem:[%s5 + $0x2c] sm:$0xf]
  %v92 = vld [vmem:[%s5 + $0x30] sm:$0xf]
  %v93 = vld [vmem:[%s5 + $0x34] sm:$0xf]
  %v94 = vld [vmem:[%s5 + $0x38] sm:$0xf]
  %v95 = vld [vmem:[%s5 + $0x3c] sm:$0xf]
  %v96 = vld [vmem:[%s6] sm:$0xf]
  %v97 = vld [vmem:[%s6 + $0x4] sm:$0xf]
  %v98 = vld [vmem:[%s6 + $0x8] sm:$0xf]
  %v99 = vld [vmem:[%s6 + $0xc] sm:$0xf]
  %v100 = vld [vmem:[%s6 + $0x10] sm:$0xf]
  %v101 = vld [vmem:[%s6 + $0x14] sm:$0xf]
  %v102 = vld [vmem:[%s6 + $0x18] sm:$0xf]
  %v103 = vld [vmem:[%s6 + $0x1c] sm:$0xf]
  %v104 = vld [vmem:[%s6 + $0x20] sm:$0xf]
  %v105 = vld [vmem:[%s6 + $0x24] sm:$0xf]
  %v106 = vld [vmem:[%s6 + $0x28] sm:$0xf]
  %v107 = vld [vmem:[%s6 + $0x2c] sm:$0xf]
  %v108 = vld [vmem:[%s6 + $0x30] sm:$0xf]
  %v109 = vld [vmem:[%s6 + $0x34] sm:$0xf]
  %v110 = vld [vmem:[%s6 + $0x38] sm:$0xf]
  %v111 = vld [vmem:[%s6 + $0x3c] sm:$0xf]
  %v114 = vunpack.c.l.b16 %v72
  %v115 = vunpack.c.l.b16 %v73
  %v116 = vpack.c.b16 %v115, %v114
  %v134 = vunpack.c.l.b16 %v96
  %v135 = vunpack.c.l.b16 %v97
  %v136 = vunpack.c.l.b16 %v98
  %v137 = vunpack.c.l.b16 %v99
  %v138 = vunpack.c.l.b16 %v100
  %v139 = vunpack.c.l.b16 %v101
  %v140 = vunpack.c.l.b16 %v102
  %v141 = vunpack.c.l.b16 %v103
  %v142 = vunpack.c.l.b16 %v104
  %v143 = vunpack.c.l.b16 %v105
  %v144 = vunpack.c.l.b16 %v106
  %v145 = vunpack.c.l.b16 %v107
  %v146 = vunpack.c.l.b16 %v108
  %v147 = vunpack.c.l.b16 %v109
  %v148 = vunpack.c.l.b16 %v110
  %v149 = vunpack.c.l.b16 %v111
  %v150 = vpack.c.b16 %v135, %v134
  %v151 = vpack.c.b16 %v137, %v136
  %v152 = vpack.c.b16 %v139, %v138
  %v153 = vpack.c.b16 %v141, %v140
  %v154 = vpack.c.b16 %v143, %v142
  %v155 = vpack.c.b16 %v145, %v144
  %v156 = vpack.c.b16 %v147, %v146
  %v157 = vpack.c.b16 %v149, %v148
  %166 = vmatpush.bf16.msra.mxu0 %v157
  %167 = vmatpush.bf16.msra.mxu0 %v156
  %168 = vmatpush.bf16.msra.mxu0 %v155
  %169 = vmatpush.bf16.msra.mxu0 %v154
  %170 = vmatpush.bf16.msra.mxu0 %v153
  %171 = vmatpush.bf16.msra.mxu0 %v152
  %172 = vmatpush.bf16.msra.mxu0 %v151
  %173 = vmatpush.bf16.msra.mxu0 %v150
  %174 = vmatmul.bf16.gmra.mxu0 %v116
  %v175 = vpop.f32.mrf.mxu0
  %v176 = vadd.f32 0.0, %v175
  %v177 = vpop.f32.mrf.mxu0
  %v178 = vadd.f32 0.0, %v177
  %179 = vdwg.mxu0
  %v182 = vunpack.c.l.b16 %v70
  %v183 = vunpack.c.l.b16 %v71
  %v184 = vpack.c.b16 %v183, %v182
  %v202 = vunpack.c.l.b16 %v80
  %v203 = vunpack.c.l.b16 %v81
  %v204 = vunpack.c.l.b16 %v82
  %v205 = vunpack.c.l.b16 %v83
  %v206 = vunpack.c.l.b16 %v84
  %v207 = vunpack.c.l.b16 %v85
  %v208 = vunpack.c.l.b16 %v86
  %v209 = vunpack.c.l.b16 %v87
  %v210 = vunpack.c.l.b16 %v88
  %v211 = vunpack.c.l.b16 %v89
  %v212 = vunpack.c.l.b16 %v90
  %v213 = vunpack.c.l.b16 %v91
  %v214 = vunpack.c.l.b16 %v92
  %v215 = vunpack.c.l.b16 %v93
  %v216 = vunpack.c.l.b16 %v94
  %v217 = vunpack.c.l.b16 %v95
  %v218 = vpack.c.b16 %v203, %v202
  %v219 = vpack.c.b16 %v205, %v204
  %v220 = vpack.c.b16 %v207, %v206
  %v221 = vpack.c.b16 %v209, %v208
  %v222 = vpack.c.b16 %v211, %v210
  %v223 = vpack.c.b16 %v213, %v212
  %v224 = vpack.c.b16 %v215, %v214
  %v225 = vpack.c.b16 %v217, %v216
  %234 = vmatpush.bf16.msra.mxu0 %v225
  %235 = vmatpush.bf16.msra.mxu0 %v224
  %236 = vmatpush.bf16.msra.mxu0 %v223
  %237 = vmatpush.bf16.msra.mxu0 %v222
  %238 = vmatpush.bf16.msra.mxu0 %v221
  %239 = vmatpush.bf16.msra.mxu0 %v220
  %240 = vmatpush.bf16.msra.mxu0 %v219
  %241 = vmatpush.bf16.msra.mxu0 %v218
  %242 = vmatmul.bf16.gmra.mxu0 %v184
  %v243 = vpop.f32.mrf.mxu0
  %v244 = vadd.f32 %v176, %v243
  %v245 = vpop.f32.mrf.mxu0
  %v246 = vadd.f32 %v178, %v245
  %247 = vdwg.mxu0
  %v248 = vld [vmem:[%s7] sm:$0x1]
  %v250 = vperm.slane %v248, 0
  %v252 = vadd.f32 %v244, %v250
  %v253 = vadd.f32 %v246, %v250
  %v254 = vmax.f32 %v252, 0.0
  %v255 = vmax.f32 %v253, 0.0
  %v256 = vpack.c.bf16 %v255, %v254
  %v257 = vld [vmem:[%s8] sm:$0xf]
  %v258 = vld [vmem:[%s8 + $0x4] sm:$0xf]
  %v259 = vld [vmem:[%s8 + $0x8] sm:$0xf]
  %v260 = vld [vmem:[%s8 + $0xc] sm:$0xf]
  %v261 = vld [vmem:[%s8 + $0x10] sm:$0xf]
  %v262 = vld [vmem:[%s8 + $0x14] sm:$0xf]
  %v263 = vld [vmem:[%s8 + $0x18] sm:$0xf]
  %v264 = vld [vmem:[%s8 + $0x1c] sm:$0xf]
  %v265 = vld [vmem:[%s9] sm:$0x1]
  %v267 = vperm.slane %v265, 0
  %v277 = vunpack.c.l.b16 %v257
  %v278 = vunpack.c.l.b16 %v258
  %v279 = vunpack.c.l.b16 %v259
  %v280 = vunpack.c.l.b16 %v260
  %v281 = vunpack.c.l.b16 %v261
  %v282 = vunpack.c.l.b16 %v262
  %v283 = vunpack.c.l.b16 %v263
  %v284 = vunpack.c.l.b16 %v264
  %v285 = vpack.c.b16 %v278, %v277
  %v286 = vpack.c.b16 %v280, %v279
  %v287 = vpack.c.b16 %v282, %v281
  %v288 = vpack.c.b16 %v284, %v283
  %vm293 = vcmask 523264
  %v295 = vsel %vm293, %v256, 0
  %297 = vmatpush.bf16.msra.mxu0 0
  %298 = vmatpush.bf16.msra.mxu0 0
  %299 = vmatpush.bf16.msra.mxu0 0
  %300 = vmatpush.bf16.msra.mxu0 0
  %301 = vmatpush.bf16.msra.mxu0 %v288
  %302 = vmatpush.bf16.msra.mxu0 %v287
  %303 = vmatpush.bf16.msra.mxu0 %v286
  %304 = vmatpush.bf16.msra.mxu0 %v285
  %305 = vmatmul.bf16.gmra.mxu0 %v295
  %v306 = vpop.f32.mrf.mxu0
  %v307 = vadd.f32 %v267, %v306
  %v308 = vpop.f32.mrf.mxu0
  %v309 = vadd.f32 %v267, %v308
  %310 = vdwg.mxu0
  %v311 = vmax.f32 %v307, -9.2103405
  %v312 = vmax.f32 %v309, -9.2103405
  %v313 = vmul.f32 %v311, 0.5
  %v314 = vmul.f32 %v312, 0.5
  %v315 = vmul.f32 %v313, 1.442695
  %v316 = vpow.pop %v315
  %v317 = vmul.f32 %v314, 1.442695
  %v318 = vpow.pop %v317
  %321 = vrot.lane.b32.xlu0 %v316, 108
  %v322 = vpop.permute.xlu0 %321
  %323 = vrot.lane.b32.xlu0 %v318, 108
  %v324 = vpop.permute.xlu0 %323
  %v327 = vmul.f32 %v78, %v322
  %v328 = vmul.f32 %v79, %v324
  %v329 = vadd.f32 %v307, %v327
  %v330 = vadd.f32 %v309, %v328
  %v331 = vmul.f32 %v311, 1.442695
  %v332 = vpow.pop %v331
  %v333 = vmul.f32 %v312, 1.442695
  %v334 = vpow.pop %v333
  %v335 = vmul.f32 %v307, %v307
  %v336 = vmul.f32 %v309, %v309
  %339 = vrot.lane.b32.xlu0 %v335, 20
  %v340 = vpop.permute.xlu0 %339
  %341 = vrot.lane.b32.xlu0 %v336, 20
  %v342 = vpop.permute.xlu0 %341
  %v345 = vadd.f32 %v332, %v340
  %v346 = vadd.f32 %v334, %v342
  %v347 = vsub.f32 %v345, 1.0
  %v348 = vsub.f32 %v346, 1.0
  %v349 = vsub.f32 %v347, %v311
  %v350 = vsub.f32 %v348, %v312
  %353 = vrot.lane.b32.xlu0 %v349, 108
  %v354 = vpop.permute.xlu0 %353
  %355 = vrot.lane.b32.xlu0 %v350, 108
  %v356 = vpop.permute.xlu0 %355
  %vm359 = vcmask 162816
  %v360 = vsel %vm359, %v354, 0.0
  %361 = vadd.xlane.f32.xlu0 %v360
  %v362 = vpop.xlane.xlu0 %361
  %v363 = vsel %vm359, %v356, 0.0
  %364 = vadd.xlane.f32.xlu0 %v363
  %v365 = vpop.xlane.xlu0 %364
  %v366 = vmul.f32 %v362, 0.5
  %v367 = vmul.f32 %v365, 0.5
  %v368 = vld [vmem:[%s10] sm:$0xff]
  %v369 = vld [vmem:[%s10 + $0x8] sm:$0xff]
  %v370 = vld [vmem:[%s10 + $0x10] sm:$0xf]
  %v371 = vld [vmem:[%s11] sm:$0x1]
  %v373 = vperm.slane %v371, 0
  %v376 = vsel %vm359, %v329, 0
  %v379 = vsel %vm359, %v330, 0
  %vm381 = vcmask 1043456
  %v383 = vsel %vm381, %v370, 0
  %385 = vmatpush.msra.mxu0 0.0
  %386 = vmatpush.msra.mxu0 0.0
  %387 = vmatpush.msra.mxu0 0.0
  %388 = vmatpush.msra.mxu0 0.0
  %389 = vmatpush.msra.mxu0 0.0
  %390 = vmatpush.msra.mxu0 0.0
  %391 = vmatpush.msra.mxu0 0.0
  %392 = vmatpush.msra.mxu0 0.0
  %393 = vmatpush.msra.mxu0 0.0
  %394 = vmatpush.msra.mxu0 0.0
  %395 = vmatpush.msra.mxu0 0.0
  %396 = vmatpush.msra.mxu0 0.0
  %397 = vmatpush.msra.mxu0 0.0
  %398 = vmatpush.msra.mxu0 %v383
  %399 = vmatpush.msra.mxu0 %v369
  %400 = vmatpush.msra.mxu0 %v368
  %401 = vmatmul.f32.gmra.mxu0 %v376
  %v402 = vpop.f32.mrf.mxu0
  %v403 = vadd.f32 %v373, %v402
  %404 = vmatmul.f32.gmra.mxu0 %v379
  %v405 = vpop.f32.mrf.mxu0
  %v406 = vadd.f32 %v373, %v405
  %407 = vdwg.mxu0
  %408 = vst [vmem:[%s19] sm:$0xff] %v403
  %409 = vst [vmem:[%s19 + $0x8] sm:$0xff] %v406
  %v410 = vld [vmem:[%s12] sm:$0xf]
  %v411 = vld [vmem:[%s12 + $0x4] sm:$0xf]
  %v412 = vld [vmem:[%s12 + $0x8] sm:$0xf]
  %v413 = vld [vmem:[%s12 + $0xc] sm:$0xf]
  %v414 = vld [vmem:[%s12 + $0x10] sm:$0xf]
  %v415 = vld [vmem:[%s12 + $0x14] sm:$0xf]
  %v416 = vld [vmem:[%s12 + $0x18] sm:$0xf]
  %v417 = vld [vmem:[%s12 + $0x1c] sm:$0xf]
  %v418 = vld [vmem:[%s12 + $0x20] sm:$0xf]
  %v419 = vld [vmem:[%s12 + $0x24] sm:$0xf]
  %v420 = vld [vmem:[%s12 + $0x28] sm:$0xf]
  %v421 = vld [vmem:[%s12 + $0x2c] sm:$0xf]
  %v422 = vld [vmem:[%s12 + $0x30] sm:$0xf]
  %v423 = vld [vmem:[%s12 + $0x34] sm:$0xf]
  %v424 = vld [vmem:[%s12 + $0x38] sm:$0xf]
  %v425 = vld [vmem:[%s12 + $0x3c] sm:$0xf]
  %v426 = vpack.c.bf16 %v330, %v329
  %v427 = vld [vmem:[%s13] sm:$0xf]
  %v428 = vld [vmem:[%s13 + $0x4] sm:$0xf]
  %v429 = vld [vmem:[%s13 + $0x8] sm:$0x3]
  %v433 = vunpack.c.l.b16 %v427
  %v434 = vunpack.c.l.b16 %v428
  %v435 = vunpack.c.l.b16 %v429
  %v436 = vpack.c.b16 %v434, %v433
  %v437 = vpack.c.b16 %v435, %v435
  %v440 = vsel %vm359, %v426, 0
  %vm442 = vcmask 1041408
  %v444 = vsel %vm442, %v437, 0
  %446 = vmatpush.bf16.msra.mxu0 0
  %447 = vmatpush.bf16.msra.mxu0 0
  %448 = vmatpush.bf16.msra.mxu0 0
  %449 = vmatpush.bf16.msra.mxu0 0
  %450 = vmatpush.bf16.msra.mxu0 0
  %451 = vmatpush.bf16.msra.mxu0 0
  %452 = vmatpush.bf16.msra.mxu0 %v444
  %453 = vmatpush.bf16.msra.mxu0 %v436
  %454 = vmatmul.bf16.gmra.mxu0 %v440
  %v455 = vpop.f32.mrf.mxu0
  %v456 = vadd.f32 0.0, %v455
  %v457 = vpop.f32.mrf.mxu0
  %v458 = vadd.f32 0.0, %v457
  %459 = vdwg.mxu0
  %v462 = vunpack.c.l.b16 %v67
  %v463 = vunpack.c.l.b16 %v68
  %v464 = vpack.c.b16 %v463, %v462
  %v482 = vunpack.c.l.b16 %v410
  %v483 = vunpack.c.l.b16 %v411
  %v484 = vunpack.c.l.b16 %v412
  %v485 = vunpack.c.l.b16 %v413
  %v486 = vunpack.c.l.b16 %v414
  %v487 = vunpack.c.l.b16 %v415
  %v488 = vunpack.c.l.b16 %v416
  %v489 = vunpack.c.l.b16 %v417
  %v490 = vunpack.c.l.b16 %v418
  %v491 = vunpack.c.l.b16 %v419
  %v492 = vunpack.c.l.b16 %v420
  %v493 = vunpack.c.l.b16 %v421
  %v494 = vunpack.c.l.b16 %v422
  %v495 = vunpack.c.l.b16 %v423
  %v496 = vunpack.c.l.b16 %v424
  %v497 = vunpack.c.l.b16 %v425
  %v498 = vpack.c.b16 %v483, %v482
  %v499 = vpack.c.b16 %v485, %v484
  %v500 = vpack.c.b16 %v487, %v486
  %v501 = vpack.c.b16 %v489, %v488
  %v502 = vpack.c.b16 %v491, %v490
  %v503 = vpack.c.b16 %v493, %v492
  %v504 = vpack.c.b16 %v495, %v494
  %v505 = vpack.c.b16 %v497, %v496
  %514 = vmatpush.bf16.msra.mxu0 %v505
  %515 = vmatpush.bf16.msra.mxu0 %v504
  %516 = vmatpush.bf16.msra.mxu0 %v503
  %517 = vmatpush.bf16.msra.mxu0 %v502
  %518 = vmatpush.bf16.msra.mxu0 %v501
  %519 = vmatpush.bf16.msra.mxu0 %v500
  %520 = vmatpush.bf16.msra.mxu0 %v499
  %521 = vmatpush.bf16.msra.mxu0 %v498
  %522 = vmatmul.bf16.gmra.mxu0 %v464
  %v523 = vpop.f32.mrf.mxu0
  %v524 = vadd.f32 %v456, %v523
  %v525 = vpop.f32.mrf.mxu0
  %v526 = vadd.f32 %v458, %v525
  %527 = vdwg.mxu0
  %v528 = vld [vmem:[%s14] sm:$0x1]
  %v530 = vperm.slane %v528, 0
  %v532 = vadd.f32 %v524, %v530
  %v533 = vadd.f32 %v526, %v530
  %v534 = vpack.c.bf16 %v533, %v532
  %v535 = vld [vmem:[%s15] sm:$0xf]
  %v536 = vld [vmem:[%s15 + $0x4] sm:$0xf]
  %v537 = vld [vmem:[%s15 + $0x8] sm:$0xf]
  %v538 = vld [vmem:[%s15 + $0xc] sm:$0xf]
  %v539 = vld [vmem:[%s15 + $0x10] sm:$0xf]
  %v540 = vld [vmem:[%s15 + $0x14] sm:$0xf]
  %v541 = vld [vmem:[%s15 + $0x18] sm:$0xf]
  %v542 = vld [vmem:[%s15 + $0x1c] sm:$0xf]
  %v543 = vld [vmem:[%s16] sm:$0x1]
  %v545 = vperm.slane %v543, 0
  %v555 = vunpack.c.l.b16 %v535
  %v556 = vunpack.c.l.b16 %v536
  %v557 = vunpack.c.l.b16 %v537
  %v558 = vunpack.c.l.b16 %v538
  %v559 = vunpack.c.l.b16 %v539
  %v560 = vunpack.c.l.b16 %v540
  %v561 = vunpack.c.l.b16 %v541
  %v562 = vunpack.c.l.b16 %v542
  %v563 = vpack.c.b16 %v556, %v555
  %v564 = vpack.c.b16 %v558, %v557
  %v565 = vpack.c.b16 %v560, %v559
  %v566 = vpack.c.b16 %v562, %v561
  %v572 = vsel %vm293, %v534, 0
  %574 = vmatpush.bf16.msra.mxu0 0
  %575 = vmatpush.bf16.msra.mxu0 0
  %576 = vmatpush.bf16.msra.mxu0 0
  %577 = vmatpush.bf16.msra.mxu0 0
  %578 = vmatpush.bf16.msra.mxu0 %v566
  %579 = vmatpush.bf16.msra.mxu0 %v565
  %580 = vmatpush.bf16.msra.mxu0 %v564
  %581 = vmatpush.bf16.msra.mxu0 %v563
  %582 = vmatmul.bf16.gmra.mxu0 %v572
  %v583 = vpop.f32.mrf.mxu0
  %v584 = vadd.f32 %v545, %v583
  %v585 = vpop.f32.mrf.mxu0
  %v586 = vadd.f32 %v545, %v585
  %587 = vdwg.mxu0
  %v588 = vmax.f32 %v584, -9.2103405
  %v589 = vmax.f32 %v586, -9.2103405
  %v590 = vsub.f32 %v74, %v584
  %v591 = vsub.f32 %v75, %v586
  %v592 = vmul.f32 %v590, %v590
  %v593 = vmul.f32 %v591, %v591
  %v594 = vmul.f32 %v592, -0.5
  %v595 = vmul.f32 %v593, -0.5
  %v596 = vsub.f32 0.0, %v588
  %v597 = vsub.f32 0.0, %v589
  %v598 = vmul.f32 %v596, 1.442695
  %v599 = vpow.pop %v598
  %v600 = vmul.f32 %v597, 1.442695
  %v601 = vpow.pop %v600
  %604 = vrot.lane.b32.xlu0 %v599, 108
  %v605 = vpop.permute.xlu0 %604
  %606 = vrot.lane.b32.xlu0 %v601, 108
  %v607 = vpop.permute.xlu0 %606
  %v610 = vmul.f32 %v594, %v605
  %v611 = vmul.f32 %v595, %v607
  %v612 = vmul.f32 %v588, 0.5
  %v613 = vmul.f32 %v589, 0.5
  %616 = vrot.lane.b32.xlu0 %v612, 108
  %v617 = vpop.permute.xlu0 %616
  %618 = vrot.lane.b32.xlu0 %v613, 108
  %v619 = vpop.permute.xlu0 %618
  %v622 = vsub.f32 %v610, %v617
  %v623 = vsub.f32 %v611, %v619
  %v624 = vsub.f32 %v622, 0.9189385
  %v625 = vsub.f32 %v623, 0.9189385
  %v626 = vsel %vm359, %v624, 0.0
  %627 = vadd.xlane.f32.xlu0 %v626
  %v628 = vpop.xlane.xlu0 %627
  %v629 = vsel %vm359, %v625, 0.0
  %630 = vadd.xlane.f32.xlu0 %v629
  %v631 = vpop.xlane.xlu0 %630
  %s632 = sld [smem:[#allocation2]]
  %s633 = sld [smem:[#allocation3]]
  %v634 = vstv %s632
  %v635 = vmul.f32 %v634, %v76
  %v636 = vmul.f32 %v634, %v77
  %639 = vrot.lane.b32.xlu0 %v635, 40
  %v640 = vpop.permute.xlu0 %639
  %641 = vrot.lane.b32.xlu0 %v636, 40
  %v642 = vpop.permute.xlu0 %641
  %v645 = vadd.f32 %v584, %v640
  %v646 = vadd.f32 %v586, %v642
  %v647 = vstv %s633
  %v648 = vadd.f32 %v645, %v647
  %v649 = vadd.f32 %v646, %v647
  %v650 = vadd.f32 %v584, %v647
  %v651 = vadd.f32 %v586, %v647
  %v652 = vmul.f32 %v650, 1.442695
  %v653 = vpow.pop %v652
  %v654 = vmul.f32 %v651, 1.442695
  %v655 = vpow.pop %v654
  %v656 = vmul.f32 %v648, 1.442695
  %v657 = vpow.pop %v656
  %v658 = vmul.f32 %v649, 1.442695
  %v659 = vpow.pop %v658
  %s660 = sadd.f32 %s632, 1e-06
  %v661 = vstv %s660
  %v662 = vrcp.pop %v661
  %v663 = vmul.f32 %v661, %v662
  %v664 = vsub.f32 1.0, %v663
  %v665 = vmul.f32 %v662, %v664
  %v666 = vadd.f32 %v662, %v665
  %vm667 = vweird.f32 %v661
  %vm668 = vweird.f32 %v662
  %vm669 = vmor %vm667, %vm668
  %v670 = vsel %vm669, %v662, %v666
  %v671 = vand.u32 2147483647, %v661
  %vm672 = vcmp.eq.f32.partialorder %v671, 8.507059e+37
  %v673 = vand.u32 %v661, 2147483648
  %v674 = vor.u32 1.1754944e-38, %v673
  %v675 = vsel %vm672, %v674, %v670
  %s676 = vtos %v675
  %v677 = vsub.f32 %v653, %v657
  %v678 = vsub.f32 %v655, %v659
  %v679 = vstv %s676
  %v680 = vmul.f32 %v679, %v677
  %v681 = vmul.f32 %v679, %v678
  %v682 = vadd.f32 %v648, %v680
  %v683 = vadd.f32 %v649, %v681
  %v684 = vlaneseq
  %v685 = vand.u32 %v684, 127
  %vm686 = vcmp.eq.s32.totalorder %v685, 0
  %688 = vset.pattern.permute.xlu0 40
  %689 = vperm.xlu0 %688, %v682
  %v690 = vpop.permute.xlu0 %689
  %693 = vset.pattern.permute.xlu0 40
  %694 = vperm.xlu0 %693, %v683
  %v695 = vpop.permute.xlu0 %694
  %v697 = vsel %vm686, %v690, 0.0
  %v698 = vsel %vm686, %v695, 0.0
  %vm699 = vcmp.eq.s32.totalorder %v685, 1
  %v700 = vsel %vm699, %v628, 0.0
  %v701 = vsel %vm699, %v631, 0.0
  %v702 = vadd.f32 %v697, %v700
  %v703 = vadd.f32 %v698, %v701
  %vm704 = vcmp.eq.s32.totalorder %v685, 2
  %v705 = vsel %vm704, %v366, 0.0
  %v706 = vsel %vm704, %v367, 0.0
  %v707 = vadd.f32 %v702, %v705
  %v708 = vadd.f32 %v703, %v706
  %709 = vst [vmem:[%s20] sm:$0xff] %v707
  %710 = vst [vmem:[%s20 + $0x8] sm:$0xff] %v708
  // Predicated region
  $region78: #{_lambda_.6} parent=0 // pred_check
    _
  $region79: #{_lambda_.6} parent=0 // pred_check_branch
    %712 = sbr.rel (0) target = $region81
  $region80: #{_lambda_.6} parent=0 // pred_region
    _
  $region81: #{_lambda_.6} parent=0 // pred_fallthru
    _
  // Predicated region
  $region82: #{_lambda_.6} parent=0 // pred_check
    _
  $region83: #{_lambda_.6} parent=0 // pred_check_branch
    %714 = sbr.rel (0) target = $region85
  $region84: #{_lambda_.6} parent=0 // pred_region
    _
  $region85: #{_lambda_.6} parent=0 // pred_fallthru
    _
  // Predicated region
  $region86: #{_lambda_.6} parent=0 // pred_check
    _
  $region87: #{_lambda_.6} parent=0 // pred_check_branch
    %716 = sbr.rel (0) target = $region89
  $region88: #{_lambda_.6} parent=0 // pred_region
    _
  $region89: #{_lambda_.6} parent=0 // pred_fallthru
    _
  // Predicated region
  $region90: #{_lambda_.6} parent=0 // pred_check
    _
  $region91: #{_lambda_.6} parent=0 // pred_check_branch
    %718 = sbr.rel (0) target = $region93
  $region92: #{_lambda_.6} parent=0 // pred_region
    _
  $region93: #{_lambda_.6} parent=0 // pred_fallthru
    _

// kernel: _lambda_.7
$region0: #{_lambda_.7}
  #allocation0 [shape = 'u32[]', space=smem, size = 0x4, offset = 0x4, fixed_abs, tag = 'smem constant byte address 0x4 - core index']
  #allocation1 [shape = 'u32[72,128]{1,0:T(1,128)}', space=vmem, size = 0x9000, scoped, tag = 'internal scratch']
  #allocation2 [shape = 'f32[2,20]{1,0:T(2,128)}', space=vmem, size = 0x400, scoped, tag = 'scratch operand']
  #allocation3 [shape = 'f32[2,20]{1,0:T(2,128)}', space=vmem, size = 0x400, scoped, tag = 'scratch operand']
  %s0 = inlined_call_operand.vmem [shape: f32[8,2,128], index: 0, kind: input, shape index: {}, may-alias: {0,1}]
  %s1 = inlined_call_operand.vmem [shape: f32[8,2,128], index: 1, kind: input, shape index: {}, may-alias: {0,1}]
  %s2 = inlined_call_operand.vmem [shape: f32[2,20,60], index: 2, kind: input, shape index: {}]
  %s3 = inlined_call_operand.vmem [shape: f32[2,1,60], index: 3, kind: input, shape index: {}]
  %s4 = inlined_call_operand.vmem [shape: f32[2,20,5], index: 4, kind: input, shape index: {}]
  %s5 = inlined_call_operand.vmem [shape: f32[1,5], index: 5, kind: input, shape index: {}]
  %s6 = inlined_call_operand.vmem [shape: f32[2,1], index: 6, kind: output, shape index: {}]
  %s7 = sld [smem:[#allocation0]]
  $region42: #{_lambda_.7} parent=0
    _
  %s9 = ssub.s32 1, %s7
  %s10 = scalar_select 0, %s9, %s7
  // Predicated region
  $region2: #{_lambda_.7} parent=0 // pred_check
    _
  $region3: #{_lambda_.7} parent=0 // pred_check_branch
    %12 = sbr.rel (0) target = $region5
  $region4: #{_lambda_.7} parent=0 // pred_region
    _
  $region5: #{_lambda_.7} parent=0 // pred_fallthru
    _
  // Predicated region
  $region6: #{_lambda_.7} parent=0 // pred_check
    _
  $region7: #{_lambda_.7} parent=0 // pred_check_branch
    %14 = sbr.rel (0) target = $region9
  $region8: #{_lambda_.7} parent=0 // pred_region
    %s15 = ssub.s32 0, 0
    %s16 = smul.u32 8, %s15
    %p17 = scmp.lt.s32.totalorder %s16, 7
    %s18 = scalar_select %p17, %s16, 7
    %s19 = smul.addr %s18, 2
    %s20 = scalar_lea.vmem %s1, %s19
    %s21 = ssub.s32 0, 0
    %s22 = smul.u32 8, %s21
  $region9: #{_lambda_.7} parent=0 // pred_fallthru
    _
  // Predicated region
  $region10: #{_lambda_.7} parent=0 // pred_check
    _
  $region11: #{_lambda_.7} parent=0 // pred_check_branch
    %24 = sbr.rel (0) target = $region13
  $region12: #{_lambda_.7} parent=0 // pred_region
    _
  $region13: #{_lambda_.7} parent=0 // pred_fallthru
    _
  // Predicated region
  $region14: #{_lambda_.7} parent=0 // pred_check
    _
  $region15: #{_lambda_.7} parent=0 // pred_check_branch
    %26 = sbr.rel (0) target = $region17
  $region16: #{_lambda_.7} parent=0 // pred_region
    _
  $region17: #{_lambda_.7} parent=0 // pred_fallthru
    _
  // Predicated region
  $region18: #{_lambda_.7} parent=0 // pred_check
    _
  $region19: #{_lambda_.7} parent=0 // pred_check_branch
    %28 = sbr.rel (0) target = $region21
  $region20: #{_lambda_.7} parent=0 // pred_region
    _
  $region21: #{_lambda_.7} parent=0 // pred_fallthru
    _
  // Predicated region
  $region22: #{_lambda_.7} parent=0 // pred_check
    _
  $region23: #{_lambda_.7} parent=0 // pred_check_branch
    %30 = sbr.rel (0) target = $region25
  $region24: #{_lambda_.7} parent=0 // pred_region
    _
  $region25: #{_lambda_.7} parent=0 // pred_fallthru
    _
  %s31 = ssub.s32 0, 0
  %s32 = smul.u32 8, %s31
  %p33 = scmp.lt.s32.totalorder %s32, 7
  %s34 = scalar_select %p33, %s32, 7
  %s35 = smul.addr %s34, 2
  %s36 = scalar_lea.vmem %s1, %s35
  %s37 = ssub.s32 0, 0
  %s38 = smul.u32 8, %s37
  %p39 = scmp.lt.s32.totalorder %s38, 7
  %s40 = scalar_select %p39, %s38, 7
  %s41 = smul.addr %s40, 2
  %s42 = scalar_lea.vmem %s1, %s41
  %s43 = ssub.s32 0, 0
  %s44 = smul.u32 8, %s43
  %p45 = scmp.eq.s32.totalorder 0, 0
  // Predicated region
  $region26: #{_lambda_.7} parent=0 // pred_check
    %p46 = pneg %p45
  $region27: #{_lambda_.7} parent=0 // pred_check_branch
    %48 = sbr.rel (%p46) target = $region29
  $region28: #{_lambda_.7} parent=0 // pred_region
    %vm49 = vcmask 156672
    %50 = vst.msk [vmem:[#allocation2] sm:$0x3] %vm49, 0.0
    %51 = vst.msk [vmem:[#allocation3] sm:$0x3] %vm49, 0.0
  $region29: #{_lambda_.7} parent=0 // pred_fallthru
    _
  %v52 = vld [vmem:[%s2] sm:$0xff]
  %v53 = vld [vmem:[%s2 + $0x8] sm:$0xff]
  %v54 = vld [vmem:[%s2 + $0x10] sm:$0xf]
  %v55 = vld [vmem:[%s3] sm:$0x1]
  %s56 = scalar_lea.vmem %s2, 24
  %v57 = vld [vmem:[%s56] sm:$0xff]
  %v58 = vld [vmem:[%s56 + $0x8] sm:$0xff]
  %v59 = vld [vmem:[%s56 + $0x10] sm:$0xf]
  %s60 = scalar_lea.vmem %s3, 1
  %v61 = vld [vmem:[%s60] sm:$0x1]
  %v62 = vld [vmem:[#allocation2] sm:$0x3]
  %v63 = vld [vmem:[#allocation3] sm:$0x3]
  %v64 = vld [vmem:[%s0] sm:$0x3]
  %s65 = scalar_lea.vmem %s42, 14
  %v66 = vld [vmem:[%s65] sm:$0x3]
  %v68 = vperm.slane %v55, 0
  %vm70 = vcmask 162816
  %v72 = vsel %vm70, %v62, 0
  %vm74 = vcmask 1043456
  %v76 = vsel %vm74, %v54, 0
  %78 = vmatpush.msra.mxu0 0.0
  %79 = vmatpush.msra.mxu0 0.0
  %80 = vmatpush.msra.mxu0 0.0
  %81 = vmatpush.msra.mxu0 0.0
  %82 = vmatpush.msra.mxu0 0.0
  %83 = vmatpush.msra.mxu0 0.0
  %84 = vmatpush.msra.mxu0 0.0
  %85 = vmatpush.msra.mxu0 0.0
  %86 = vmatpush.msra.mxu0 0.0
  %87 = vmatpush.msra.mxu0 0.0
  %88 = vmatpush.msra.mxu0 0.0
  %89 = vmatpush.msra.mxu0 0.0
  %90 = vmatpush.msra.mxu0 0.0
  %91 = vmatpush.msra.mxu0 %v76
  %92 = vmatpush.msra.mxu0 %v53
  %93 = vmatpush.msra.mxu0 %v52
  %94 = vmatmul.f32.gmra.mxu0 %v72
  %v95 = vpop.f32.mrf.mxu0
  %v96 = vadd.f32 %v68, %v95
  %97 = vdwg.mxu0
  %v98 = vadd.f32 %v64, %v96
  %v99 = vxor.u32 %v98, 2147483648
  %v100 = vmul.f32 %v99, 1.442695
  %v101 = vpow.pop %v100
  %v102 = vadd.f32 %v101, 1.0
  %v103 = vrcp.pop %v102
  %v104 = vmul.f32 %v102, %v103
  %v105 = vsub.f32 1.0, %v104
  %v106 = vmul.f32 %v103, %v105
  %v107 = vadd.f32 %v103, %v106
  %vm108 = vweird.f32 %v102
  %vm109 = vweird.f32 %v103
  %vm110 = vmor %vm108, %vm109
  %v111 = vsel %vm110, %v103, %v107
  %v112 = vand.u32 2147483647, %v102
  %vm113 = vcmp.eq.f32.partialorder %v112, 8.507059e+37
  %v114 = vand.u32 %v102, 2147483648
  %v115 = vor.u32 1.1754944e-38, %v114
  %v116 = vsel %vm113, %v115, %v111
  %v117 = vmul.f32 1.0, %v116
  %119 = vrot.lane.b32.xlu0 %v96, 88
  %v120 = vpop.permute.xlu0 %119
  %v122 = vmul.f32 %v117, %v120
  %124 = vrot.lane.b32.xlu0 %v122, 40
  %v125 = vpop.permute.xlu0 %124
  %v127 = vadd.f32 %v64, %v125
  %v128 = vtanh.pop %v127
  %v129 = vsub.f32 1.0, %v117
  %131 = vrot.lane.b32.xlu0 %v128, 108
  %v132 = vpop.permute.xlu0 %131
  %v134 = vmul.f32 %v129, %v132
  %135 = vrot.lane.b32.xlu0 %v62, 20
  %v136 = vpop.permute.xlu0 %135
  %v138 = vmul.f32 %v117, %v136
  %v139 = vadd.f32 %v134, %v138
  %v141 = vperm.slane %v61, 0
  %v144 = vsel %vm70, %v63, 0
  %v147 = vsel %vm74, %v59, 0
  %149 = vmatpush.msra.mxu0 0.0
  %150 = vmatpush.msra.mxu0 0.0
  %151 = vmatpush.msra.mxu0 0.0
  %152 = vmatpush.msra.mxu0 0.0
  %153 = vmatpush.msra.mxu0 0.0
  %154 = vmatpush.msra.mxu0 0.0
  %155 = vmatpush.msra.mxu0 0.0
  %156 = vmatpush.msra.mxu0 0.0
  %157 = vmatpush.msra.mxu0 0.0
  %158 = vmatpush.msra.mxu0 0.0
  %159 = vmatpush.msra.mxu0 0.0
  %160 = vmatpush.msra.mxu0 0.0
  %161 = vmatpush.msra.mxu0 0.0
  %162 = vmatpush.msra.mxu0 %v147
  %163 = vmatpush.msra.mxu0 %v58
  %164 = vmatpush.msra.mxu0 %v57
  %165 = vmatmul.f32.gmra.mxu0 %v144
  %v166 = vpop.f32.mrf.mxu0
  %v167 = vadd.f32 %v141, %v166
  %168 = vdwg.mxu0
  %170 = vrot.lane.b32.xlu0 %v167, 60
  %v171 = vpop.permute.xlu0 %170
  %v173 = vadd.f32 %v66, %v171
  %v174 = vxor.u32 %v173, 2147483648
  %v175 = vmul.f32 %v174, 1.442695
  %v176 = vpow.pop %v175
  %v177 = vadd.f32 %v176, 1.0
  %v178 = vrcp.pop %v177
  %v179 = vmul.f32 %v177, %v178
  %v180 = vsub.f32 1.0, %v179
  %v181 = vmul.f32 %v178, %v180
  %v182 = vadd.f32 %v178, %v181
  %vm183 = vweird.f32 %v177
  %vm184 = vweird.f32 %v178
  %vm185 = vmor %vm183, %vm184
  %v186 = vsel %vm185, %v178, %v182
  %v187 = vand.u32 2147483647, %v177
  %vm188 = vcmp.eq.f32.partialorder %v187, 8.507059e+37
  %v189 = vand.u32 %v177, 2147483648
  %v190 = vor.u32 1.1754944e-38, %v189
  %v191 = vsel %vm188, %v190, %v186
  %v192 = vmul.f32 1.0, %v191
  %193 = vrot.lane.b32.xlu0 %v167, 20
  %v194 = vpop.permute.xlu0 %193
  %v196 = vmul.f32 %v192, %v194
  %198 = vrot.lane.b32.xlu0 %v196, 40
  %v199 = vpop.permute.xlu0 %198
  %v201 = vadd.f32 %v66, %v199
  %v202 = vtanh.pop %v201
  %v203 = vsub.f32 1.0, %v192
  %205 = vrot.lane.b32.xlu0 %v202, 108
  %v206 = vpop.permute.xlu0 %205
  %v208 = vmul.f32 %v203, %v206
  %209 = vrot.lane.b32.xlu0 %v63, 80
  %v210 = vpop.permute.xlu0 %209
  %v212 = vmul.f32 %v192, %v210
  %v213 = vadd.f32 %v208, %v212
  %s214 = scalar_lea.vmem %s0, 2
  %v215 = vld [vmem:[%s214] sm:$0x3]
  %s216 = scalar_lea.vmem %s42, 12
  %v217 = vld [vmem:[%s216] sm:$0x3]
  %219 = vrot.lane.b32.xlu0 %v139, 108
  %v220 = vpop.permute.xlu0 %219
  %v221 = vsel %vm70, %v220, 0
  %223 = vmatpush.msra.mxu0 0.0
  %224 = vmatpush.msra.mxu0 0.0
  %225 = vmatpush.msra.mxu0 0.0
  %226 = vmatpush.msra.mxu0 0.0
  %227 = vmatpush.msra.mxu0 0.0
  %228 = vmatpush.msra.mxu0 0.0
  %229 = vmatpush.msra.mxu0 0.0
  %230 = vmatpush.msra.mxu0 0.0
  %231 = vmatpush.msra.mxu0 0.0
  %232 = vmatpush.msra.mxu0 0.0
  %233 = vmatpush.msra.mxu0 0.0
  %234 = vmatpush.msra.mxu0 0.0
  %235 = vmatpush.msra.mxu0 0.0
  %236 = vmatpush.msra.mxu0 %v76
  %237 = vmatpush.msra.mxu0 %v53
  %238 = vmatpush.msra.mxu0 %v52
  %239 = vmatmul.f32.gmra.mxu0 %v221
  %v240 = vpop.f32.mrf.mxu0
  %v241 = vadd.f32 %v68, %v240
  %242 = vdwg.mxu0
  %v243 = vadd.f32 %v215, %v241
  %v244 = vxor.u32 %v243, 2147483648
  %v245 = vmul.f32 %v244, 1.442695
  %v246 = vpow.pop %v245
  %v247 = vadd.f32 %v246, 1.0
  %v248 = vrcp.pop %v247
  %v249 = vmul.f32 %v247, %v248
  %v250 = vsub.f32 1.0, %v249
  %v251 = vmul.f32 %v248, %v250
  %v252 = vadd.f32 %v248, %v251
  %vm253 = vweird.f32 %v247
  %vm254 = vweird.f32 %v248
  %vm255 = vmor %vm253, %vm254
  %v256 = vsel %vm255, %v248, %v252
  %v257 = vand.u32 2147483647, %v247
  %vm258 = vcmp.eq.f32.partialorder %v257, 8.507059e+37
  %v259 = vand.u32 %v247, 2147483648
  %v260 = vor.u32 1.1754944e-38, %v259
  %v261 = vsel %vm258, %v260, %v256
  %v262 = vmul.f32 1.0, %v261
  %264 = vrot.lane.b32.xlu0 %v241, 88
  %v265 = vpop.permute.xlu0 %264
  %v267 = vmul.f32 %v262, %v265
  %269 = vrot.lane.b32.xlu0 %v267, 40
  %v270 = vpop.permute.xlu0 %269
  %v272 = vadd.f32 %v215, %v270
  %v273 = vtanh.pop %v272
  %v274 = vsub.f32 1.0, %v262
  %276 = vrot.lane.b32.xlu0 %v273, 108
  %v277 = vpop.permute.xlu0 %276
  %v279 = vmul.f32 %v274, %v277
  %v280 = vmul.f32 %v262, %v139
  %v281 = vadd.f32 %v279, %v280
  %283 = vrot.lane.b32.xlu0 %v213, 48
  %v284 = vpop.permute.xlu0 %283
  %v285 = vsel %vm70, %v284, 0
  %287 = vmatpush.msra.mxu0 0.0
  %288 = vmatpush.msra.mxu0 0.0
  %289 = vmatpush.msra.mxu0 0.0
  %290 = vmatpush.msra.mxu0 0.0
  %291 = vmatpush.msra.mxu0 0.0
  %292 = vmatpush.msra.mxu0 0.0
  %293 = vmatpush.msra.mxu0 0.0
  %294 = vmatpush.msra.mxu0 0.0
  %295 = vmatpush.msra.mxu0 0.0
  %296 = vmatpush.msra.mxu0 0.0
  %297 = vmatpush.msra.mxu0 0.0
  %298 = vmatpush.msra.mxu0 0.0
  %299 = vmatpush.msra.mxu0 0.0
  %300 = vmatpush.msra.mxu0 %v147
  %301 = vmatpush.msra.mxu0 %v58
  %302 = vmatpush.msra.mxu0 %v57
  %303 = vmatmul.f32.gmra.mxu0 %v285
  %v304 = vpop.f32.mrf.mxu0
  %v305 = vadd.f32 %v141, %v304
  %306 = vdwg.mxu0
  %308 = vrot.lane.b32.xlu0 %v305, 60
  %v309 = vpop.permute.xlu0 %308
  %v311 = vadd.f32 %v217, %v309
  %v312 = vxor.u32 %v311, 2147483648
  %v313 = vmul.f32 %v312, 1.442695
  %v314 = vpow.pop %v313
  %v315 = vadd.f32 %v314, 1.0
  %v316 = vrcp.pop %v315
  %v317 = vmul.f32 %v315, %v316
  %v318 = vsub.f32 1.0, %v317
  %v319 = vmul.f32 %v316, %v318
  %v320 = vadd.f32 %v316, %v319
  %vm321 = vweird.f32 %v315
  %vm322 = vweird.f32 %v316
  %vm323 = vmor %vm321, %vm322
  %v324 = vsel %vm323, %v316, %v320
  %v325 = vand.u32 2147483647, %v315
  %vm326 = vcmp.eq.f32.partialorder %v325, 8.507059e+37
  %v327 = vand.u32 %v315, 2147483648
  %v328 = vor.u32 1.1754944e-38, %v327
  %v329 = vsel %vm326, %v328, %v324
  %v330 = vmul.f32 1.0, %v329
  %331 = vrot.lane.b32.xlu0 %v305, 20
  %v332 = vpop.permute.xlu0 %331
  %v334 = vmul.f32 %v330, %v332
  %336 = vrot.lane.b32.xlu0 %v334, 40
  %v337 = vpop.permute.xlu0 %336
  %v339 = vadd.f32 %v217, %v337
  %v340 = vtanh.pop %v339
  %v341 = vsub.f32 1.0, %v330
  %343 = vrot.lane.b32.xlu0 %v340, 108
  %v344 = vpop.permute.xlu0 %343
  %v346 = vmul.f32 %v341, %v344
  %v347 = vmul.f32 %v330, %v213
  %v348 = vadd.f32 %v346, %v347
  %s349 = scalar_lea.vmem %s0, 4
  %v350 = vld [vmem:[%s349] sm:$0x3]
  %s351 = scalar_lea.vmem %s42, 10
  %v352 = vld [vmem:[%s351] sm:$0x3]
  %354 = vrot.lane.b32.xlu0 %v281, 108
  %v355 = vpop.permute.xlu0 %354
  %v356 = vsel %vm70, %v355, 0
  %358 = vmatpush.msra.mxu0 0.0
  %359 = vmatpush.msra.mxu0 0.0
  %360 = vmatpush.msra.mxu0 0.0
  %361 = vmatpush.msra.mxu0 0.0
  %362 = vmatpush.msra.mxu0 0.0
  %363 = vmatpush.msra.mxu0 0.0
  %364 = vmatpush.msra.mxu0 0.0
  %365 = vmatpush.msra.mxu0 0.0
  %366 = vmatpush.msra.mxu0 0.0
  %367 = vmatpush.msra.mxu0 0.0
  %368 = vmatpush.msra.mxu0 0.0
  %369 = vmatpush.msra.mxu0 0.0
  %370 = vmatpush.msra.mxu0 0.0
  %371 = vmatpush.msra.mxu0 %v76
  %372 = vmatpush.msra.mxu0 %v53
  %373 = vmatpush.msra.mxu0 %v52
  %374 = vmatmul.f32.gmra.mxu0 %v356
  %v375 = vpop.f32.mrf.mxu0
  %v376 = vadd.f32 %v68, %v375
  %377 = vdwg.mxu0
  %v378 = vadd.f32 %v350, %v376
  %v379 = vxor.u32 %v378, 2147483648
  %v380 = vmul.f32 %v379, 1.442695
  %v381 = vpow.pop %v380
  %v382 = vadd.f32 %v381, 1.0
  %v383 = vrcp.pop %v382
  %v384 = vmul.f32 %v382, %v383
  %v385 = vsub.f32 1.0, %v384
  %v386 = vmul.f32 %v383, %v385
  %v387 = vadd.f32 %v383, %v386
  %vm388 = vweird.f32 %v382
  %vm389 = vweird.f32 %v383
  %vm390 = vmor %vm388, %vm389
  %v391 = vsel %vm390, %v383, %v387
  %v392 = vand.u32 2147483647, %v382
  %vm393 = vcmp.eq.f32.partialorder %v392, 8.507059e+37
  %v394 = vand.u32 %v382, 2147483648
  %v395 = vor.u32 1.1754944e-38, %v394
  %v396 = vsel %vm393, %v395, %v391
  %v397 = vmul.f32 1.0, %v396
  %399 = vrot.lane.b32.xlu0 %v376, 88
  %v400 = vpop.permute.xlu0 %399
  %v402 = vmul.f32 %v397, %v400
  %404 = vrot.lane.b32.xlu0 %v402, 40
  %v405 = vpop.permute.xlu0 %404
  %v407 = vadd.f32 %v350, %v405
  %v408 = vtanh.pop %v407
  %v409 = vsub.f32 1.0, %v397
  %411 = vrot.lane.b32.xlu0 %v408, 108
  %v412 = vpop.permute.xlu0 %411
  %v414 = vmul.f32 %v409, %v412
  %v415 = vmul.f32 %v397, %v281
  %v416 = vadd.f32 %v414, %v415
  %418 = vrot.lane.b32.xlu0 %v348, 48
  %v419 = vpop.permute.xlu0 %418
  %v420 = vsel %vm70, %v419, 0
  %422 = vmatpush.msra.mxu0 0.0
  %423 = vmatpush.msra.mxu0 0.0
  %424 = vmatpush.msra.mxu0 0.0
  %425 = vmatpush.msra.mxu0 0.0
  %426 = vmatpush.msra.mxu0 0.0
  %427 = vmatpush.msra.mxu0 0.0
  %428 = vmatpush.msra.mxu0 0.0
  %429 = vmatpush.msra.mxu0 0.0
  %430 = vmatpush.msra.mxu0 0.0
  %431 = vmatpush.msra.mxu0 0.0
  %432 = vmatpush.msra.mxu0 0.0
  %433 = vmatpush.msra.mxu0 0.0
  %434 = vmatpush.msra.mxu0 0.0
  %435 = vmatpush.msra.mxu0 %v147
  %436 = vmatpush.msra.mxu0 %v58
  %437 = vmatpush.msra.mxu0 %v57
  %438 = vmatmul.f32.gmra.mxu0 %v420
  %v439 = vpop.f32.mrf.mxu0
  %v440 = vadd.f32 %v141, %v439
  %441 = vdwg.mxu0
  %443 = vrot.lane.b32.xlu0 %v440, 60
  %v444 = vpop.permute.xlu0 %443
  %v446 = vadd.f32 %v352, %v444
  %v447 = vxor.u32 %v446, 2147483648
  %v448 = vmul.f32 %v447, 1.442695
  %v449 = vpow.pop %v448
  %v450 = vadd.f32 %v449, 1.0
  %v451 = vrcp.pop %v450
  %v452 = vmul.f32 %v450, %v451
  %v453 = vsub.f32 1.0, %v452
  %v454 = vmul.f32 %v451, %v453
  %v455 = vadd.f32 %v451, %v454
  %vm456 = vweird.f32 %v450
  %vm457 = vweird.f32 %v451
  %vm458 = vmor %vm456, %vm457
  %v459 = vsel %vm458, %v451, %v455
  %v460 = vand.u32 2147483647, %v450
  %vm461 = vcmp.eq.f32.partialorder %v460, 8.507059e+37
  %v462 = vand.u32 %v450, 2147483648
  %v463 = vor.u32 1.1754944e-38, %v462
  %v464 = vsel %vm461, %v463, %v459
  %v465 = vmul.f32 1.0, %v464
  %466 = vrot.lane.b32.xlu0 %v440, 20
  %v467 = vpop.permute.xlu0 %466
  %v469 = vmul.f32 %v465, %v467
  %471 = vrot.lane.b32.xlu0 %v469, 40
  %v472 = vpop.permute.xlu0 %471
  %v474 = vadd.f32 %v352, %v472
  %v475 = vtanh.pop %v474
  %v476 = vsub.f32 1.0, %v465
  %478 = vrot.lane.b32.xlu0 %v475, 108
  %v479 = vpop.permute.xlu0 %478
  %v481 = vmul.f32 %v476, %v479
  %v482 = vmul.f32 %v465, %v348
  %v483 = vadd.f32 %v481, %v482
  %s484 = scalar_lea.vmem %s0, 6
  %v485 = vld [vmem:[%s484] sm:$0x3]
  %s486 = scalar_lea.vmem %s42, 8
  %v487 = vld [vmem:[%s486] sm:$0x3]
  %489 = vrot.lane.b32.xlu0 %v416, 108
  %v490 = vpop.permute.xlu0 %489
  %v491 = vsel %vm70, %v490, 0
  %493 = vmatpush.msra.mxu0 0.0
  %494 = vmatpush.msra.mxu0 0.0
  %495 = vmatpush.msra.mxu0 0.0
  %496 = vmatpush.msra.mxu0 0.0
  %497 = vmatpush.msra.mxu0 0.0
  %498 = vmatpush.msra.mxu0 0.0
  %499 = vmatpush.msra.mxu0 0.0
  %500 = vmatpush.msra.mxu0 0.0
  %501 = vmatpush.msra.mxu0 0.0
  %502 = vmatpush.msra.mxu0 0.0
  %503 = vmatpush.msra.mxu0 0.0
  %504 = vmatpush.msra.mxu0 0.0
  %505 = vmatpush.msra.mxu0 0.0
  %506 = vmatpush.msra.mxu0 %v76
  %507 = vmatpush.msra.mxu0 %v53
  %508 = vmatpush.msra.mxu0 %v52
  %509 = vmatmul.f32.gmra.mxu0 %v491
  %v510 = vpop.f32.mrf.mxu0
  %v511 = vadd.f32 %v68, %v510
  %512 = vdwg.mxu0
  %v513 = vadd.f32 %v485, %v511
  %v514 = vxor.u32 %v513, 2147483648
  %v515 = vmul.f32 %v514, 1.442695
  %v516 = vpow.pop %v515
  %v517 = vadd.f32 %v516, 1.0
  %v518 = vrcp.pop %v517
  %v519 = vmul.f32 %v517, %v518
  %v520 = vsub.f32 1.0, %v519
  %v521 = vmul.f32 %v518, %v520
  %v522 = vadd.f32 %v518, %v521
  %vm523 = vweird.f32 %v517
  %vm524 = vweird.f32 %v518
  %vm525 = vmor %vm523, %vm524
  %v526 = vsel %vm525, %v518, %v522
  %v527 = vand.u32 2147483647, %v517
  %vm528 = vcmp.eq.f32.partialorder %v527, 8.507059e+37
  %v529 = vand.u32 %v517, 2147483648
  %v530 = vor.u32 1.1754944e-38, %v529
  %v531 = vsel %vm528, %v530, %v526
  %v532 = vmul.f32 1.0, %v531
  %534 = vrot.lane.b32.xlu0 %v511, 88
  %v535 = vpop.permute.xlu0 %534
  %v537 = vmul.f32 %v532, %v535
  %539 = vrot.lane.b32.xlu0 %v537, 40
  %v540 = vpop.permute.xlu0 %539
  %v542 = vadd.f32 %v485, %v540
  %v543 = vtanh.pop %v542
  %v544 = vsub.f32 1.0, %v532
  %546 = vrot.lane.b32.xlu0 %v543, 108
  %v547 = vpop.permute.xlu0 %546
  %v549 = vmul.f32 %v544, %v547
  %v550 = vmul.f32 %v532, %v416
  %v551 = vadd.f32 %v549, %v550
  %553 = vrot.lane.b32.xlu0 %v483, 48
  %v554 = vpop.permute.xlu0 %553
  %v555 = vsel %vm70, %v554, 0
  %557 = vmatpush.msra.mxu0 0.0
  %558 = vmatpush.msra.mxu0 0.0
  %559 = vmatpush.msra.mxu0 0.0
  %560 = vmatpush.msra.mxu0 0.0
  %561 = vmatpush.msra.mxu0 0.0
  %562 = vmatpush.msra.mxu0 0.0
  %563 = vmatpush.msra.mxu0 0.0
  %564 = vmatpush.msra.mxu0 0.0
  %565 = vmatpush.msra.mxu0 0.0
  %566 = vmatpush.msra.mxu0 0.0
  %567 = vmatpush.msra.mxu0 0.0
  %568 = vmatpush.msra.mxu0 0.0
  %569 = vmatpush.msra.mxu0 0.0
  %570 = vmatpush.msra.mxu0 %v147
  %571 = vmatpush.msra.mxu0 %v58
  %572 = vmatpush.msra.mxu0 %v57
  %573 = vmatmul.f32.gmra.mxu0 %v555
  %v574 = vpop.f32.mrf.mxu0
  %v575 = vadd.f32 %v141, %v574
  %576 = vdwg.mxu0
  %578 = vrot.lane.b32.xlu0 %v575, 60
  %v579 = vpop.permute.xlu0 %578
  %v581 = vadd.f32 %v487, %v579
  %v582 = vxor.u32 %v581, 2147483648
  %v583 = vmul.f32 %v582, 1.442695
  %v584 = vpow.pop %v583
  %v585 = vadd.f32 %v584, 1.0
  %v586 = vrcp.pop %v585
  %v587 = vmul.f32 %v585, %v586
  %v588 = vsub.f32 1.0, %v587
  %v589 = vmul.f32 %v586, %v588
  %v590 = vadd.f32 %v586, %v589
  %vm591 = vweird.f32 %v585
  %vm592 = vweird.f32 %v586
  %vm593 = vmor %vm591, %vm592
  %v594 = vsel %vm593, %v586, %v590
  %v595 = vand.u32 2147483647, %v585
  %vm596 = vcmp.eq.f32.partialorder %v595, 8.507059e+37
  %v597 = vand.u32 %v585, 2147483648
  %v598 = vor.u32 1.1754944e-38, %v597
  %v599 = vsel %vm596, %v598, %v594
  %v600 = vmul.f32 1.0, %v599
  %601 = vrot.lane.b32.xlu0 %v575, 20
  %v602 = vpop.permute.xlu0 %601
  %v604 = vmul.f32 %v600, %v602
  %606 = vrot.lane.b32.xlu0 %v604, 40
  %v607 = vpop.permute.xlu0 %606
  %v609 = vadd.f32 %v487, %v607
  %v610 = vtanh.pop %v609
  %v611 = vsub.f32 1.0, %v600
  %613 = vrot.lane.b32.xlu0 %v610, 108
  %v614 = vpop.permute.xlu0 %613
  %v616 = vmul.f32 %v611, %v614
  %v617 = vmul.f32 %v600, %v483
  %v618 = vadd.f32 %v616, %v617
  %s619 = scalar_lea.vmem %s0, 8
  %v620 = vld [vmem:[%s619] sm:$0x3]
  %s621 = scalar_lea.vmem %s42, 6
  %v622 = vld [vmem:[%s621] sm:$0x3]
  %624 = vrot.lane.b32.xlu0 %v551, 108
  %v625 = vpop.permute.xlu0 %624
  %v626 = vsel %vm70, %v625, 0
  %628 = vmatpush.msra.mxu0 0.0
  %629 = vmatpush.msra.mxu0 0.0
  %630 = vmatpush.msra.mxu0 0.0
  %631 = vmatpush.msra.mxu0 0.0
  %632 = vmatpush.msra.mxu0 0.0
  %633 = vmatpush.msra.mxu0 0.0
  %634 = vmatpush.msra.mxu0 0.0
  %635 = vmatpush.msra.mxu0 0.0
  %636 = vmatpush.msra.mxu0 0.0
  %637 = vmatpush.msra.mxu0 0.0
  %638 = vmatpush.msra.mxu0 0.0
  %639 = vmatpush.msra.mxu0 0.0
  %640 = vmatpush.msra.mxu0 0.0
  %641 = vmatpush.msra.mxu0 %v76
  %642 = vmatpush.msra.mxu0 %v53
  %643 = vmatpush.msra.mxu0 %v52
  %644 = vmatmul.f32.gmra.mxu0 %v626
  %v645 = vpop.f32.mrf.mxu0
  %v646 = vadd.f32 %v68, %v645
  %647 = vdwg.mxu0
  %v648 = vadd.f32 %v620, %v646
  %v649 = vxor.u32 %v648, 2147483648
  %v650 = vmul.f32 %v649, 1.442695
  %v651 = vpow.pop %v650
  %v652 = vadd.f32 %v651, 1.0
  %v653 = vrcp.pop %v652
  %v654 = vmul.f32 %v652, %v653
  %v655 = vsub.f32 1.0, %v654
  %v656 = vmul.f32 %v653, %v655
  %v657 = vadd.f32 %v653, %v656
  %vm658 = vweird.f32 %v652
  %vm659 = vweird.f32 %v653
  %vm660 = vmor %vm658, %vm659
  %v661 = vsel %vm660, %v653, %v657
  %v662 = vand.u32 2147483647, %v652
  %vm663 = vcmp.eq.f32.partialorder %v662, 8.507059e+37
  %v664 = vand.u32 %v652, 2147483648
  %v665 = vor.u32 1.1754944e-38, %v664
  %v666 = vsel %vm663, %v665, %v661
  %v667 = vmul.f32 1.0, %v666
  %669 = vrot.lane.b32.xlu0 %v646, 88
  %v670 = vpop.permute.xlu0 %669
  %v672 = vmul.f32 %v667, %v670
  %674 = vrot.lane.b32.xlu0 %v672, 40
  %v675 = vpop.permute.xlu0 %674
  %v677 = vadd.f32 %v620, %v675
  %v678 = vtanh.pop %v677
  %v679 = vsub.f32 1.0, %v667
  %681 = vrot.lane.b32.xlu0 %v678, 108
  %v682 = vpop.permute.xlu0 %681
  %v684 = vmul.f32 %v679, %v682
  %v685 = vmul.f32 %v667, %v551
  %v686 = vadd.f32 %v684, %v685
  %688 = vrot.lane.b32.xlu0 %v618, 48
  %v689 = vpop.permute.xlu0 %688
  %v690 = vsel %vm70, %v689, 0
  %692 = vmatpush.msra.mxu0 0.0
  %693 = vmatpush.msra.mxu0 0.0
  %694 = vmatpush.msra.mxu0 0.0
  %695 = vmatpush.msra.mxu0 0.0
  %696 = vmatpush.msra.mxu0 0.0
  %697 = vmatpush.msra.mxu0 0.0
  %698 = vmatpush.msra.mxu0 0.0
  %699 = vmatpush.msra.mxu0 0.0
  %700 = vmatpush.msra.mxu0 0.0
  %701 = vmatpush.msra.mxu0 0.0
  %702 = vmatpush.msra.mxu0 0.0
  %703 = vmatpush.msra.mxu0 0.0
  %704 = vmatpush.msra.mxu0 0.0
  %705 = vmatpush.msra.mxu0 %v147
  %706 = vmatpush.msra.mxu0 %v58
  %707 = vmatpush.msra.mxu0 %v57
  %708 = vmatmul.f32.gmra.mxu0 %v690
  %v709 = vpop.f32.mrf.mxu0
  %v710 = vadd.f32 %v141, %v709
  %711 = vdwg.mxu0
  %713 = vrot.lane.b32.xlu0 %v710, 60
  %v714 = vpop.permute.xlu0 %713
  %v716 = vadd.f32 %v622, %v714
  %v717 = vxor.u32 %v716, 2147483648
  %v718 = vmul.f32 %v717, 1.442695
  %v719 = vpow.pop %v718
  %v720 = vadd.f32 %v719, 1.0
  %v721 = vrcp.pop %v720
  %v722 = vmul.f32 %v720, %v721
  %v723 = vsub.f32 1.0, %v722
  %v724 = vmul.f32 %v721, %v723
  %v725 = vadd.f32 %v721, %v724
  %vm726 = vweird.f32 %v720
  %vm727 = vweird.f32 %v721
  %vm728 = vmor %vm726, %vm727
  %v729 = vsel %vm728, %v721, %v725
  %v730 = vand.u32 2147483647, %v720
  %vm731 = vcmp.eq.f32.partialorder %v730, 8.507059e+37
  %v732 = vand.u32 %v720, 2147483648
  %v733 = vor.u32 1.1754944e-38, %v732
  %v734 = vsel %vm731, %v733, %v729
  %v735 = vmul.f32 1.0, %v734
  %736 = vrot.lane.b32.xlu0 %v710, 20
  %v737 = vpop.permute.xlu0 %736
  %v739 = vmul.f32 %v735, %v737
  %741 = vrot.lane.b32.xlu0 %v739, 40
  %v742 = vpop.permute.xlu0 %741
  %v744 = vadd.f32 %v622, %v742
  %v745 = vtanh.pop %v744
  %v746 = vsub.f32 1.0, %v735
  %748 = vrot.lane.b32.xlu0 %v745, 108
  %v749 = vpop.permute.xlu0 %748
  %v751 = vmul.f32 %v746, %v749
  %v752 = vmul.f32 %v735, %v618
  %v753 = vadd.f32 %v751, %v752
  %s754 = scalar_lea.vmem %s0, 10
  %v755 = vld [vmem:[%s754] sm:$0x3]
  %s756 = scalar_lea.vmem %s42, 4
  %v757 = vld [vmem:[%s756] sm:$0x3]
  %759 = vrot.lane.b32.xlu0 %v686, 108
  %v760 = vpop.permute.xlu0 %759
  %v761 = vsel %vm70, %v760, 0
  %763 = vmatpush.msra.mxu0 0.0
  %764 = vmatpush.msra.mxu0 0.0
  %765 = vmatpush.msra.mxu0 0.0
  %766 = vmatpush.msra.mxu0 0.0
  %767 = vmatpush.msra.mxu0 0.0
  %768 = vmatpush.msra.mxu0 0.0
  %769 = vmatpush.msra.mxu0 0.0
  %770 = vmatpush.msra.mxu0 0.0
  %771 = vmatpush.msra.mxu0 0.0
  %772 = vmatpush.msra.mxu0 0.0
  %773 = vmatpush.msra.mxu0 0.0
  %774 = vmatpush.msra.mxu0 0.0
  %775 = vmatpush.msra.mxu0 0.0
  %776 = vmatpush.msra.mxu0 %v76
  %777 = vmatpush.msra.mxu0 %v53
  %778 = vmatpush.msra.mxu0 %v52
  %779 = vmatmul.f32.gmra.mxu0 %v761
  %v780 = vpop.f32.mrf.mxu0
  %v781 = vadd.f32 %v68, %v780
  %782 = vdwg.mxu0
  %v783 = vadd.f32 %v755, %v781
  %v784 = vxor.u32 %v783, 2147483648
  %v785 = vmul.f32 %v784, 1.442695
  %v786 = vpow.pop %v785
  %v787 = vadd.f32 %v786, 1.0
  %v788 = vrcp.pop %v787
  %v789 = vmul.f32 %v787, %v788
  %v790 = vsub.f32 1.0, %v789
  %v791 = vmul.f32 %v788, %v790
  %v792 = vadd.f32 %v788, %v791
  %vm793 = vweird.f32 %v787
  %vm794 = vweird.f32 %v788
  %vm795 = vmor %vm793, %vm794
  %v796 = vsel %vm795, %v788, %v792
  %v797 = vand.u32 2147483647, %v787
  %vm798 = vcmp.eq.f32.partialorder %v797, 8.507059e+37
  %v799 = vand.u32 %v787, 2147483648
  %v800 = vor.u32 1.1754944e-38, %v799
  %v801 = vsel %vm798, %v800, %v796
  %v802 = vmul.f32 1.0, %v801
  %804 = vrot.lane.b32.xlu0 %v781, 88
  %v805 = vpop.permute.xlu0 %804
  %v807 = vmul.f32 %v802, %v805
  %809 = vrot.lane.b32.xlu0 %v807, 40
  %v810 = vpop.permute.xlu0 %809
  %v812 = vadd.f32 %v755, %v810
  %v813 = vtanh.pop %v812
  %v814 = vsub.f32 1.0, %v802
  %816 = vrot.lane.b32.xlu0 %v813, 108
  %v817 = vpop.permute.xlu0 %816
  %v819 = vmul.f32 %v814, %v817
  %v820 = vmul.f32 %v802, %v686
  %v821 = vadd.f32 %v819, %v820
  %823 = vrot.lane.b32.xlu0 %v753, 48
  %v824 = vpop.permute.xlu0 %823
  %v825 = vsel %vm70, %v824, 0
  %827 = vmatpush.msra.mxu0 0.0
  %828 = vmatpush.msra.mxu0 0.0
  %829 = vmatpush.msra.mxu0 0.0
  %830 = vmatpush.msra.mxu0 0.0
  %831 = vmatpush.msra.mxu0 0.0
  %832 = vmatpush.msra.mxu0 0.0
  %833 = vmatpush.msra.mxu0 0.0
  %834 = vmatpush.msra.mxu0 0.0
  %835 = vmatpush.msra.mxu0 0.0
  %836 = vmatpush.msra.mxu0 0.0
  %837 = vmatpush.msra.mxu0 0.0
  %838 = vmatpush.msra.mxu0 0.0
  %839 = vmatpush.msra.mxu0 0.0
  %840 = vmatpush.msra.mxu0 %v147
  %841 = vmatpush.msra.mxu0 %v58
  %842 = vmatpush.msra.mxu0 %v57
  %843 = vmatmul.f32.gmra.mxu0 %v825
  %v844 = vpop.f32.mrf.mxu0
  %v845 = vadd.f32 %v141, %v844
  %846 = vdwg.mxu0
  %848 = vrot.lane.b32.xlu0 %v845, 60
  %v849 = vpop.permute.xlu0 %848
  %v851 = vadd.f32 %v757, %v849
  %v852 = vxor.u32 %v851, 2147483648
  %v853 = vmul.f32 %v852, 1.442695
  %v854 = vpow.pop %v853
  %v855 = vadd.f32 %v854, 1.0
  %v856 = vrcp.pop %v855
  %v857 = vmul.f32 %v855, %v856
  %v858 = vsub.f32 1.0, %v857
  %v859 = vmul.f32 %v856, %v858
  %v860 = vadd.f32 %v856, %v859
  %vm861 = vweird.f32 %v855
  %vm862 = vweird.f32 %v856
  %vm863 = vmor %vm861, %vm862
  %v864 = vsel %vm863, %v856, %v860
  %v865 = vand.u32 2147483647, %v855
  %vm866 = vcmp.eq.f32.partialorder %v865, 8.507059e+37
  %v867 = vand.u32 %v855, 2147483648
  %v868 = vor.u32 1.1754944e-38, %v867
  %v869 = vsel %vm866, %v868, %v864
  %v870 = vmul.f32 1.0, %v869
  %871 = vrot.lane.b32.xlu0 %v845, 20
  %v872 = vpop.permute.xlu0 %871
  %v874 = vmul.f32 %v870, %v872
  %876 = vrot.lane.b32.xlu0 %v874, 40
  %v877 = vpop.permute.xlu0 %876
  %v879 = vadd.f32 %v757, %v877
  %v880 = vtanh.pop %v879
  %v881 = vsub.f32 1.0, %v870
  %883 = vrot.lane.b32.xlu0 %v880, 108
  %v884 = vpop.permute.xlu0 %883
  %v886 = vmul.f32 %v881, %v884
  %v887 = vmul.f32 %v870, %v753
  %v888 = vadd.f32 %v886, %v887
  %s889 = scalar_lea.vmem %s0, 12
  %v890 = vld [vmem:[%s889] sm:$0x3]
  %s891 = scalar_lea.vmem %s42, 2
  %v892 = vld [vmem:[%s891] sm:$0x3]
  %894 = vrot.lane.b32.xlu0 %v821, 108
  %v895 = vpop.permute.xlu0 %894
  %v896 = vsel %vm70, %v895, 0
  %898 = vmatpush.msra.mxu0 0.0
  %899 = vmatpush.msra.mxu0 0.0
  %900 = vmatpush.msra.mxu0 0.0
  %901 = vmatpush.msra.mxu0 0.0
  %902 = vmatpush.msra.mxu0 0.0
  %903 = vmatpush.msra.mxu0 0.0
  %904 = vmatpush.msra.mxu0 0.0
  %905 = vmatpush.msra.mxu0 0.0
  %906 = vmatpush.msra.mxu0 0.0
  %907 = vmatpush.msra.mxu0 0.0
  %908 = vmatpush.msra.mxu0 0.0
  %909 = vmatpush.msra.mxu0 0.0
  %910 = vmatpush.msra.mxu0 0.0
  %911 = vmatpush.msra.mxu0 %v76
  %912 = vmatpush.msra.mxu0 %v53
  %913 = vmatpush.msra.mxu0 %v52
  %914 = vmatmul.f32.gmra.mxu0 %v896
  %v915 = vpop.f32.mrf.mxu0
  %v916 = vadd.f32 %v68, %v915
  %917 = vdwg.mxu0
  %v918 = vadd.f32 %v890, %v916
  %v919 = vxor.u32 %v918, 2147483648
  %v920 = vmul.f32 %v919, 1.442695
  %v921 = vpow.pop %v920
  %v922 = vadd.f32 %v921, 1.0
  %v923 = vrcp.pop %v922
  %v924 = vmul.f32 %v922, %v923
  %v925 = vsub.f32 1.0, %v924
  %v926 = vmul.f32 %v923, %v925
  %v927 = vadd.f32 %v923, %v926
  %vm928 = vweird.f32 %v922
  %vm929 = vweird.f32 %v923
  %vm930 = vmor %vm928, %vm929
  %v931 = vsel %vm930, %v923, %v927
  %v932 = vand.u32 2147483647, %v922
  %vm933 = vcmp.eq.f32.partialorder %v932, 8.507059e+37
  %v934 = vand.u32 %v922, 2147483648
  %v935 = vor.u32 1.1754944e-38, %v934
  %v936 = vsel %vm933, %v935, %v931
  %v937 = vmul.f32 1.0, %v936
  %939 = vrot.lane.b32.xlu0 %v916, 88
  %v940 = vpop.permute.xlu0 %939
  %v942 = vmul.f32 %v937, %v940
  %944 = vrot.lane.b32.xlu0 %v942, 40
  %v945 = vpop.permute.xlu0 %944
  %v947 = vadd.f32 %v890, %v945
  %v948 = vtanh.pop %v947
  %v949 = vsub.f32 1.0, %v937
  %951 = vrot.lane.b32.xlu0 %v948, 108
  %v952 = vpop.permute.xlu0 %951
  %v954 = vmul.f32 %v949, %v952
  %v955 = vmul.f32 %v937, %v821
  %v956 = vadd.f32 %v954, %v955
  %958 = vrot.lane.b32.xlu0 %v888, 48
  %v959 = vpop.permute.xlu0 %958
  %v960 = vsel %vm70, %v959, 0
  %962 = vmatpush.msra.mxu0 0.0
  %963 = vmatpush.msra.mxu0 0.0
  %964 = vmatpush.msra.mxu0 0.0
  %965 = vmatpush.msra.mxu0 0.0
  %966 = vmatpush.msra.mxu0 0.0
  %967 = vmatpush.msra.mxu0 0.0
  %968 = vmatpush.msra.mxu0 0.0
  %969 = vmatpush.msra.mxu0 0.0
  %970 = vmatpush.msra.mxu0 0.0
  %971 = vmatpush.msra.mxu0 0.0
  %972 = vmatpush.msra.mxu0 0.0
  %973 = vmatpush.msra.mxu0 0.0
  %974 = vmatpush.msra.mxu0 0.0
  %975 = vmatpush.msra.mxu0 %v147
  %976 = vmatpush.msra.mxu0 %v58
  %977 = vmatpush.msra.mxu0 %v57
  %978 = vmatmul.f32.gmra.mxu0 %v960
  %v979 = vpop.f32.mrf.mxu0
  %v980 = vadd.f32 %v141, %v979
  %981 = vdwg.mxu0
  %983 = vrot.lane.b32.xlu0 %v980, 60
  %v984 = vpop.permute.xlu0 %983
  %v986 = vadd.f32 %v892, %v984
  %v987 = vxor.u32 %v986, 2147483648
  %v988 = vmul.f32 %v987, 1.442695
  %v989 = vpow.pop %v988
  %v990 = vadd.f32 %v989, 1.0
  %v991 = vrcp.pop %v990
  %v992 = vmul.f32 %v990, %v991
  %v993 = vsub.f32 1.0, %v992
  %v994 = vmul.f32 %v991, %v993
  %v995 = vadd.f32 %v991, %v994
  %vm996 = vweird.f32 %v990
  %vm997 = vweird.f32 %v991
  %vm998 = vmor %vm996, %vm997
  %v999 = vsel %vm998, %v991, %v995
  %v1000 = vand.u32 2147483647, %v990
  %vm1001 = vcmp.eq.f32.partialorder %v1000, 8.507059e+37
  %v1002 = vand.u32 %v990, 2147483648
  %v1003 = vor.u32 1.1754944e-38, %v1002
  %v1004 = vsel %vm1001, %v1003, %v999
  %v1005 = vmul.f32 1.0, %v1004
  %1006 = vrot.lane.b32.xlu0 %v980, 20
  %v1007 = vpop.permute.xlu0 %1006
  %v1009 = vmul.f32 %v1005, %v1007
  %1011 = vrot.lane.b32.xlu0 %v1009, 40
  %v1012 = vpop.permute.xlu0 %1011
  %v1014 = vadd.f32 %v892, %v1012
  %v1015 = vtanh.pop %v1014
  %v1016 = vsub.f32 1.0, %v1005
  %1018 = vrot.lane.b32.xlu0 %v1015, 108
  %v1019 = vpop.permute.xlu0 %1018
  %v1021 = vmul.f32 %v1016, %v1019
  %v1022 = vmul.f32 %v1005, %v888
  %v1023 = vadd.f32 %v1021, %v1022
  %s1024 = scalar_lea.vmem %s0, 14
  %v1025 = vld [vmem:[%s1024] sm:$0x3]
  %v1026 = vld [vmem:[%s42] sm:$0x3]
  %1028 = vrot.lane.b32.xlu0 %v956, 108
  %v1029 = vpop.permute.xlu0 %1028
  %v1030 = vsel %vm70, %v1029, 0
  %1032 = vmatpush.msra.mxu0 0.0
  %1033 = vmatpush.msra.mxu0 0.0
  %1034 = vmatpush.msra.mxu0 0.0
  %1035 = vmatpush.msra.mxu0 0.0
  %1036 = vmatpush.msra.mxu0 0.0
  %1037 = vmatpush.msra.mxu0 0.0
  %1038 = vmatpush.msra.mxu0 0.0
  %1039 = vmatpush.msra.mxu0 0.0
  %1040 = vmatpush.msra.mxu0 0.0
  %1041 = vmatpush.msra.mxu0 0.0
  %1042 = vmatpush.msra.mxu0 0.0
  %1043 = vmatpush.msra.mxu0 0.0
  %1044 = vmatpush.msra.mxu0 0.0
  %1045 = vmatpush.msra.mxu0 %v76
  %1046 = vmatpush.msra.mxu0 %v53
  %1047 = vmatpush.msra.mxu0 %v52
  %1048 = vmatmul.f32.gmra.mxu0 %v1030
  %v1049 = vpop.f32.mrf.mxu0
  %v1050 = vadd.f32 %v68, %v1049
  %1051 = vdwg.mxu0
  %v1052 = vadd.f32 %v1025, %v1050
  %v1053 = vxor.u32 %v1052, 2147483648
  %v1054 = vmul.f32 %v1053, 1.442695
  %v1055 = vpow.pop %v1054
  %v1056 = vadd.f32 %v1055, 1.0
  %v1057 = vrcp.pop %v1056
  %v1058 = vmul.f32 %v1056, %v1057
  %v1059 = vsub.f32 1.0, %v1058
  %v1060 = vmul.f32 %v1057, %v1059
  %v1061 = vadd.f32 %v1057, %v1060
  %vm1062 = vweird.f32 %v1056
  %vm1063 = vweird.f32 %v1057
  %vm1064 = vmor %vm1062, %vm1063
  %v1065 = vsel %vm1064, %v1057, %v1061
  %v1066 = vand.u32 2147483647, %v1056
  %vm1067 = vcmp.eq.f32.partialorder %v1066, 8.507059e+37
  %v1068 = vand.u32 %v1056, 2147483648
  %v1069 = vor.u32 1.1754944e-38, %v1068
  %v1070 = vsel %vm1067, %v1069, %v1065
  %v1071 = vmul.f32 1.0, %v1070
  %1073 = vrot.lane.b32.xlu0 %v1050, 88
  %v1074 = vpop.permute.xlu0 %1073
  %v1076 = vmul.f32 %v1071, %v1074
  %1078 = vrot.lane.b32.xlu0 %v1076, 40
  %v1079 = vpop.permute.xlu0 %1078
  %v1081 = vadd.f32 %v1025, %v1079
  %v1082 = vtanh.pop %v1081
  %v1083 = vsub.f32 1.0, %v1071
  %1085 = vrot.lane.b32.xlu0 %v1082, 108
  %v1086 = vpop.permute.xlu0 %1085
  %v1088 = vmul.f32 %v1083, %v1086
  %v1089 = vmul.f32 %v1071, %v956
  %v1090 = vadd.f32 %v1088, %v1089
  %1092 = vrot.lane.b32.xlu0 %v1023, 48
  %v1093 = vpop.permute.xlu0 %1092
  %v1094 = vsel %vm70, %v1093, 0
  %1096 = vmatpush.msra.mxu0 0.0
  %1097 = vmatpush.msra.mxu0 0.0
  %1098 = vmatpush.msra.mxu0 0.0
  %1099 = vmatpush.msra.mxu0 0.0
  %1100 = vmatpush.msra.mxu0 0.0
  %1101 = vmatpush.msra.mxu0 0.0
  %1102 = vmatpush.msra.mxu0 0.0
  %1103 = vmatpush.msra.mxu0 0.0
  %1104 = vmatpush.msra.mxu0 0.0
  %1105 = vmatpush.msra.mxu0 0.0
  %1106 = vmatpush.msra.mxu0 0.0
  %1107 = vmatpush.msra.mxu0 0.0
  %1108 = vmatpush.msra.mxu0 0.0
  %1109 = vmatpush.msra.mxu0 %v147
  %1110 = vmatpush.msra.mxu0 %v58
  %1111 = vmatpush.msra.mxu0 %v57
  %1112 = vmatmul.f32.gmra.mxu0 %v1094
  %v1113 = vpop.f32.mrf.mxu0
  %v1114 = vadd.f32 %v141, %v1113
  %1115 = vdwg.mxu0
  %1117 = vrot.lane.b32.xlu0 %v1114, 60
  %v1118 = vpop.permute.xlu0 %1117
  %v1120 = vadd.f32 %v1026, %v1118
  %v1121 = vxor.u32 %v1120, 2147483648
  %v1122 = vmul.f32 %v1121, 1.442695
  %v1123 = vpow.pop %v1122
  %v1124 = vadd.f32 %v1123, 1.0
  %v1125 = vrcp.pop %v1124
  %v1126 = vmul.f32 %v1124, %v1125
  %v1127 = vsub.f32 1.0, %v1126
  %v1128 = vmul.f32 %v1125, %v1127
  %v1129 = vadd.f32 %v1125, %v1128
  %vm1130 = vweird.f32 %v1124
  %vm1131 = vweird.f32 %v1125
  %vm1132 = vmor %vm1130, %vm1131
  %v1133 = vsel %vm1132, %v1125, %v1129
  %v1134 = vand.u32 2147483647, %v1124
  %vm1135 = vcmp.eq.f32.partialorder %v1134, 8.507059e+37
  %v1136 = vand.u32 %v1124, 2147483648
  %v1137 = vor.u32 1.1754944e-38, %v1136
  %v1138 = vsel %vm1135, %v1137, %v1133
  %v1139 = vmul.f32 1.0, %v1138
  %1140 = vrot.lane.b32.xlu0 %v1114, 20
  %v1141 = vpop.permute.xlu0 %1140
  %v1143 = vmul.f32 %v1139, %v1141
  %1145 = vrot.lane.b32.xlu0 %v1143, 40
  %v1146 = vpop.permute.xlu0 %1145
  %v1148 = vadd.f32 %v1026, %v1146
  %v1149 = vtanh.pop %v1148
  %v1150 = vsub.f32 1.0, %v1139
  %1152 = vrot.lane.b32.xlu0 %v1149, 108
  %v1153 = vpop.permute.xlu0 %1152
  %v1155 = vmul.f32 %v1150, %v1153
  %v1156 = vmul.f32 %v1139, %v1023
  %v1157 = vadd.f32 %v1155, %v1156
  %1159 = vrot.lane.b32.xlu0 %v1090, 108
  %v1160 = vpop.permute.xlu0 %1159
  %vm1162 = vcmask 156672
  %1163 = vst.msk [vmem:[#allocation2] sm:$0x3] %vm1162, %v1160
  %1165 = vrot.lane.b32.xlu0 %v1157, 48
  %v1166 = vpop.permute.xlu0 %1165
  %1168 = vst.msk [vmem:[#allocation3] sm:$0x3] %vm1162, %v1166
  // Predicated region
  $region30: #{_lambda_.7} parent=0 // pred_check
    %p1169 = pneg %p45
  $region31: #{_lambda_.7} parent=0 // pred_check_branch
    %1171 = sbr.rel (%p1169) target = $region33
  $region32: #{_lambda_.7} parent=0 // pred_region
    %v1172 = vld [vmem:[%s4] sm:$0xff]
    %v1173 = vld [vmem:[%s4 + $0x8] sm:$0xff]
    %v1174 = vld [vmem:[%s4 + $0x10] sm:$0xf]
    %s1175 = scalar_lea.vmem %s4, 24
    %v1176 = vld [vmem:[%s1175] sm:$0xff]
    %v1177 = vld [vmem:[%s1175 + $0x8] sm:$0xff]
    %v1178 = vld [vmem:[%s1175 + $0x10] sm:$0xf]
    %v1179 = vsel %vm70, %v1166, 0
    %v1182 = vsel %vm74, %v1178, 0
    %1184 = vmatpush.msra.mxu0 0.0
    %1185 = vmatpush.msra.mxu0 0.0
    %1186 = vmatpush.msra.mxu0 0.0
    %1187 = vmatpush.msra.mxu0 0.0
    %1188 = vmatpush.msra.mxu0 0.0
    %1189 = vmatpush.msra.mxu0 0.0
    %1190 = vmatpush.msra.mxu0 0.0
    %1191 = vmatpush.msra.mxu0 0.0
    %1192 = vmatpush.msra.mxu0 0.0
    %1193 = vmatpush.msra.mxu0 0.0
    %1194 = vmatpush.msra.mxu0 0.0
    %1195 = vmatpush.msra.mxu0 0.0
    %1196 = vmatpush.msra.mxu0 0.0
    %1197 = vmatpush.msra.mxu0 %v1182
    %1198 = vmatpush.msra.mxu0 %v1177
    %1199 = vmatpush.msra.mxu0 %v1176
    %1200 = vmatmul.f32.gmra.mxu0 %v1179
    %v1201 = vpop.f32.mrf.mxu0
    %v1202 = vadd.f32 0.0, %v1201
    %1203 = vdwg.mxu0
    %v1204 = vsel %vm70, %v1160, 0
    %v1207 = vsel %vm74, %v1174, 0
    %1209 = vmatpush.msra.mxu0 0.0
    %1210 = vmatpush.msra.mxu0 0.0
    %1211 = vmatpush.msra.mxu0 0.0
    %1212 = vmatpush.msra.mxu0 0.0
    %1213 = vmatpush.msra.mxu0 0.0
    %1214 = vmatpush.msra.mxu0 0.0
    %1215 = vmatpush.msra.mxu0 0.0
    %1216 = vmatpush.msra.mxu0 0.0
    %1217 = vmatpush.msra.mxu0 0.0
    %1218 = vmatpush.msra.mxu0 0.0
    %1219 = vmatpush.msra.mxu0 0.0
    %1220 = vmatpush.msra.mxu0 0.0
    %1221 = vmatpush.msra.mxu0 0.0
    %1222 = vmatpush.msra.mxu0 %v1207
    %1223 = vmatpush.msra.mxu0 %v1173
    %1224 = vmatpush.msra.mxu0 %v1172
    %1225 = vmatmul.f32.gmra.mxu0 %v1204
    %v1226 = vpop.f32.mrf.mxu0
    %v1227 = vadd.f32 %v1202, %v1226
    %1228 = vdwg.mxu0
    %v1229 = vld [vmem:[%s5] sm:$0x1]
    %v1231 = vperm.slane %v1229, 0
    %v1233 = vadd.f32 %v1227, %v1231
    %vm1234 = vcmask 33792
    %v1235 = vsel %vm1234, %v1233, -inf
    %1236 = vmax.xlane.f32.xlu0 %v1235
    %v1237 = vpop.xlane.xlu0 %1236
    %v1238 = vsub.f32 %v1233, %v1237
    %v1239 = vmul.f32 %v1238, 1.442695
    %v1240 = vpow.pop %v1239
    %v1241 = vsel %vm1234, %v1240, 0.0
    %1242 = vadd.xlane.f32.xlu0 %v1241
    %v1243 = vpop.xlane.xlu0 %1242
    %v1244 = vrcp.pop %v1243
    %v1245 = vmul.f32 %v1243, %v1244
    %v1246 = vsub.f32 1.0, %v1245
    %v1247 = vmul.f32 %v1244, %v1246
    %v1248 = vadd.f32 %v1244, %v1247
    %vm1249 = vweird.f32 %v1243
    %vm1250 = vweird.f32 %v1244
    %vm1251 = vmor %vm1249, %vm1250
    %v1252 = vsel %vm1251, %v1244, %v1248
    %v1253 = vand.u32 2147483647, %v1243
    %vm1254 = vcmp.eq.f32.partialorder %v1253, 8.507059e+37
    %v1255 = vand.u32 %v1243, 2147483648
    %v1256 = vor.u32 1.1754944e-38, %v1255
    %v1257 = vsel %vm1254, %v1256, %v1252
    %v1258 = vmul.f32 %v1240, %v1257
    %v1259 = vmul.f32 %v1258, 5.0
    %v1260 = vadd.f32 %v1259, 1e-20
    %v1261 = vlog2.pop %v1260
    %v1262 = vmul.f32 %v1261, 0.6931472
    %v1263 = vmul.f32 %v1258, %v1262
    %v1264 = vsel %vm1234, %v1263, 0.0
    %1265 = vadd.xlane.f32.xlu0 %v1264
    %v1266 = vpop.xlane.xlu0 %1265
    %vm1267 = vcmask 1024
    %1268 = vst.msk [vmem:[%s6] sm:$0x3] %vm1267, %v1266
  $region33: #{_lambda_.7} parent=0 // pred_fallthru
    _
  // Predicated region
  $region34: #{_lambda_.7} parent=0 // pred_check
    _
  $region35: #{_lambda_.7} parent=0 // pred_check_branch
    %1270 = sbr.rel (0) target = $region37
  $region36: #{_lambda_.7} parent=0 // pred_region
    _
  $region37: #{_lambda_.7} parent=0 // pred_fallthru
    _
  // Predicated region
  $region38: #{_lambda_.7} parent=0 // pred_check
    _
  $region39: #{_lambda_.7} parent=0 // pred_check_branch
    %1272 = sbr.rel (0) target = $region41
  $region40: #{_lambda_.7} parent=0 // pred_region
    _
  $region41: #{_lambda_.7} parent=0 // pred_fallthru
    _

</llo_original>
